<compile_context>
chip_gen: v7x
topology: tpu7x:2x2x1
jax: 0.10.0
libtpu: 0.0.40
codegen_flags: <defaults>
</compile_context>

<pallas_src>
import functools
import math

import jax
import jax.numpy as jnp
from jax import lax
from jax.experimental import pallas as pl
from jax.experimental.pallas import tpu as pltpu


# ----------------------------- kernel --------------------------------------- #

def _layer_norm(x, gamma, beta, eps=1e-5):
    mu = jnp.mean(x, axis=-1, keepdims=True)
    var = jnp.mean((x - mu) ** 2, axis=-1, keepdims=True)
    return (x - mu) * lax.rsqrt(var + eps) * gamma + beta


def fused_transformer_kernel(
        x_ref,
        in_w_ref, in_b_ref, out_w_ref, out_b_ref,
        g1_ref, b1_ref, w1_ref, bb1_ref, w2_ref, bb2_ref, g2_ref, b2_ref,
        dec_w_ref, dec_b_ref,
        o_ref,
        x_res, attn_sc,
        *, n_heads, batch, seq):
    """grid=(n_layers,). One grid step == one nn.TransformerEncoderLayer (post-norm).
    Activations live in the VMEM scratch `x_res` (shape (B*S, D), f32) across layers.
    The final decoder Linear runs under pl.when on the last layer."""
    layer = pl.program_id(0)
    n_layers = pl.num_programs(0)
    D = x_res.shape[-1]
    hd = D // n_heads
    cdt = in_w_ref.dtype              # MXU operand dtype (bf16); accumulation is f32

    # -- layer 0: (S, B, D) PyTorch layout -> resident (B*S, D) batch-major rows -----
    @pl.when(layer == 0)
    def _():
        xv = x_ref[...]                                    # (S, B, D), tiny
        for b in range(batch):                             # static unroll
            x_res[b * seq:(b + 1) * seq, :] = xv[:, b, :]

    x = x_res[...]                                         # (B*S, D) f32

    # -- multi-head self attention ---------------------------------------------------
    # 1/sqrt(head_dim) query scale is folded into in_proj weights/bias at pack time.
    qkv = jnp.dot(x.astype(cdt), in_w_ref[0],
                  preferred_element_type=jnp.float32) + in_b_ref[0]   # (B*S, 3D)
    q = qkv[:, :D]
    k = qkv[:, D:2 * D]
    v = qkv[:, 2 * D:]

    for b in range(batch):            # static unroll; B * n_heads tiny matmuls
        r0 = b * seq
        qb = q[r0:r0 + seq]
        kb = k[r0:r0 + seq]
        vb = v[r0:r0 + seq]
        for h in range(n_heads):
            c0 = h * hd
            qh = qb[:, c0:c0 + hd].astype(cdt)             # (S, hd)
            kh = kb[:, c0:c0 + hd].astype(cdt)
            vh = vb[:, c0:c0 + hd].astype(cdt)
            # scores: contract last dims of both -> no in-kernel transpose
            s = lax.dot_general(qh, kh, (((1,), (1,)), ((), ())),
                                preferred_element_type=jnp.float32)    # (S, S)
            s = s - jnp.max(s, axis=-1, keepdims=True)
            p = jnp.exp(s)
            p = p * pl.reciprocal(jnp.sum(p, axis=-1, keepdims=True), approx=True)
            # write each head's output into its lane slice of the scratch (no concat)
            attn_sc[r0:r0 + seq, c0:c0 + hd] = jnp.dot(
                p.astype(cdt), vh, preferred_element_type=jnp.float32)

    attn = jnp.dot(attn_sc[...].astype(cdt), out_w_ref[0],
                   preferred_element_type=jnp.float32) + out_b_ref[0]  # (B*S, D)

    # dropout layers are identity at inference
    x = _layer_norm(x + attn, g1_ref[0], b1_ref[0])

    # -- feed-forward ------------------------------------------------------------------
    ff = jnp.dot(x.astype(cdt), w1_ref[0],
                 preferred_element_type=jnp.float32) + bb1_ref[0]      # (B*S, dff)
    ff = jnp.maximum(ff, 0.0)                                          # ReLU
    ff = jnp.dot(ff.astype(cdt), w2_ref[0],
                 preferred_element_type=jnp.float32) + bb2_ref[0]      # (B*S, D)

    x = _layer_norm(x + ff, g2_ref[0], b2_ref[0])
    x_res[...] = x

    # -- fused decoder Linear on the last layer ----------------------------------------
    @pl.when(layer == n_layers - 1)
    def _():
        # PyTorch quirk reproduced: decoder input is x[:, -1, :] of the (S, B, D)
        # tensor, i.e. the LAST batch element's full sequence.
        x_last = x[(batch - 1) * seq:batch * seq, :]                   # (S, D)
        o_ref[...] = (jnp.dot(x_last.astype(cdt), dec_w_ref[...],
                              preferred_element_type=jnp.float32)
                      + dec_b_ref[...])


# ----------------------------- wrapper -------------------------------------- #

def transformer_forward(x_sbd, packed, *, n_heads, n_layers):
    """x_sbd: (S, B, D) -- PyTorch default batch_first=False layout.
    Returns (S, output_size), matching TransformerModel.forward."""
    S, B, D = x_sbd.shape
    dff = packed["w1_t"].shape[-1]
    O = packed["dec_w_t"].shape[-1]

    def lw(shape):   # per-layer (stacked) parameter: block = one layer's slice
        return pl.BlockSpec((1,) + shape, lambda l, _s=shape: (l,) + (0,) * len(_s))

    def full(shape):  # layer-independent parameter: whole array, constant block
        return pl.BlockSpec(shape, lambda l, _s=shape: (0,) * len(_s))

    in_specs = [
        full((S, B, D)),                 # x (fetched once; constant block index)
        lw((D, 3 * D)), lw((1, 3 * D)),  # in_proj  (pre-transposed, scale folded)
        lw((D, D)), lw((1, D)),          # out_proj (pre-transposed)
        lw((1, D)), lw((1, D)),          # norm1
        lw((D, dff)), lw((1, dff)),      # linear1  (pre-transposed)
        lw((dff, D)), lw((1, D)),        # linear2  (pre-transposed)
        lw((1, D)), lw((1, D)),          # norm2
        full((D, O)), full((1, O)),      # decoder (pre-transposed)
    ]

    kernel = functools.partial(fused_transformer_kernel,
                               n_heads=n_heads, batch=B, seq=S)
    return pl.pallas_call(
        kernel,
        out_shape=jax.ShapeDtypeStruct((S, O), jnp.float32),
        grid=(n_layers,),
        in_specs=in_specs,
        out_specs=pl.BlockSpec((S, O), lambda l: (0, 0)),
        scratch_shapes=[pltpu.VMEM((B * S, D), jnp.float32),   # resident activations
                        pltpu.VMEM((B * S, D), jnp.float32)],  # attention head outputs
        compiler_params=pltpu.CompilerParams(
            dimension_semantics=("arbitrary",)),               # sequential over layers
    )(x_sbd,
      packed["in_w_t"], packed["in_b"], packed["out_w_t"], packed["out_b"],
      packed["g1"], packed["b1"], packed["w1_t"], packed["bb1"],
      packed["w2_t"], packed["bb2"], packed["g2"], packed["b2"],
      packed["dec_w_t"], packed["dec_b"])


# ----------------------------- params --------------------------------------- #

def init_layer_params(key, D, dff):
    """PyTorch-layout parameters for one nn.TransformerEncoderLayer."""
    ks = jax.random.split(key, 4)
    s = 0.02
    f32 = jnp.float32
    return dict(
        in_w=jax.random.normal(ks[0], (3 * D, D), f32) * s,   # in_proj_weight
        in_b=jnp.zeros((1, 3 * D), f32),
        out_w=jax.random.normal(ks[1], (D, D), f32) * s,      # out_proj.weight
        out_b=jnp.zeros((1, D), f32),
        g1=jnp.ones((1, D), f32), b1=jnp.zeros((1, D), f32),
        w1=jax.random.normal(ks[2], (dff, D), f32) * s,       # linear1.weight
        bb1=jnp.zeros((1, dff), f32),
        w2=jax.random.normal(ks[3], (D, dff), f32) * s,       # linear2.weight
        bb2=jnp.zeros((1, D), f32),
        g2=jnp.ones((1, D), f32), b2=jnp.zeros((1, D), f32),
    )


def init_params(key, input_size, output_size, n_layers, dff):
    keys = jax.random.split(key, n_layers + 1)
    layers = [init_layer_params(keys[i], input_size, dff) for i in range(n_layers)]
    dec_w = jax.random.normal(keys[-1], (output_size, input_size), jnp.float32) * 0.02
    dec_b = jnp.zeros((1, output_size), jnp.float32)
    return dict(layers=layers, dec_w=dec_w, dec_b=dec_b)


def pack_params(params, n_heads, weight_dtype=jnp.bfloat16):
    """PyTorch-layout params -> kernel layout:
    weights pre-transposed (kills in-kernel .T), 1/sqrt(head_dim) folded into the
    Q rows of in_proj weight AND bias, per-layer tensors stacked on a leading layer
    axis, weight matrices stored in bf16 (biases / LN params kept f32)."""
    layers = params["layers"]
    D = layers[0]["in_w"].shape[1]
    hd = D // n_heads
    scale = 1.0 / math.sqrt(hd)

    def stack(fn):
        return jnp.stack([fn(p) for p in layers], axis=0)

    def fold_in_w(p):
        w = p["in_w"].at[:D].multiply(scale)       # scale W_q rows
        return w.T.astype(weight_dtype)            # (D, 3D)

    def fold_in_b(p):
        return p["in_b"].at[:, :D].multiply(scale)  # scale b_q (f32)

    return dict(
        in_w_t=stack(fold_in_w),
        in_b=stack(fold_in_b),
        out_w_t=stack(lambda p: p["out_w"].T.astype(weight_dtype)),
        out_b=stack(lambda p: p["out_b"]),
        g1=stack(lambda p: p["g1"]), b1=stack(lambda p: p["b1"]),
        w1_t=stack(lambda p: p["w1"].T.astype(weight_dtype)),   # (D, dff)
        bb1=stack(lambda p: p["bb1"]),
        w2_t=stack(lambda p: p["w2"].T.astype(weight_dtype)),   # (dff, D)
        bb2=stack(lambda p: p["bb2"]),
        g2=stack(lambda p: p["g2"]), b2=stack(lambda p: p["b2"]),
        dec_w_t=params["dec_w"].T.astype(weight_dtype),         # (D, O)
        dec_b=params["dec_b"],
    )


# ----------------------------- main ------------------------------------------ #

if __name__ == "__main__":
    # TransformerModel(input_size=32, output_size=8, n_heads=4, n_layers=2, dropout=0.1)
    input_size = 32          # d_model
    output_size = 8
    n_heads = 4
    n_layers = 2
    dim_feedforward = 2048   # PyTorch default for nn.TransformerEncoderLayer
    # TODO(synk): dropout (p=0.1) has no deterministic Pallas equivalent; modeled as
    #             inference-mode identity.

    S, B = 8, 2              # (seq, batch) -- batch_first=False layout
    key = jax.random.PRNGKey(0)
    k_x, k_p = jax.random.split(key)

    x = jax.random.normal(k_x, (S, B, input_size), jnp.float32)
    params = init_params(k_p, input_size, output_size, n_layers, dim_feedforward)
    packed = pack_params(params, n_heads)

    fwd = jax.jit(functools.partial(transformer_forward,
                                    n_heads=n_heads, n_layers=n_layers))
    out = fwd(x, packed)
    out = jax.block_until_ready(out)
    assert out.shape == (S, output_size), out.shape
    print("KERNEL_OK")
</pallas_src>

<mosaic_0001>
module attributes {stable_mosaic.version = 11 : i64} {
  func.func @fused_transformer_kernel(%arg0: i32, %arg1: memref<8x2x32xf32, #tpu.memory_space<vmem>>, %arg2: memref<1x32x96xbf16, #tpu.memory_space<vmem>>, %arg3: memref<1x1x96xf32, #tpu.memory_space<vmem>>, %arg4: memref<1x32x32xbf16, #tpu.memory_space<vmem>>, %arg5: memref<1x1x32xf32, #tpu.memory_space<vmem>>, %arg6: memref<1x1x32xf32, #tpu.memory_space<vmem>>, %arg7: memref<1x1x32xf32, #tpu.memory_space<vmem>>, %arg8: memref<1x32x2048xbf16, #tpu.memory_space<vmem>>, %arg9: memref<1x1x2048xf32, #tpu.memory_space<vmem>>, %arg10: memref<1x2048x32xbf16, #tpu.memory_space<vmem>>, %arg11: memref<1x1x32xf32, #tpu.memory_space<vmem>>, %arg12: memref<1x1x32xf32, #tpu.memory_space<vmem>>, %arg13: memref<1x1x32xf32, #tpu.memory_space<vmem>>, %arg14: memref<32x8xbf16, #tpu.memory_space<vmem>>, %arg15: memref<1x8xf32, #tpu.memory_space<vmem>>, %arg16: memref<8x8xf32, #tpu.memory_space<vmem>>, %arg17: memref<16x32xf32, #tpu.memory_space<vmem>>, %arg18: memref<16x32xf32, #tpu.memory_space<vmem>>) attributes {dimension_semantics = [#tpu.dimension_semantics<arbitrary>], iteration_bounds = array<i64: 2>, scalar_prefetch = 0 : i64, scratch_operands = 2 : i64, tpu.core_type = #tpu.core_type<tc>, window_params = [{pipeline_mode = #tpu.pipeline_mode<synchronous>, transform_indices = @transform_0, window_bounds = array<i64: 8, 2, 32>}, {transform_indices = @transform_1, window_bounds = array<i64: 1, 32, 96>}, {transform_indices = @transform_2, window_bounds = array<i64: 1, 1, 96>}, {transform_indices = @transform_3, window_bounds = array<i64: 1, 32, 32>}, {transform_indices = @transform_4, window_bounds = array<i64: 1, 1, 32>}, {transform_indices = @transform_5, window_bounds = array<i64: 1, 1, 32>}, {transform_indices = @transform_6, window_bounds = array<i64: 1, 1, 32>}, {transform_indices = @transform_7, window_bounds = array<i64: 1, 32, 2048>}, {transform_indices = @transform_8, window_bounds = array<i64: 1, 1, 2048>}, {transform_indices = @transform_9, window_bounds = array<i64: 1, 2048, 32>}, {transform_indices = @transform_10, window_bounds = array<i64: 1, 1, 32>}, {transform_indices = @transform_11, window_bounds = array<i64: 1, 1, 32>}, {transform_indices = @transform_12, window_bounds = array<i64: 1, 1, 32>}, {pipeline_mode = #tpu.pipeline_mode<synchronous>, transform_indices = @transform_13, window_bounds = array<i64: 32, 8>}, {pipeline_mode = #tpu.pipeline_mode<synchronous>, transform_indices = @transform_14, window_bounds = array<i64: 1, 8>}, {pipeline_mode = #tpu.pipeline_mode<synchronous>, transform_indices = @transform_15, window_bounds = array<i64: 8, 8>}]} {
    %c0_i32 = arith.constant 0 : i32
    %0 = arith.cmpi eq, %arg0, %c0_i32 : i32
    %1 = arith.extui %0 : i1 to i32
    %c0_i32_0 = arith.constant 0 : i32
    %2 = arith.cmpi ne, %1, %c0_i32_0 : i32
    scf.if %2 {
      %c0_102 = arith.constant 0 : index
      %c0_103 = arith.constant 0 : index
      %c0_104 = arith.constant 0 : index
      %266 = vector.load %arg1[%c0_102, %c0_103, %c0_104] : memref<8x2x32xf32, #tpu.memory_space<vmem>>, vector<8x2x32xf32>
      %267 = vector.extract_strided_slice %266 {offsets = [0, 0, 0], sizes = [8, 1, 32], strides = [1, 1, 1]} : vector<8x2x32xf32> to vector<8x1x32xf32>
      %268 = vector.shape_cast %267 : vector<8x1x32xf32> to vector<8x32xf32>
      %c0_105 = arith.constant 0 : index
      %c0_106 = arith.constant 0 : index
      %269 = vector.load %arg17[%c0_105, %c0_106] : memref<16x32xf32, #tpu.memory_space<vmem>>, vector<8x32xf32>
      tpu.vector_store %arg17[%c0_105, %c0_106], %268 {strides = array<i32>} : memref<16x32xf32, #tpu.memory_space<vmem>>, vector<8x32xf32>,
      %270 = vector.extract_strided_slice %266 {offsets = [0, 1, 0], sizes = [8, 1, 32], strides = [1, 1, 1]} : vector<8x2x32xf32> to vector<8x1x32xf32>
      %271 = vector.shape_cast %270 : vector<8x1x32xf32> to vector<8x32xf32>
      %c8_107 = arith.constant 8 : index
      %c0_108 = arith.constant 0 : index
      %272 = vector.load %arg17[%c8_107, %c0_108] : memref<16x32xf32, #tpu.memory_space<vmem>>, vector<8x32xf32>
      tpu.vector_store %arg17[%c8_107, %c0_108], %271 {strides = array<i32>} : memref<16x32xf32, #tpu.memory_space<vmem>>, vector<8x32xf32>,
    } else {
    }
    %c0 = arith.constant 0 : index
    %c0_1 = arith.constant 0 : index
    %3 = vector.load %arg17[%c0, %c0_1] : memref<16x32xf32, #tpu.memory_space<vmem>>, vector<16x32xf32>
    %4 = arith.truncf %3 : vector<16x32xf32> to vector<16x32xbf16>
    %c0_2 = arith.constant 0 : index
    %c0_3 = arith.constant 0 : index
    %c0_4 = arith.constant 0 : index
    %5 = vector.load %arg2[%c0_2, %c0_3, %c0_4] : memref<1x32x96xbf16, #tpu.memory_space<vmem>>, vector<1x32x96xbf16>
    %6 = vector.shape_cast %5 : vector<1x32x96xbf16> to vector<32x96xbf16>
    %cst = arith.constant dense<0.000000e+00> : vector<16x96xf32>
    %7 = tpu.matmul %4, %6, %cst {dimension_numbers = #tpu.dot_dimension_numbers<[1], [0], [0], [1], [0, 0, 1, 1], [], []>} : vector<16x32xbf16>, vector<32x96xbf16>, vector<16x96xf32> -> vector<16x96xf32>
    %c0_5 = arith.constant 0 : index
    %c0_6 = arith.constant 0 : index
    %c0_7 = arith.constant 0 : index
    %8 = vector.load %arg3[%c0_5, %c0_6, %c0_7] : memref<1x1x96xf32, #tpu.memory_space<vmem>>, vector<1x1x96xf32>
    %9 = vector.shape_cast %8 : vector<1x1x96xf32> to vector<1x96xf32>
    %10 = vector.broadcast %9 : vector<1x96xf32> to vector<16x96xf32>
    %11 = arith.addf %7, %10 : vector<16x96xf32>
    %12 = vector.extract_strided_slice %11 {offsets = [0, 0], sizes = [16, 32], strides = [1, 1]} : vector<16x96xf32> to vector<16x32xf32>
    %13 = vector.extract_strided_slice %11 {offsets = [0, 32], sizes = [16, 32], strides = [1, 1]} : vector<16x96xf32> to vector<16x32xf32>
    %14 = vector.extract_strided_slice %11 {offsets = [0, 64], sizes = [16, 32], strides = [1, 1]} : vector<16x96xf32> to vector<16x32xf32>
    %15 = vector.extract_strided_slice %12 {offsets = [0, 0], sizes = [8, 32], strides = [1, 1]} : vector<16x32xf32> to vector<8x32xf32>
    %16 = vector.extract_strided_slice %13 {offsets = [0, 0], sizes = [8, 32], strides = [1, 1]} : vector<16x32xf32> to vector<8x32xf32>
    %17 = vector.extract_strided_slice %14 {offsets = [0, 0], sizes = [8, 32], strides = [1, 1]} : vector<16x32xf32> to vector<8x32xf32>
    %18 = vector.extract_strided_slice %15 {offsets = [0, 0], sizes = [8, 8], strides = [1, 1]} : vector<8x32xf32> to vector<8x8xf32>
    %19 = arith.truncf %18 : vector<8x8xf32> to vector<8x8xbf16>
    %20 = vector.extract_strided_slice %16 {offsets = [0, 0], sizes = [8, 8], strides = [1, 1]} : vector<8x32xf32> to vector<8x8xf32>
    %21 = arith.truncf %20 : vector<8x8xf32> to vector<8x8xbf16>
    %22 = vector.extract_strided_slice %17 {offsets = [0, 0], sizes = [8, 8], strides = [1, 1]} : vector<8x32xf32> to vector<8x8xf32>
    %23 = arith.truncf %22 : vector<8x8xf32> to vector<8x8xbf16>
    %cst_8 = arith.constant dense<0.000000e+00> : vector<8x8xf32>
    %24 = tpu.matmul %19, %21, %cst_8 {dimension_numbers = #tpu.dot_dimension_numbers<[1], [1], [0], [0], [0, 0, 1, 0], [], []>} : vector<8x8xbf16>, vector<8x8xbf16>, vector<8x8xf32> -> vector<8x8xf32>
    %cst_9 = arith.constant dense<0xFF800000> : vector<8xf32>
    %25 = vector.multi_reduction <maximumf>, %24, %cst_9 [1] : vector<8x8xf32> to vector<8xf32>
    %26 = vector.shape_cast %25 : vector<8xf32> to vector<8x1xf32>
    %27 = vector.broadcast %26 : vector<8x1xf32> to vector<8x8xf32>
    %28 = arith.subf %24, %27 : vector<8x8xf32>
    %29 = math.exp %28 : vector<8x8xf32>
    %cst_10 = arith.constant dense<0.000000e+00> : vector<8xf32>
    %30 = vector.multi_reduction <add>, %29, %cst_10 [1] : vector<8x8xf32> to vector<8xf32>
    %31 = vector.shape_cast %30 : vector<8xf32> to vector<8x1xf32>
    %32 = tpu.reciprocal %31 {approx = true} : vector<8x1xf32> -> vector<8x1xf32>
    %33 = vector.broadcast %32 : vector<8x1xf32> to vector<8x8xf32>
    %34 = arith.mulf %29, %33 : vector<8x8xf32>
    %35 = arith.truncf %34 : vector<8x8xf32> to vector<8x8xbf16>
    %cst_11 = arith.constant dense<0.000000e+00> : vector<8x8xf32>
    %36 = tpu.matmul %35, %23, %cst_11 {dimension_numbers = #tpu.dot_dimension_numbers<[1], [0], [0], [1], [0, 0, 1, 1], [], []>} : vector<8x8xbf16>, vector<8x8xbf16>, vector<8x8xf32> -> vector<8x8xf32>
    %c0_12 = arith.constant 0 : index
    %c0_13 = arith.constant 0 : index
    %37 = vector.load %arg18[%c0_12, %c0_13] : memref<16x32xf32, #tpu.memory_space<vmem>>, vector<8x8xf32>
    tpu.vector_store %arg18[%c0_12, %c0_13], %36 {strides = array<i32>} : memref<16x32xf32, #tpu.memory_space<vmem>>, vector<8x8xf32>,
    %38 = vector.extract_strided_slice %15 {offsets = [0, 8], sizes = [8, 8], strides = [1, 1]} : vector<8x32xf32> to vector<8x8xf32>
    %39 = arith.truncf %38 : vector<8x8xf32> to vector<8x8xbf16>
    %40 = vector.extract_strided_slice %16 {offsets = [0, 8], sizes = [8, 8], strides = [1, 1]} : vector<8x32xf32> to vector<8x8xf32>
    %41 = arith.truncf %40 : vector<8x8xf32> to vector<8x8xbf16>
    %42 = vector.extract_strided_slice %17 {offsets = [0, 8], sizes = [8, 8], strides = [1, 1]} : vector<8x32xf32> to vector<8x8xf32>
    %43 = arith.truncf %42 : vector<8x8xf32> to vector<8x8xbf16>
    %cst_14 = arith.constant dense<0.000000e+00> : vector<8x8xf32>
    %44 = tpu.matmul %39, %41, %cst_14 {dimension_numbers = #tpu.dot_dimension_numbers<[1], [1], [0], [0], [0, 0, 1, 0], [], []>} : vector<8x8xbf16>, vector<8x8xbf16>, vector<8x8xf32> -> vector<8x8xf32>
    %cst_15 = arith.constant dense<0xFF800000> : vector<8xf32>
    %45 = vector.multi_reduction <maximumf>, %44, %cst_15 [1] : vector<8x8xf32> to vector<8xf32>
    %46 = vector.shape_cast %45 : vector<8xf32> to vector<8x1xf32>
    %47 = vector.broadcast %46 : vector<8x1xf32> to vector<8x8xf32>
    %48 = arith.subf %44, %47 : vector<8x8xf32>
    %49 = math.exp %48 : vector<8x8xf32>
    %cst_16 = arith.constant dense<0.000000e+00> : vector<8xf32>
    %50 = vector.multi_reduction <add>, %49, %cst_16 [1] : vector<8x8xf32> to vector<8xf32>
    %51 = vector.shape_cast %50 : vector<8xf32> to vector<8x1xf32>
    %52 = tpu.reciprocal %51 {approx = true} : vector<8x1xf32> -> vector<8x1xf32>
    %53 = vector.broadcast %52 : vector<8x1xf32> to vector<8x8xf32>
    %54 = arith.mulf %49, %53 : vector<8x8xf32>
    %55 = arith.truncf %54 : vector<8x8xf32> to vector<8x8xbf16>
    %cst_17 = arith.constant dense<0.000000e+00> : vector<8x8xf32>
    %56 = tpu.matmul %55, %43, %cst_17 {dimension_numbers = #tpu.dot_dimension_numbers<[1], [0], [0], [1], [0, 0, 1, 1], [], []>} : vector<8x8xbf16>, vector<8x8xbf16>, vector<8x8xf32> -> vector<8x8xf32>
    %c0_18 = arith.constant 0 : index
    %c8 = arith.constant 8 : index
    %57 = vector.load %arg18[%c0_18, %c8] : memref<16x32xf32, #tpu.memory_space<vmem>>, vector<8x8xf32>
    tpu.vector_store %arg18[%c0_18, %c8], %56 {strides = array<i32>} : memref<16x32xf32, #tpu.memory_space<vmem>>, vector<8x8xf32>,
    %58 = vector.extract_strided_slice %15 {offsets = [0, 16], sizes = [8, 8], strides = [1, 1]} : vector<8x32xf32> to vector<8x8xf32>
    %59 = arith.truncf %58 : vector<8x8xf32> to vector<8x8xbf16>
    %60 = vector.extract_strided_slice %16 {offsets = [0, 16], sizes = [8, 8], strides = [1, 1]} : vector<8x32xf32> to vector<8x8xf32>
    %61 = arith.truncf %60 : vector<8x8xf32> to vector<8x8xbf16>
    %62 = vector.extract_strided_slice %17 {offsets = [0, 16], sizes = [8, 8], strides = [1, 1]} : vector<8x32xf32> to vector<8x8xf32>
    %63 = arith.truncf %62 : vector<8x8xf32> to vector<8x8xbf16>
    %cst_19 = arith.constant dense<0.000000e+00> : vector<8x8xf32>
    %64 = tpu.matmul %59, %61, %cst_19 {dimension_numbers = #tpu.dot_dimension_numbers<[1], [1], [0], [0], [0, 0, 1, 0], [], []>} : vector<8x8xbf16>, vector<8x8xbf16>, vector<8x8xf32> -> vector<8x8xf32>
    %cst_20 = arith.constant dense<0xFF800000> : vector<8xf32>
    %65 = vector.multi_reduction <maximumf>, %64, %cst_20 [1] : vector<8x8xf32> to vector<8xf32>
    %66 = vector.shape_cast %65 : vector<8xf32> to vector<8x1xf32>
    %67 = vector.broadcast %66 : vector<8x1xf32> to vector<8x8xf32>
    %68 = arith.subf %64, %67 : vector<8x8xf32>
    %69 = math.exp %68 : vector<8x8xf32>
    %cst_21 = arith.constant dense<0.000000e+00> : vector<8xf32>
    %70 = vector.multi_reduction <add>, %69, %cst_21 [1] : vector<8x8xf32> to vector<8xf32>
    %71 = vector.shape_cast %70 : vector<8xf32> to vector<8x1xf32>
    %72 = tpu.reciprocal %71 {approx = true} : vector<8x1xf32> -> vector<8x1xf32>
    %73 = vector.broadcast %72 : vector<8x1xf32> to vector<8x8xf32>
    %74 = arith.mulf %69, %73 : vector<8x8xf32>
    %75 = arith.truncf %74 : vector<8x8xf32> to vector<8x8xbf16>
    %cst_22 = arith.constant dense<0.000000e+00> : vector<8x8xf32>
    %76 = tpu.matmul %75, %63, %cst_22 {dimension_numbers = #tpu.dot_dimension_numbers<[1], [0], [0], [1], [0, 0, 1, 1], [], []>} : vector<8x8xbf16>, vector<8x8xbf16>, vector<8x8xf32> -> vector<8x8xf32>
    %c0_23 = arith.constant 0 : index
    %c16 = arith.constant 16 : index
    %77 = vector.load %arg18[%c0_23, %c16] : memref<16x32xf32, #tpu.memory_space<vmem>>, vector<8x8xf32>
    tpu.vector_store %arg18[%c0_23, %c16], %76 {strides = array<i32>} : memref<16x32xf32, #tpu.memory_space<vmem>>, vector<8x8xf32>,
    %78 = vector.extract_strided_slice %15 {offsets = [0, 24], sizes = [8, 8], strides = [1, 1]} : vector<8x32xf32> to vector<8x8xf32>
    %79 = arith.truncf %78 : vector<8x8xf32> to vector<8x8xbf16>
    %80 = vector.extract_strided_slice %16 {offsets = [0, 24], sizes = [8, 8], strides = [1, 1]} : vector<8x32xf32> to vector<8x8xf32>
    %81 = arith.truncf %80 : vector<8x8xf32> to vector<8x8xbf16>
    %82 = vector.extract_strided_slice %17 {offsets = [0, 24], sizes = [8, 8], strides = [1, 1]} : vector<8x32xf32> to vector<8x8xf32>
    %83 = arith.truncf %82 : vector<8x8xf32> to vector<8x8xbf16>
    %cst_24 = arith.constant dense<0.000000e+00> : vector<8x8xf32>
    %84 = tpu.matmul %79, %81, %cst_24 {dimension_numbers = #tpu.dot_dimension_numbers<[1], [1], [0], [0], [0, 0, 1, 0], [], []>} : vector<8x8xbf16>, vector<8x8xbf16>, vector<8x8xf32> -> vector<8x8xf32>
    %cst_25 = arith.constant dense<0xFF800000> : vector<8xf32>
    %85 = vector.multi_reduction <maximumf>, %84, %cst_25 [1] : vector<8x8xf32> to vector<8xf32>
    %86 = vector.shape_cast %85 : vector<8xf32> to vector<8x1xf32>
    %87 = vector.broadcast %86 : vector<8x1xf32> to vector<8x8xf32>
    %88 = arith.subf %84, %87 : vector<8x8xf32>
    %89 = math.exp %88 : vector<8x8xf32>
    %cst_26 = arith.constant dense<0.000000e+00> : vector<8xf32>
    %90 = vector.multi_reduction <add>, %89, %cst_26 [1] : vector<8x8xf32> to vector<8xf32>
    %91 = vector.shape_cast %90 : vector<8xf32> to vector<8x1xf32>
    %92 = tpu.reciprocal %91 {approx = true} : vector<8x1xf32> -> vector<8x1xf32>
    %93 = vector.broadcast %92 : vector<8x1xf32> to vector<8x8xf32>
    %94 = arith.mulf %89, %93 : vector<8x8xf32>
    %95 = arith.truncf %94 : vector<8x8xf32> to vector<8x8xbf16>
    %cst_27 = arith.constant dense<0.000000e+00> : vector<8x8xf32>
    %96 = tpu.matmul %95, %83, %cst_27 {dimension_numbers = #tpu.dot_dimension_numbers<[1], [0], [0], [1], [0, 0, 1, 1], [], []>} : vector<8x8xbf16>, vector<8x8xbf16>, vector<8x8xf32> -> vector<8x8xf32>
    %c0_28 = arith.constant 0 : index
    %c24 = arith.constant 24 : index
    %97 = vector.load %arg18[%c0_28, %c24] : memref<16x32xf32, #tpu.memory_space<vmem>>, vector<8x8xf32>
    tpu.vector_store %arg18[%c0_28, %c24], %96 {strides = array<i32>} : memref<16x32xf32, #tpu.memory_space<vmem>>, vector<8x8xf32>,
    %98 = vector.extract_strided_slice %12 {offsets = [8, 0], sizes = [8, 32], strides = [1, 1]} : vector<16x32xf32> to vector<8x32xf32>
    %99 = vector.extract_strided_slice %13 {offsets = [8, 0], sizes = [8, 32], strides = [1, 1]} : vector<16x32xf32> to vector<8x32xf32>
    %100 = vector.extract_strided_slice %14 {offsets = [8, 0], sizes = [8, 32], strides = [1, 1]} : vector<16x32xf32> to vector<8x32xf32>
    %101 = vector.extract_strided_slice %98 {offsets = [0, 0], sizes = [8, 8], strides = [1, 1]} : vector<8x32xf32> to vector<8x8xf32>
    %102 = arith.truncf %101 : vector<8x8xf32> to vector<8x8xbf16>
    %103 = vector.extract_strided_slice %99 {offsets = [0, 0], sizes = [8, 8], strides = [1, 1]} : vector<8x32xf32> to vector<8x8xf32>
    %104 = arith.truncf %103 : vector<8x8xf32> to vector<8x8xbf16>
    %105 = vector.extract_strided_slice %100 {offsets = [0, 0], sizes = [8, 8], strides = [1, 1]} : vector<8x32xf32> to vector<8x8xf32>
    %106 = arith.truncf %105 : vector<8x8xf32> to vector<8x8xbf16>
    %cst_29 = arith.constant dense<0.000000e+00> : vector<8x8xf32>
    %107 = tpu.matmul %102, %104, %cst_29 {dimension_numbers = #tpu.dot_dimension_numbers<[1], [1], [0], [0], [0, 0, 1, 0], [], []>} : vector<8x8xbf16>, vector<8x8xbf16>, vector<8x8xf32> -> vector<8x8xf32>
    %cst_30 = arith.constant dense<0xFF800000> : vector<8xf32>
    %108 = vector.multi_reduction <maximumf>, %107, %cst_30 [1] : vector<8x8xf32> to vector<8xf32>
    %109 = vector.shape_cast %108 : vector<8xf32> to vector<8x1xf32>
    %110 = vector.broadcast %109 : vector<8x1xf32> to vector<8x8xf32>
    %111 = arith.subf %107, %110 : vector<8x8xf32>
    %112 = math.exp %111 : vector<8x8xf32>
    %cst_31 = arith.constant dense<0.000000e+00> : vector<8xf32>
    %113 = vector.multi_reduction <add>, %112, %cst_31 [1] : vector<8x8xf32> to vector<8xf32>
    %114 = vector.shape_cast %113 : vector<8xf32> to vector<8x1xf32>
    %115 = tpu.reciprocal %114 {approx = true} : vector<8x1xf32> -> vector<8x1xf32>
    %116 = vector.broadcast %115 : vector<8x1xf32> to vector<8x8xf32>
    %117 = arith.mulf %112, %116 : vector<8x8xf32>
    %118 = arith.truncf %117 : vector<8x8xf32> to vector<8x8xbf16>
    %cst_32 = arith.constant dense<0.000000e+00> : vector<8x8xf32>
    %119 = tpu.matmul %118, %106, %cst_32 {dimension_numbers = #tpu.dot_dimension_numbers<[1], [0], [0], [1], [0, 0, 1, 1], [], []>} : vector<8x8xbf16>, vector<8x8xbf16>, vector<8x8xf32> -> vector<8x8xf32>
    %c8_33 = arith.constant 8 : index
    %c0_34 = arith.constant 0 : index
    %120 = vector.load %arg18[%c8_33, %c0_34] : memref<16x32xf32, #tpu.memory_space<vmem>>, vector<8x8xf32>
    tpu.vector_store %arg18[%c8_33, %c0_34], %119 {strides = array<i32>} : memref<16x32xf32, #tpu.memory_space<vmem>>, vector<8x8xf32>,
    %121 = vector.extract_strided_slice %98 {offsets = [0, 8], sizes = [8, 8], strides = [1, 1]} : vector<8x32xf32> to vector<8x8xf32>
    %122 = arith.truncf %121 : vector<8x8xf32> to vector<8x8xbf16>
    %123 = vector.extract_strided_slice %99 {offsets = [0, 8], sizes = [8, 8], strides = [1, 1]} : vector<8x32xf32> to vector<8x8xf32>
    %124 = arith.truncf %123 : vector<8x8xf32> to vector<8x8xbf16>
    %125 = vector.extract_strided_slice %100 {offsets = [0, 8], sizes = [8, 8], strides = [1, 1]} : vector<8x32xf32> to vector<8x8xf32>
    %126 = arith.truncf %125 : vector<8x8xf32> to vector<8x8xbf16>
    %cst_35 = arith.constant dense<0.000000e+00> : vector<8x8xf32>
    %127 = tpu.matmul %122, %124, %cst_35 {dimension_numbers = #tpu.dot_dimension_numbers<[1], [1], [0], [0], [0, 0, 1, 0], [], []>} : vector<8x8xbf16>, vector<8x8xbf16>, vector<8x8xf32> -> vector<8x8xf32>
    %cst_36 = arith.constant dense<0xFF800000> : vector<8xf32>
    %128 = vector.multi_reduction <maximumf>, %127, %cst_36 [1] : vector<8x8xf32> to vector<8xf32>
    %129 = vector.shape_cast %128 : vector<8xf32> to vector<8x1xf32>
    %130 = vector.broadcast %129 : vector<8x1xf32> to vector<8x8xf32>
    %131 = arith.subf %127, %130 : vector<8x8xf32>
    %132 = math.exp %131 : vector<8x8xf32>
    %cst_37 = arith.constant dense<0.000000e+00> : vector<8xf32>
    %133 = vector.multi_reduction <add>, %132, %cst_37 [1] : vector<8x8xf32> to vector<8xf32>
    %134 = vector.shape_cast %133 : vector<8xf32> to vector<8x1xf32>
    %135 = tpu.reciprocal %134 {approx = true} : vector<8x1xf32> -> vector<8x1xf32>
    %136 = vector.broadcast %135 : vector<8x1xf32> to vector<8x8xf32>
    %137 = arith.mulf %132, %136 : vector<8x8xf32>
    %138 = arith.truncf %137 : vector<8x8xf32> to vector<8x8xbf16>
    %cst_38 = arith.constant dense<0.000000e+00> : vector<8x8xf32>
    %139 = tpu.matmul %138, %126, %cst_38 {dimension_numbers = #tpu.dot_dimension_numbers<[1], [0], [0], [1], [0, 0, 1, 1], [], []>} : vector<8x8xbf16>, vector<8x8xbf16>, vector<8x8xf32> -> vector<8x8xf32>
    %c8_39 = arith.constant 8 : index
    %c8_40 = arith.constant 8 : index
    %140 = vector.load %arg18[%c8_39, %c8_40] : memref<16x32xf32, #tpu.memory_space<vmem>>, vector<8x8xf32>
    tpu.vector_store %arg18[%c8_39, %c8_40], %139 {strides = array<i32>} : memref<16x32xf32, #tpu.memory_space<vmem>>, vector<8x8xf32>,
    %141 = vector.extract_strided_slice %98 {offsets = [0, 16], sizes = [8, 8], strides = [1, 1]} : vector<8x32xf32> to vector<8x8xf32>
    %142 = arith.truncf %141 : vector<8x8xf32> to vector<8x8xbf16>
    %143 = vector.extract_strided_slice %99 {offsets = [0, 16], sizes = [8, 8], strides = [1, 1]} : vector<8x32xf32> to vector<8x8xf32>
    %144 = arith.truncf %143 : vector<8x8xf32> to vector<8x8xbf16>
    %145 = vector.extract_strided_slice %100 {offsets = [0, 16], sizes = [8, 8], strides = [1, 1]} : vector<8x32xf32> to vector<8x8xf32>
    %146 = arith.truncf %145 : vector<8x8xf32> to vector<8x8xbf16>
    %cst_41 = arith.constant dense<0.000000e+00> : vector<8x8xf32>
    %147 = tpu.matmul %142, %144, %cst_41 {dimension_numbers = #tpu.dot_dimension_numbers<[1], [1], [0], [0], [0, 0, 1, 0], [], []>} : vector<8x8xbf16>, vector<8x8xbf16>, vector<8x8xf32> -> vector<8x8xf32>
    %cst_42 = arith.constant dense<0xFF800000> : vector<8xf32>
    %148 = vector.multi_reduction <maximumf>, %147, %cst_42 [1] : vector<8x8xf32> to vector<8xf32>
    %149 = vector.shape_cast %148 : vector<8xf32> to vector<8x1xf32>
    %150 = vector.broadcast %149 : vector<8x1xf32> to vector<8x8xf32>
    %151 = arith.subf %147, %150 : vector<8x8xf32>
    %152 = math.exp %151 : vector<8x8xf32>
    %cst_43 = arith.constant dense<0.000000e+00> : vector<8xf32>
    %153 = vector.multi_reduction <add>, %152, %cst_43 [1] : vector<8x8xf32> to vector<8xf32>
    %154 = vector.shape_cast %153 : vector<8xf32> to vector<8x1xf32>
    %155 = tpu.reciprocal %154 {approx = true} : vector<8x1xf32> -> vector<8x1xf32>
    %156 = vector.broadcast %155 : vector<8x1xf32> to vector<8x8xf32>
    %157 = arith.mulf %152, %156 : vector<8x8xf32>
    %158 = arith.truncf %157 : vector<8x8xf32> to vector<8x8xbf16>
    %cst_44 = arith.constant dense<0.000000e+00> : vector<8x8xf32>
    %159 = tpu.matmul %158, %146, %cst_44 {dimension_numbers = #tpu.dot_dimension_numbers<[1], [0], [0], [1], [0, 0, 1, 1], [], []>} : vector<8x8xbf16>, vector<8x8xbf16>, vector<8x8xf32> -> vector<8x8xf32>
    %c8_45 = arith.constant 8 : index
    %c16_46 = arith.constant 16 : index
    %160 = vector.load %arg18[%c8_45, %c16_46] : memref<16x32xf32, #tpu.memory_space<vmem>>, vector<8x8xf32>
    tpu.vector_store %arg18[%c8_45, %c16_46], %159 {strides = array<i32>} : memref<16x32xf32, #tpu.memory_space<vmem>>, vector<8x8xf32>,
    %161 = vector.extract_strided_slice %98 {offsets = [0, 24], sizes = [8, 8], strides = [1, 1]} : vector<8x32xf32> to vector<8x8xf32>
    %162 = arith.truncf %161 : vector<8x8xf32> to vector<8x8xbf16>
    %163 = vector.extract_strided_slice %99 {offsets = [0, 24], sizes = [8, 8], strides = [1, 1]} : vector<8x32xf32> to vector<8x8xf32>
    %164 = arith.truncf %163 : vector<8x8xf32> to vector<8x8xbf16>
    %165 = vector.extract_strided_slice %100 {offsets = [0, 24], sizes = [8, 8], strides = [1, 1]} : vector<8x32xf32> to vector<8x8xf32>
    %166 = arith.truncf %165 : vector<8x8xf32> to vector<8x8xbf16>
    %cst_47 = arith.constant dense<0.000000e+00> : vector<8x8xf32>
    %167 = tpu.matmul %162, %164, %cst_47 {dimension_numbers = #tpu.dot_dimension_numbers<[1], [1], [0], [0], [0, 0, 1, 0], [], []>} : vector<8x8xbf16>, vector<8x8xbf16>, vector<8x8xf32> -> vector<8x8xf32>
    %cst_48 = arith.constant dense<0xFF800000> : vector<8xf32>
    %168 = vector.multi_reduction <maximumf>, %167, %cst_48 [1] : vector<8x8xf32> to vector<8xf32>
    %169 = vector.shape_cast %168 : vector<8xf32> to vector<8x1xf32>
    %170 = vector.broadcast %169 : vector<8x1xf32> to vector<8x8xf32>
    %171 = arith.subf %167, %170 : vector<8x8xf32>
    %172 = math.exp %171 : vector<8x8xf32>
    %cst_49 = arith.constant dense<0.000000e+00> : vector<8xf32>
    %173 = vector.multi_reduction <add>, %172, %cst_49 [1] : vector<8x8xf32> to vector<8xf32>
    %174 = vector.shape_cast %173 : vector<8xf32> to vector<8x1xf32>
    %175 = tpu.reciprocal %174 {approx = true} : vector<8x1xf32> -> vector<8x1xf32>
    %176 = vector.broadcast %175 : vector<8x1xf32> to vector<8x8xf32>
    %177 = arith.mulf %172, %176 : vector<8x8xf32>
    %178 = arith.truncf %177 : vector<8x8xf32> to vector<8x8xbf16>
    %cst_50 = arith.constant dense<0.000000e+00> : vector<8x8xf32>
    %179 = tpu.matmul %178, %166, %cst_50 {dimension_numbers = #tpu.dot_dimension_numbers<[1], [0], [0], [1], [0, 0, 1, 1], [], []>} : vector<8x8xbf16>, vector<8x8xbf16>, vector<8x8xf32> -> vector<8x8xf32>
    %c8_51 = arith.constant 8 : index
    %c24_52 = arith.constant 24 : index
    %180 = vector.load %arg18[%c8_51, %c24_52] : memref<16x32xf32, #tpu.memory_space<vmem>>, vector<8x8xf32>
    tpu.vector_store %arg18[%c8_51, %c24_52], %179 {strides = array<i32>} : memref<16x32xf32, #tpu.memory_space<vmem>>, vector<8x8xf32>,
    %c0_53 = arith.constant 0 : index
    %c0_54 = arith.constant 0 : index
    %181 = vector.load %arg18[%c0_53, %c0_54] : memref<16x32xf32, #tpu.memory_space<vmem>>, vector<16x32xf32>
    %182 = arith.truncf %181 : vector<16x32xf32> to vector<16x32xbf16>
    %c0_55 = arith.constant 0 : index
    %c0_56 = arith.constant 0 : index
    %c0_57 = arith.constant 0 : index
    %183 = vector.load %arg4[%c0_55, %c0_56, %c0_57] : memref<1x32x32xbf16, #tpu.memory_space<vmem>>, vector<1x32x32xbf16>
    %184 = vector.shape_cast %183 : vector<1x32x32xbf16> to vector<32x32xbf16>
    %cst_58 = arith.constant dense<0.000000e+00> : vector<16x32xf32>
    %185 = tpu.matmul %182, %184, %cst_58 {dimension_numbers = #tpu.dot_dimension_numbers<[1], [0], [0], [1], [0, 0, 1, 1], [], []>} : vector<16x32xbf16>, vector<32x32xbf16>, vector<16x32xf32> -> vector<16x32xf32>
    %c0_59 = arith.constant 0 : index
    %c0_60 = arith.constant 0 : index
    %c0_61 = arith.constant 0 : index
    %186 = vector.load %arg5[%c0_59, %c0_60, %c0_61] : memref<1x1x32xf32, #tpu.memory_space<vmem>>, vector<1x1x32xf32>
    %187 = vector.shape_cast %186 : vector<1x1x32xf32> to vector<1x32xf32>
    %188 = vector.broadcast %187 : vector<1x32xf32> to vector<16x32xf32>
    %189 = arith.addf %185, %188 : vector<16x32xf32>
    %190 = arith.addf %3, %189 : vector<16x32xf32>
    %c0_62 = arith.constant 0 : index
    %c0_63 = arith.constant 0 : index
    %c0_64 = arith.constant 0 : index
    %191 = vector.load %arg6[%c0_62, %c0_63, %c0_64] : memref<1x1x32xf32, #tpu.memory_space<vmem>>, vector<1x1x32xf32>
    %192 = vector.shape_cast %191 : vector<1x1x32xf32> to vector<1x32xf32>
    %c0_65 = arith.constant 0 : index
    %c0_66 = arith.constant 0 : index
    %c0_67 = arith.constant 0 : index
    %193 = vector.load %arg7[%c0_65, %c0_66, %c0_67] : memref<1x1x32xf32, #tpu.memory_space<vmem>>, vector<1x1x32xf32>
    %194 = vector.shape_cast %193 : vector<1x1x32xf32> to vector<1x32xf32>
    %cst_68 = arith.constant dense<0.000000e+00> : vector<16xf32>
    %195 = vector.multi_reduction <add>, %190, %cst_68 [1] : vector<16x32xf32> to vector<16xf32>
    %196 = vector.shape_cast %195 : vector<16xf32> to vector<16x1xf32>
    %cst_69 = arith.constant 3.200000e+01 : f32
    %197 = vector.broadcast %cst_69 : f32 to vector<16x1xf32>
    %198 = arith.divf %196, %197 : vector<16x1xf32>
    %199 = vector.broadcast %198 : vector<16x1xf32> to vector<16x32xf32>
    %200 = arith.subf %190, %199 : vector<16x32xf32>
    %201 = arith.mulf %200, %200 : vector<16x32xf32>
    %cst_70 = arith.constant dense<0.000000e+00> : vector<16xf32>
    %202 = vector.multi_reduction <add>, %201, %cst_70 [1] : vector<16x32xf32> to vector<16xf32>
    %203 = vector.shape_cast %202 : vector<16xf32> to vector<16x1xf32>
    %cst_71 = arith.constant 3.200000e+01 : f32
    %204 = vector.broadcast %cst_71 : f32 to vector<16x1xf32>
    %205 = arith.divf %203, %204 : vector<16x1xf32>
    %206 = vector.broadcast %198 : vector<16x1xf32> to vector<16x32xf32>
    %207 = arith.subf %190, %206 : vector<16x32xf32>
    %cst_72 = arith.constant 9.99999974E-6 : f32
    %208 = vector.broadcast %cst_72 : f32 to vector<16x1xf32>
    %209 = arith.addf %205, %208 : vector<16x1xf32>
    %210 = math.rsqrt %209 : vector<16x1xf32>
    %211 = vector.broadcast %210 : vector<16x1xf32> to vector<16x32xf32>
    %212 = arith.mulf %207, %211 : vector<16x32xf32>
    %213 = vector.broadcast %192 : vector<1x32xf32> to vector<16x32xf32>
    %214 = arith.mulf %212, %213 : vector<16x32xf32>
    %215 = vector.broadcast %194 : vector<1x32xf32> to vector<16x32xf32>
    %216 = arith.addf %214, %215 : vector<16x32xf32>
    %217 = arith.truncf %216 : vector<16x32xf32> to vector<16x32xbf16>
    %c0_73 = arith.constant 0 : index
    %c0_74 = arith.constant 0 : index
    %c0_75 = arith.constant 0 : index
    %218 = vector.load %arg8[%c0_73, %c0_74, %c0_75] : memref<1x32x2048xbf16, #tpu.memory_space<vmem>>, vector<1x32x2048xbf16>
    %219 = vector.shape_cast %218 : vector<1x32x2048xbf16> to vector<32x2048xbf16>
    %cst_76 = arith.constant dense<0.000000e+00> : vector<16x2048xf32>
    %220 = tpu.matmul %217, %219, %cst_76 {dimension_numbers = #tpu.dot_dimension_numbers<[1], [0], [0], [1], [0, 0, 1, 1], [], []>} : vector<16x32xbf16>, vector<32x2048xbf16>, vector<16x2048xf32> -> vector<16x2048xf32>
    %c0_77 = arith.constant 0 : index
    %c0_78 = arith.constant 0 : index
    %c0_79 = arith.constant 0 : index
    %221 = vector.load %arg9[%c0_77, %c0_78, %c0_79] : memref<1x1x2048xf32, #tpu.memory_space<vmem>>, vector<1x1x2048xf32>
    %222 = vector.shape_cast %221 : vector<1x1x2048xf32> to vector<1x2048xf32>
    %223 = vector.broadcast %222 : vector<1x2048xf32> to vector<16x2048xf32>
    %224 = arith.addf %220, %223 : vector<16x2048xf32>
    %cst_80 = arith.constant 0.000000e+00 : f32
    %225 = vector.broadcast %cst_80 : f32 to vector<16x2048xf32>
    %226 = arith.maximumf %224, %225 : vector<16x2048xf32>
    %227 = arith.truncf %226 : vector<16x2048xf32> to vector<16x2048xbf16>
    %c0_81 = arith.constant 0 : index
    %c0_82 = arith.constant 0 : index
    %c0_83 = arith.constant 0 : index
    %228 = vector.load %arg10[%c0_81, %c0_82, %c0_83] : memref<1x2048x32xbf16, #tpu.memory_space<vmem>>, vector<1x2048x32xbf16>
    %229 = vector.shape_cast %228 : vector<1x2048x32xbf16> to vector<2048x32xbf16>
    %cst_84 = arith.constant dense<0.000000e+00> : vector<16x32xf32>
    %230 = tpu.matmul %227, %229, %cst_84 {dimension_numbers = #tpu.dot_dimension_numbers<[1], [0], [0], [1], [0, 0, 1, 1], [], []>} : vector<16x2048xbf16>, vector<2048x32xbf16>, vector<16x32xf32> -> vector<16x32xf32>
    %c0_85 = arith.constant 0 : index
    %c0_86 = arith.constant 0 : index
    %c0_87 = arith.constant 0 : index
    %231 = vector.load %arg11[%c0_85, %c0_86, %c0_87] : memref<1x1x32xf32, #tpu.memory_space<vmem>>, vector<1x1x32xf32>
    %232 = vector.shape_cast %231 : vector<1x1x32xf32> to vector<1x32xf32>
    %233 = vector.broadcast %232 : vector<1x32xf32> to vector<16x32xf32>
    %234 = arith.addf %230, %233 : vector<16x32xf32>
    %235 = arith.addf %216, %234 : vector<16x32xf32>
    %c0_88 = arith.constant 0 : index
    %c0_89 = arith.constant 0 : index
    %c0_90 = arith.constant 0 : index
    %236 = vector.load %arg12[%c0_88, %c0_89, %c0_90] : memref<1x1x32xf32, #tpu.memory_space<vmem>>, vector<1x1x32xf32>
    %237 = vector.shape_cast %236 : vector<1x1x32xf32> to vector<1x32xf32>
    %c0_91 = arith.constant 0 : index
    %c0_92 = arith.constant 0 : index
    %c0_93 = arith.constant 0 : index
    %238 = vector.load %arg13[%c0_91, %c0_92, %c0_93] : memref<1x1x32xf32, #tpu.memory_space<vmem>>, vector<1x1x32xf32>
    %239 = vector.shape_cast %238 : vector<1x1x32xf32> to vector<1x32xf32>
    %cst_94 = arith.constant dense<0.000000e+00> : vector<16xf32>
    %240 = vector.multi_reduction <add>, %235, %cst_94 [1] : vector<16x32xf32> to vector<16xf32>
    %241 = vector.shape_cast %240 : vector<16xf32> to vector<16x1xf32>
    %cst_95 = arith.constant 3.200000e+01 : f32
    %242 = vector.broadcast %cst_95 : f32 to vector<16x1xf32>
    %243 = arith.divf %241, %242 : vector<16x1xf32>
    %244 = vector.broadcast %243 : vector<16x1xf32> to vector<16x32xf32>
    %245 = arith.subf %235, %244 : vector<16x32xf32>
    %246 = arith.mulf %245, %245 : vector<16x32xf32>
    %cst_96 = arith.constant dense<0.000000e+00> : vector<16xf32>
    %247 = vector.multi_reduction <add>, %246, %cst_96 [1] : vector<16x32xf32> to vector<16xf32>
    %248 = vector.shape_cast %247 : vector<16xf32> to vector<16x1xf32>
    %cst_97 = arith.constant 3.200000e+01 : f32
    %249 = vector.broadcast %cst_97 : f32 to vector<16x1xf32>
    %250 = arith.divf %248, %249 : vector<16x1xf32>
    %251 = vector.broadcast %243 : vector<16x1xf32> to vector<16x32xf32>
    %252 = arith.subf %235, %251 : vector<16x32xf32>
    %cst_98 = arith.constant 9.99999974E-6 : f32
    %253 = vector.broadcast %cst_98 : f32 to vector<16x1xf32>
    %254 = arith.addf %250, %253 : vector<16x1xf32>
    %255 = math.rsqrt %254 : vector<16x1xf32>
    %256 = vector.broadcast %255 : vector<16x1xf32> to vector<16x32xf32>
    %257 = arith.mulf %252, %256 : vector<16x32xf32>
    %258 = vector.broadcast %237 : vector<1x32xf32> to vector<16x32xf32>
    %259 = arith.mulf %257, %258 : vector<16x32xf32>
    %260 = vector.broadcast %239 : vector<1x32xf32> to vector<16x32xf32>
    %261 = arith.addf %259, %260 : vector<16x32xf32>
    %c0_99 = arith.constant 0 : index
    %c0_100 = arith.constant 0 : index
    %262 = vector.load %arg17[%c0_99, %c0_100] : memref<16x32xf32, #tpu.memory_space<vmem>>, vector<16x32xf32>
    tpu.vector_store %arg17[%c0_99, %c0_100], %261 {strides = array<i32>} : memref<16x32xf32, #tpu.memory_space<vmem>>, vector<16x32xf32>,
    %c1_i32 = arith.constant 1 : i32
    %263 = arith.cmpi eq, %arg0, %c1_i32 : i32
    %264 = arith.extui %263 : i1 to i32
    %c0_i32_101 = arith.constant 0 : i32
    %265 = arith.cmpi ne, %264, %c0_i32_101 : i32
    scf.if %265 {
      %266 = vector.extract_strided_slice %261 {offsets = [8, 0], sizes = [8, 32], strides = [1, 1]} : vector<16x32xf32> to vector<8x32xf32>
      %267 = arith.truncf %266 : vector<8x32xf32> to vector<8x32xbf16>
      %c0_102 = arith.constant 0 : index
      %c0_103 = arith.constant 0 : index
      %268 = vector.load %arg14[%c0_102, %c0_103] : memref<32x8xbf16, #tpu.memory_space<vmem>>, vector<32x8xbf16>
      %cst_104 = arith.constant dense<0.000000e+00> : vector<8x8xf32>
      %269 = tpu.matmul %267, %268, %cst_104 {dimension_numbers = #tpu.dot_dimension_numbers<[1], [0], [0], [1], [0, 0, 1, 1], [], []>} : vector<8x32xbf16>, vector<32x8xbf16>, vector<8x8xf32> -> vector<8x8xf32>
      %c0_105 = arith.constant 0 : index
      %c0_106 = arith.constant 0 : index
      %270 = vector.load %arg15[%c0_105, %c0_106] : memref<1x8xf32, #tpu.memory_space<vmem>>, vector<1x8xf32>
      %271 = vector.broadcast %270 : vector<1x8xf32> to vector<8x8xf32>
      %272 = arith.addf %269, %271 : vector<8x8xf32>
      %c0_107 = arith.constant 0 : index
      %c0_108 = arith.constant 0 : index
      %273 = vector.load %arg16[%c0_107, %c0_108] : memref<8x8xf32, #tpu.memory_space<vmem>>, vector<8x8xf32>
      tpu.vector_store %arg16[%c0_107, %c0_108], %272 {strides = array<i32>} : memref<8x8xf32, #tpu.memory_space<vmem>>, vector<8x8xf32>,
    } else {
    }
    return
  }
  func.func @transform_0(%arg0: i32) -> (i32, i32, i32) {
    %c0_i32 = arith.constant 0 : i32
    %c0_i32_0 = arith.constant 0 : i32
    %c0_i32_1 = arith.constant 0 : i32
    %c0_i32_2 = arith.constant 0 : i32
    return %c0_i32, %c0_i32_0, %c0_i32_1 : i32, i32, i32
  }
  func.func @transform_1(%arg0: i32) -> (i32, i32, i32) {
    %c0_i32 = arith.constant 0 : i32
    %c0_i32_0 = arith.constant 0 : i32
    %c0_i32_1 = arith.constant 0 : i32
    return %arg0, %c0_i32, %c0_i32_0 : i32, i32, i32
  }
  func.func @transform_2(%arg0: i32) -> (i32, i32, i32) {
    %c0_i32 = arith.constant 0 : i32
    %c0_i32_0 = arith.constant 0 : i32
    %c0_i32_1 = arith.constant 0 : i32
    return %arg0, %c0_i32, %c0_i32_0 : i32, i32, i32
  }
  func.func @transform_3(%arg0: i32) -> (i32, i32, i32) {
    %c0_i32 = arith.constant 0 : i32
    %c0_i32_0 = arith.constant 0 : i32
    %c0_i32_1 = arith.constant 0 : i32
    return %arg0, %c0_i32, %c0_i32_0 : i32, i32, i32
  }
  func.func @transform_4(%arg0: i32) -> (i32, i32, i32) {
    %c0_i32 = arith.constant 0 : i32
    %c0_i32_0 = arith.constant 0 : i32
    %c0_i32_1 = arith.constant 0 : i32
    return %arg0, %c0_i32, %c0_i32_0 : i32, i32, i32
  }
  func.func @transform_5(%arg0: i32) -> (i32, i32, i32) {
    %c0_i32 = arith.constant 0 : i32
    %c0_i32_0 = arith.constant 0 : i32
    %c0_i32_1 = arith.constant 0 : i32
    return %arg0, %c0_i32, %c0_i32_0 : i32, i32, i32
  }
  func.func @transform_6(%arg0: i32) -> (i32, i32, i32) {
    %c0_i32 = arith.constant 0 : i32
    %c0_i32_0 = arith.constant 0 : i32
    %c0_i32_1 = arith.constant 0 : i32
    return %arg0, %c0_i32, %c0_i32_0 : i32, i32, i32
  }
  func.func @transform_7(%arg0: i32) -> (i32, i32, i32) {
    %c0_i32 = arith.constant 0 : i32
    %c0_i32_0 = arith.constant 0 : i32
    %c0_i32_1 = arith.constant 0 : i32
    return %arg0, %c0_i32, %c0_i32_0 : i32, i32, i32
  }
  func.func @transform_8(%arg0: i32) -> (i32, i32, i32) {
    %c0_i32 = arith.constant 0 : i32
    %c0_i32_0 = arith.constant 0 : i32
    %c0_i32_1 = arith.constant 0 : i32
    return %arg0, %c0_i32, %c0_i32_0 : i32, i32, i32
  }
  func.func @transform_9(%arg0: i32) -> (i32, i32, i32) {
    %c0_i32 = arith.constant 0 : i32
    %c0_i32_0 = arith.constant 0 : i32
    %c0_i32_1 = arith.constant 0 : i32
    return %arg0, %c0_i32, %c0_i32_0 : i32, i32, i32
  }
  func.func @transform_10(%arg0: i32) -> (i32, i32, i32) {
    %c0_i32 = arith.constant 0 : i32
    %c0_i32_0 = arith.constant 0 : i32
    %c0_i32_1 = arith.constant 0 : i32
    return %arg0, %c0_i32, %c0_i32_0 : i32, i32, i32
  }
  func.func @transform_11(%arg0: i32) -> (i32, i32, i32) {
    %c0_i32 = arith.constant 0 : i32
    %c0_i32_0 = arith.constant 0 : i32
    %c0_i32_1 = arith.constant 0 : i32
    return %arg0, %c0_i32, %c0_i32_0 : i32, i32, i32
  }
  func.func @transform_12(%arg0: i32) -> (i32, i32, i32) {
    %c0_i32 = arith.constant 0 : i32
    %c0_i32_0 = arith.constant 0 : i32
    %c0_i32_1 = arith.constant 0 : i32
    return %arg0, %c0_i32, %c0_i32_0 : i32, i32, i32
  }
  func.func @transform_13(%arg0: i32) -> (i32, i32) {
    %c0_i32 = arith.constant 0 : i32
    %c0_i32_0 = arith.constant 0 : i32
    %c0_i32_1 = arith.constant 0 : i32
    return %c0_i32, %c0_i32_0 : i32, i32
  }
  func.func @transform_14(%arg0: i32) -> (i32, i32) {
    %c0_i32 = arith.constant 0 : i32
    %c0_i32_0 = arith.constant 0 : i32
    %c0_i32_1 = arith.constant 0 : i32
    return %c0_i32, %c0_i32_0 : i32, i32
  }
  func.func @transform_15(%arg0: i32) -> (i32, i32) {
    %c0_i32 = arith.constant 0 : i32
    %c0_i32_0 = arith.constant 0 : i32
    %c0_i32_1 = arith.constant 0 : i32
    return %c0_i32, %c0_i32_0 : i32, i32
  }
}

</mosaic_0001>

<llo_original>
// kernel: transformer_forward.1
$region0: #{transformer_forward.1}
  #allocation0 [shape = 'u32[]', space=smem, size = 0x4, offset = 0x4, fixed_abs, tag = 'smem constant byte address 0x4 - core index']
  #allocation1 [shape = 'u32[144,128]{1,0:T(1,128)}', space=vmem, size = 0x12000, scoped, tag = 'internal scratch']
  #allocation2 [shape = 'f32[16,32]{1,0:T(8,128)}', space=vmem, size = 0x2000, scoped, tag = 'scratch operand']
  #allocation3 [shape = 'f32[16,32]{1,0:T(8,128)}', space=vmem, size = 0x2000, scoped, tag = 'scratch operand']
  %s0 = inlined_call_operand.vmem [shape: f32[8,2,32], index: 0, kind: input, shape index: {}]
  %s1 = inlined_call_operand.vmem [shape: bf16[2,32,96], index: 1, kind: input, shape index: {}]
  %s2 = inlined_call_operand.vmem [shape: f32[2,1,96], index: 2, kind: input, shape index: {}]
  %s3 = inlined_call_operand.vmem [shape: bf16[2,32,32], index: 3, kind: input, shape index: {}]
  %s4 = inlined_call_operand.vmem [shape: f32[2,1,32], index: 4, kind: input, shape index: {}]
  %s5 = inlined_call_operand.vmem [shape: f32[2,1,32], index: 5, kind: input, shape index: {}]
  %s6 = inlined_call_operand.vmem [shape: f32[2,1,32], index: 6, kind: input, shape index: {}]
  %s7 = inlined_call_operand.vmem [shape: bf16[2,32,2048], index: 7, kind: input, shape index: {}]
  %s8 = inlined_call_operand.vmem [shape: f32[2,1,2048], index: 8, kind: input, shape index: {}]
  %s9 = inlined_call_operand.vmem [shape: bf16[2,2048,32], index: 9, kind: input, shape index: {}]
  %s10 = inlined_call_operand.vmem [shape: f32[2,1,32], index: 10, kind: input, shape index: {}]
  %s11 = inlined_call_operand.vmem [shape: f32[2,1,32], index: 11, kind: input, shape index: {}]
  %s12 = inlined_call_operand.vmem [shape: f32[2,1,32], index: 12, kind: input, shape index: {}]
  %s13 = inlined_call_operand.vmem [shape: bf16[32,8], index: 13, kind: input, shape index: {}]
  %s14 = inlined_call_operand.vmem [shape: f32[1,8], index: 14, kind: input, shape index: {}]
  %s15 = inlined_call_operand.hbm [shape: f32[8,8], index: 15, kind: output, shape index: {}]
  %s16 = sld [smem:[#allocation0]]
  $region101: #{transformer_forward.1} parent=0
    _
  %s18 = ssub.s32 1, %s16
  %s19 = scalar_select 0, %s18, %s16
  $region1: #{transformer_forward.1} parent=0
    #allocation4 [shape = 'u8[4096]{0}', space=vmem, size = 0x1000, scoped, tag = 'output window, operand 0, single buffered']
    #allocation5 [shape = 's32[2]{0}', space=sflag, size = 0x8, scoped, tag = 'scoped memory for transformer_forward.1']
    %20 = vsyncpa [#allocation5], 0
    loop: start=0, step=1, limit=4
    $region2: #{transformer_forward.1} parent=1 // loop_pre_header
      _
    $region3: #{transformer_forward.1} parent=1 // loop_header
      %s22 = sphi 0, %s26
      %p23 = scmp.ge.s32.totalorder %s22, 4
      %s30 = sphi 0, %s30
      %s32 = sphi 0, %s30
      %s33 = sphi 0, %s32
      %s47 = sphi 0, %s33
      %s53 = sphi 0, %s55
      %s56 = sphi 0, %s53
      %s57 = sphi 0, %s56
      %s73 = sphi 0, %s57
      %s79 = sphi 0, %s81
      %s82 = sphi 0, %s79
      %s83 = sphi 0, %s82
      %s99 = sphi 0, %s83
      %s105 = sphi 0, %s107
      %s108 = sphi 0, %s105
      %s109 = sphi 0, %s108
      %s125 = sphi 0, %s109
      %s131 = sphi 0, %s133
      %s134 = sphi 0, %s131
      %s135 = sphi 0, %s134
      %s151 = sphi 0, %s135
      %s157 = sphi 0, %s159
      %s160 = sphi 0, %s157
      %s161 = sphi 0, %s160
      %s177 = sphi 0, %s161
      %s183 = sphi 0, %s185
      %s186 = sphi 0, %s183
      %s187 = sphi 0, %s186
      %s203 = sphi 0, %s187
      %s209 = sphi 0, %s211
      %s212 = sphi 0, %s209
      %s213 = sphi 0, %s212
      %s229 = sphi 0, %s213
      %s235 = sphi 0, %s237
      %s238 = sphi 0, %s235
      %s239 = sphi 0, %s238
      %s255 = sphi 0, %s239
      %s261 = sphi 0, %s263
      %s264 = sphi 0, %s261
      %s265 = sphi 0, %s264
      %s281 = sphi 0, %s265
      %s287 = sphi 0, %s289
      %s290 = sphi 0, %s287
      %s291 = sphi 0, %s290
      %s307 = sphi 0, %s291
      %s313 = sphi 0, %s315
      %s316 = sphi 0, %s313
      %s317 = sphi 0, %s316
      %s333 = sphi 0, %s317
      %s339 = sphi 0, %s341
      %s342 = sphi 0, %s339
      %s343 = sphi 0, %s342
      %s359 = sphi 0, %s343
      %s363 = sphi 0, %s363
      %s365 = sphi 0, %s363
      %s366 = sphi 0, %s365
      %s380 = sphi 0, %s366
      %s384 = sphi 0, %s384
      %s386 = sphi 0, %s384
      %s387 = sphi 0, %s386
      %s401 = sphi 0, %s387
      %s405 = sphi 0, %s405
      %s407 = sphi 0, %s405
      %s408 = sphi 0, %s407
      %s422 = sphi 0, %s408
    $region4: #{transformer_forward.1} parent=1 // loop_header_branch
      %25 = sbr.rel (%p23) target = $region8
    $region5: #{transformer_forward.1} parent=1 // loop_body
      %s27 = ssub.s32 %s22, 1
      %s28 = ssub.s32 %s22, 2
      %s29 = sadd.s32 %s22, 1
      %s31 = sadd.s32 %s30, 1
      %p34 = scmp.eq.s32.totalorder %s22, 1
      %p35 = scmp.ne.s32.totalorder %s30, %s32
      %p36 = scmp.eq.s32.totalorder %s22, 0
      %p37 = por %p35, %p36
      %p38 = scmp.ne.s32.totalorder %s30, %s32
      %p39 = scmp.eq.s32.totalorder %s27, 1
      %p40 = por %p38, %p39
      %p41 = scmp.ne.s32.totalorder %s32, %s33
      %p42 = scmp.eq.s32.totalorder %s27, 0
      %p43 = por %p41, %p42
      %p44 = scmp.ne.s32.totalorder %s32, %s33
      %p45 = scmp.eq.s32.totalorder %s28, 1
      %p46 = por %p44, %p45
      %p48 = scmp.ne.s32.totalorder %s33, %s47
      %p49 = scmp.eq.s32.totalorder %s28, 0
      %p50 = por %p48, %p49
      %s51 = ssub.s32 %s22, %s29
      %p52 = scmp.eq.s32.totalorder %s51, 0
      %s54 = sadd.s32 %s53, 1
      %s55 = scalar_select %p52, %s53, %s54
      %p58 = pneg %p52
      %p59 = scmp.eq.s32.totalorder %s22, 1
      %p60 = por %p58, %p59
      %p61 = scmp.ne.s32.totalorder %s53, %s56
      %p62 = scmp.eq.s32.totalorder %s22, 0
      %p63 = por %p61, %p62
      %p64 = scmp.ne.s32.totalorder %s53, %s56
      %p65 = scmp.eq.s32.totalorder %s27, 1
      %p66 = por %p64, %p65
      %p67 = scmp.ne.s32.totalorder %s56, %s57
      %p68 = scmp.eq.s32.totalorder %s27, 0
      %p69 = por %p67, %p68
      %p70 = scmp.ne.s32.totalorder %s56, %s57
      %p71 = scmp.eq.s32.totalorder %s28, 1
      %p72 = por %p70, %p71
      %p74 = scmp.ne.s32.totalorder %s57, %s73
      %p75 = scmp.eq.s32.totalorder %s28, 0
      %p76 = por %p74, %p75
      %s77 = ssub.s32 %s22, %s29
      %p78 = scmp.eq.s32.totalorder %s77, 0
      %s80 = sadd.s32 %s79, 1
      %s81 = scalar_select %p78, %s79, %s80
      %p84 = pneg %p78
      %p85 = scmp.eq.s32.totalorder %s22, 1
      %p86 = por %p84, %p85
      %p87 = scmp.ne.s32.totalorder %s79, %s82
      %p88 = scmp.eq.s32.totalorder %s22, 0
      %p89 = por %p87, %p88
      %p90 = scmp.ne.s32.totalorder %s79, %s82
      %p91 = scmp.eq.s32.totalorder %s27, 1
      %p92 = por %p90, %p91
      %p93 = scmp.ne.s32.totalorder %s82, %s83
      %p94 = scmp.eq.s32.totalorder %s27, 0
      %p95 = por %p93, %p94
      %p96 = scmp.ne.s32.totalorder %s82, %s83
      %p97 = scmp.eq.s32.totalorder %s28, 1
      %p98 = por %p96, %p97
      %p100 = scmp.ne.s32.totalorder %s83, %s99
      %p101 = scmp.eq.s32.totalorder %s28, 0
      %p102 = por %p100, %p101
      %s103 = ssub.s32 %s22, %s29
      %p104 = scmp.eq.s32.totalorder %s103, 0
      %s106 = sadd.s32 %s105, 1
      %s107 = scalar_select %p104, %s105, %s106
      %p110 = pneg %p104
      %p111 = scmp.eq.s32.totalorder %s22, 1
      %p112 = por %p110, %p111
      %p113 = scmp.ne.s32.totalorder %s105, %s108
      %p114 = scmp.eq.s32.totalorder %s22, 0
      %p115 = por %p113, %p114
      %p116 = scmp.ne.s32.totalorder %s105, %s108
      %p117 = scmp.eq.s32.totalorder %s27, 1
      %p118 = por %p116, %p117
      %p119 = scmp.ne.s32.totalorder %s108, %s109
      %p120 = scmp.eq.s32.totalorder %s27, 0
      %p121 = por %p119, %p120
      %p122 = scmp.ne.s32.totalorder %s108, %s109
      %p123 = scmp.eq.s32.totalorder %s28, 1
      %p124 = por %p122, %p123
      %p126 = scmp.ne.s32.totalorder %s109, %s125
      %p127 = scmp.eq.s32.totalorder %s28, 0
      %p128 = por %p126, %p127
      %s129 = ssub.s32 %s22, %s29
      %p130 = scmp.eq.s32.totalorder %s129, 0
      %s132 = sadd.s32 %s131, 1
      %s133 = scalar_select %p130, %s131, %s132
      %p136 = pneg %p130
      %p137 = scmp.eq.s32.totalorder %s22, 1
      %p138 = por %p136, %p137
      %p139 = scmp.ne.s32.totalorder %s131, %s134
      %p140 = scmp.eq.s32.totalorder %s22, 0
      %p141 = por %p139, %p140
      %p142 = scmp.ne.s32.totalorder %s131, %s134
      %p143 = scmp.eq.s32.totalorder %s27, 1
      %p144 = por %p142, %p143
      %p145 = scmp.ne.s32.totalorder %s134, %s135
      %p146 = scmp.eq.s32.totalorder %s27, 0
      %p147 = por %p145, %p146
      %p148 = scmp.ne.s32.totalorder %s134, %s135
      %p149 = scmp.eq.s32.totalorder %s28, 1
      %p150 = por %p148, %p149
      %p152 = scmp.ne.s32.totalorder %s135, %s151
      %p153 = scmp.eq.s32.totalorder %s28, 0
      %p154 = por %p152, %p153
      %s155 = ssub.s32 %s22, %s29
      %p156 = scmp.eq.s32.totalorder %s155, 0
      %s158 = sadd.s32 %s157, 1
      %s159 = scalar_select %p156, %s157, %s158
      %p162 = pneg %p156
      %p163 = scmp.eq.s32.totalorder %s22, 1
      %p164 = por %p162, %p163
      %p165 = scmp.ne.s32.totalorder %s157, %s160
      %p166 = scmp.eq.s32.totalorder %s22, 0
      %p167 = por %p165, %p166
      %p168 = scmp.ne.s32.totalorder %s157, %s160
      %p169 = scmp.eq.s32.totalorder %s27, 1
      %p170 = por %p168, %p169
      %p171 = scmp.ne.s32.totalorder %s160, %s161
      %p172 = scmp.eq.s32.totalorder %s27, 0
      %p173 = por %p171, %p172
      %p174 = scmp.ne.s32.totalorder %s160, %s161
      %p175 = scmp.eq.s32.totalorder %s28, 1
      %p176 = por %p174, %p175
      %p178 = scmp.ne.s32.totalorder %s161, %s177
      %p179 = scmp.eq.s32.totalorder %s28, 0
      %p180 = por %p178, %p179
      %s181 = ssub.s32 %s22, %s29
      %p182 = scmp.eq.s32.totalorder %s181, 0
      %s184 = sadd.s32 %s183, 1
      %s185 = scalar_select %p182, %s183, %s184
      %p188 = pneg %p182
      %p189 = scmp.eq.s32.totalorder %s22, 1
      %p190 = por %p188, %p189
      %p191 = scmp.ne.s32.totalorder %s183, %s186
      %p192 = scmp.eq.s32.totalorder %s22, 0
      %p193 = por %p191, %p192
      %p194 = scmp.ne.s32.totalorder %s183, %s186
      %p195 = scmp.eq.s32.totalorder %s27, 1
      %p196 = por %p194, %p195
      %p197 = scmp.ne.s32.totalorder %s186, %s187
      %p198 = scmp.eq.s32.totalorder %s27, 0
      %p199 = por %p197, %p198
      %p200 = scmp.ne.s32.totalorder %s186, %s187
      %p201 = scmp.eq.s32.totalorder %s28, 1
      %p202 = por %p200, %p201
      %p204 = scmp.ne.s32.totalorder %s187, %s203
      %p205 = scmp.eq.s32.totalorder %s28, 0
      %p206 = por %p204, %p205
      %s207 = ssub.s32 %s22, %s29
      %p208 = scmp.eq.s32.totalorder %s207, 0
      %s210 = sadd.s32 %s209, 1
      %s211 = scalar_select %p208, %s209, %s210
      %p214 = pneg %p208
      %p215 = scmp.eq.s32.totalorder %s22, 1
      %p216 = por %p214, %p215
      %p217 = scmp.ne.s32.totalorder %s209, %s212
      %p218 = scmp.eq.s32.totalorder %s22, 0
      %p219 = por %p217, %p218
      %p220 = scmp.ne.s32.totalorder %s209, %s212
      %p221 = scmp.eq.s32.totalorder %s27, 1
      %p222 = por %p220, %p221
      %p223 = scmp.ne.s32.totalorder %s212, %s213
      %p224 = scmp.eq.s32.totalorder %s27, 0
      %p225 = por %p223, %p224
      %p226 = scmp.ne.s32.totalorder %s212, %s213
      %p227 = scmp.eq.s32.totalorder %s28, 1
      %p228 = por %p226, %p227
      %p230 = scmp.ne.s32.totalorder %s213, %s229
      %p231 = scmp.eq.s32.totalorder %s28, 0
      %p232 = por %p230, %p231
      %s233 = ssub.s32 %s22, %s29
      %p234 = scmp.eq.s32.totalorder %s233, 0
      %s236 = sadd.s32 %s235, 1
      %s237 = scalar_select %p234, %s235, %s236
      %p240 = pneg %p234
      %p241 = scmp.eq.s32.totalorder %s22, 1
      %p242 = por %p240, %p241
      %p243 = scmp.ne.s32.totalorder %s235, %s238
      %p244 = scmp.eq.s32.totalorder %s22, 0
      %p245 = por %p243, %p244
      %p246 = scmp.ne.s32.totalorder %s235, %s238
      %p247 = scmp.eq.s32.totalorder %s27, 1
      %p248 = por %p246, %p247
      %p249 = scmp.ne.s32.totalorder %s238, %s239
      %p250 = scmp.eq.s32.totalorder %s27, 0
      %p251 = por %p249, %p250
      %p252 = scmp.ne.s32.totalorder %s238, %s239
      %p253 = scmp.eq.s32.totalorder %s28, 1
      %p254 = por %p252, %p253
      %p256 = scmp.ne.s32.totalorder %s239, %s255
      %p257 = scmp.eq.s32.totalorder %s28, 0
      %p258 = por %p256, %p257
      %s259 = ssub.s32 %s22, %s29
      %p260 = scmp.eq.s32.totalorder %s259, 0
      %s262 = sadd.s32 %s261, 1
      %s263 = scalar_select %p260, %s261, %s262
      %p266 = pneg %p260
      %p267 = scmp.eq.s32.totalorder %s22, 1
      %p268 = por %p266, %p267
      %p269 = scmp.ne.s32.totalorder %s261, %s264
      %p270 = scmp.eq.s32.totalorder %s22, 0
      %p271 = por %p269, %p270
      %p272 = scmp.ne.s32.totalorder %s261, %s264
      %p273 = scmp.eq.s32.totalorder %s27, 1
      %p274 = por %p272, %p273
      %p275 = scmp.ne.s32.totalorder %s264, %s265
      %p276 = scmp.eq.s32.totalorder %s27, 0
      %p277 = por %p275, %p276
      %p278 = scmp.ne.s32.totalorder %s264, %s265
      %p279 = scmp.eq.s32.totalorder %s28, 1
      %p280 = por %p278, %p279
      %p282 = scmp.ne.s32.totalorder %s265, %s281
      %p283 = scmp.eq.s32.totalorder %s28, 0
      %p284 = por %p282, %p283
      %s285 = ssub.s32 %s22, %s29
      %p286 = scmp.eq.s32.totalorder %s285, 0
      %s288 = sadd.s32 %s287, 1
      %s289 = scalar_select %p286, %s287, %s288
      %p292 = pneg %p286
      %p293 = scmp.eq.s32.totalorder %s22, 1
      %p294 = por %p292, %p293
      %p295 = scmp.ne.s32.totalorder %s287, %s290
      %p296 = scmp.eq.s32.totalorder %s22, 0
      %p297 = por %p295, %p296
      %p298 = scmp.ne.s32.totalorder %s287, %s290
      %p299 = scmp.eq.s32.totalorder %s27, 1
      %p300 = por %p298, %p299
      %p301 = scmp.ne.s32.totalorder %s290, %s291
      %p302 = scmp.eq.s32.totalorder %s27, 0
      %p303 = por %p301, %p302
      %p304 = scmp.ne.s32.totalorder %s290, %s291
      %p305 = scmp.eq.s32.totalorder %s28, 1
      %p306 = por %p304, %p305
      %p308 = scmp.ne.s32.totalorder %s291, %s307
      %p309 = scmp.eq.s32.totalorder %s28, 0
      %p310 = por %p308, %p309
      %s311 = ssub.s32 %s22, %s29
      %p312 = scmp.eq.s32.totalorder %s311, 0
      %s314 = sadd.s32 %s313, 1
      %s315 = scalar_select %p312, %s313, %s314
      %p318 = pneg %p312
      %p319 = scmp.eq.s32.totalorder %s22, 1
      %p320 = por %p318, %p319
      %p321 = scmp.ne.s32.totalorder %s313, %s316
      %p322 = scmp.eq.s32.totalorder %s22, 0
      %p323 = por %p321, %p322
      %p324 = scmp.ne.s32.totalorder %s313, %s316
      %p325 = scmp.eq.s32.totalorder %s27, 1
      %p326 = por %p324, %p325
      %p327 = scmp.ne.s32.totalorder %s316, %s317
      %p328 = scmp.eq.s32.totalorder %s27, 0
      %p329 = por %p327, %p328
      %p330 = scmp.ne.s32.totalorder %s316, %s317
      %p331 = scmp.eq.s32.totalorder %s28, 1
      %p332 = por %p330, %p331
      %p334 = scmp.ne.s32.totalorder %s317, %s333
      %p335 = scmp.eq.s32.totalorder %s28, 0
      %p336 = por %p334, %p335
      %s337 = ssub.s32 %s22, %s29
      %p338 = scmp.eq.s32.totalorder %s337, 0
      %s340 = sadd.s32 %s339, 1
      %s341 = scalar_select %p338, %s339, %s340
      %p344 = pneg %p338
      %p345 = scmp.eq.s32.totalorder %s22, 1
      %p346 = por %p344, %p345
      %p347 = scmp.ne.s32.totalorder %s339, %s342
      %p348 = scmp.eq.s32.totalorder %s22, 0
      %p349 = por %p347, %p348
      %p350 = scmp.ne.s32.totalorder %s339, %s342
      %p351 = scmp.eq.s32.totalorder %s27, 1
      %p352 = por %p350, %p351
      %p353 = scmp.ne.s32.totalorder %s342, %s343
      %p354 = scmp.eq.s32.totalorder %s27, 0
      %p355 = por %p353, %p354
      %p356 = scmp.ne.s32.totalorder %s342, %s343
      %p357 = scmp.eq.s32.totalorder %s28, 1
      %p358 = por %p356, %p357
      %p360 = scmp.ne.s32.totalorder %s343, %s359
      %p361 = scmp.eq.s32.totalorder %s28, 0
      %p362 = por %p360, %p361
      %s364 = sadd.s32 %s363, 1
      %p367 = scmp.eq.s32.totalorder %s22, 1
      %p368 = scmp.ne.s32.totalorder %s363, %s365
      %p369 = scmp.eq.s32.totalorder %s22, 0
      %p370 = por %p368, %p369
      %p371 = scmp.ne.s32.totalorder %s363, %s365
      %p372 = scmp.eq.s32.totalorder %s27, 1
      %p373 = por %p371, %p372
      %p374 = scmp.ne.s32.totalorder %s365, %s366
      %p375 = scmp.eq.s32.totalorder %s27, 0
      %p376 = por %p374, %p375
      %p377 = scmp.ne.s32.totalorder %s365, %s366
      %p378 = scmp.eq.s32.totalorder %s28, 1
      %p379 = por %p377, %p378
      %p381 = scmp.ne.s32.totalorder %s366, %s380
      %p382 = scmp.eq.s32.totalorder %s28, 0
      %p383 = por %p381, %p382
      %s385 = sadd.s32 %s384, 1
      %p388 = scmp.eq.s32.totalorder %s22, 1
      %p389 = scmp.ne.s32.totalorder %s384, %s386
      %p390 = scmp.eq.s32.totalorder %s22, 0
      %p391 = por %p389, %p390
      %p392 = scmp.ne.s32.totalorder %s384, %s386
      %p393 = scmp.eq.s32.totalorder %s27, 1
      %p394 = por %p392, %p393
      %p395 = scmp.ne.s32.totalorder %s386, %s387
      %p396 = scmp.eq.s32.totalorder %s27, 0
      %p397 = por %p395, %p396
      %p398 = scmp.ne.s32.totalorder %s386, %s387
      %p399 = scmp.eq.s32.totalorder %s28, 1
      %p400 = por %p398, %p399
      %p402 = scmp.ne.s32.totalorder %s387, %s401
      %p403 = scmp.eq.s32.totalorder %s28, 0
      %p404 = por %p402, %p403
      %s406 = sadd.s32 %s405, 1
      %p409 = scmp.eq.s32.totalorder %s22, 1
      %p410 = scmp.ne.s32.totalorder %s405, %s407
      %p411 = scmp.eq.s32.totalorder %s22, 0
      %p412 = por %p410, %p411
      %p413 = scmp.ne.s32.totalorder %s405, %s407
      %p414 = scmp.eq.s32.totalorder %s27, 1
      %p415 = por %p413, %p414
      %p416 = scmp.ne.s32.totalorder %s407, %s408
      %p417 = scmp.eq.s32.totalorder %s27, 0
      %p418 = por %p416, %p417
      %p419 = scmp.ne.s32.totalorder %s407, %s408
      %p420 = scmp.eq.s32.totalorder %s28, 1
      %p421 = por %p419, %p420
      %p423 = scmp.ne.s32.totalorder %s408, %s422
      %p424 = scmp.eq.s32.totalorder %s28, 0
      %p425 = por %p423, %p424
      %p426 = scmp.le.s32.totalorder 1, %s22
      %p427 = scmp.lt.s32.totalorder %s22, 3
      %p428 = pnand %p426, %p427
      %p429 = pneg %p428
      // Predicated region
      $region9: #{transformer_forward.1} parent=5 // pred_check
        _
      $region10: #{transformer_forward.1} parent=5 // pred_check_branch
        %431 = sbr.rel (%p428) target = $region12
      $region11: #{transformer_forward.1} parent=5 // pred_region
        %s432 = ssub.s32 %s22, 1
        // Predicated region
        $region13: #{transformer_forward.1} parent=11 // pred_check
          %p433 = pneg %p43
        $region14: #{transformer_forward.1} parent=11 // pred_check_branch
          %435 = sbr.rel (%p433) target = $region16
        $region15: #{transformer_forward.1} parent=11 // pred_region
          _
        $region16: #{transformer_forward.1} parent=11 // pred_fallthru
          _
        // Predicated region
        $region17: #{transformer_forward.1} parent=11 // pred_check
          %p436 = pneg %p376
        $region18: #{transformer_forward.1} parent=11 // pred_check_branch
          %438 = sbr.rel (%p436) target = $region20
        $region19: #{transformer_forward.1} parent=11 // pred_region
          _
        $region20: #{transformer_forward.1} parent=11 // pred_fallthru
          _
        // Predicated region
        $region21: #{transformer_forward.1} parent=11 // pred_check
          %p439 = pneg %p397
        $region22: #{transformer_forward.1} parent=11 // pred_check_branch
          %441 = sbr.rel (%p439) target = $region24
        $region23: #{transformer_forward.1} parent=11 // pred_region
          _
        $region24: #{transformer_forward.1} parent=11 // pred_fallthru
          _
      $region12: #{transformer_forward.1} parent=5 // pred_fallthru
        _
      %p442 = scmp.lt.s32.totalorder %s22, 2
      // Predicated region
      $region25: #{transformer_forward.1} parent=5 // pred_check
        %p443 = pneg %p442
      $region26: #{transformer_forward.1} parent=5 // pred_check_branch
        %445 = sbr.rel (%p443) target = $region28
      $region27: #{transformer_forward.1} parent=5 // pred_region
        // Predicated region
        $region29: #{transformer_forward.1} parent=27 // pred_check
          %p446 = pneg %p63
        $region30: #{transformer_forward.1} parent=27 // pred_check_branch
          %448 = sbr.rel (%p446) target = $region32
        $region31: #{transformer_forward.1} parent=27 // pred_region
          %p449 = scmp.lt.s32.totalorder %s22, 1
          %s450 = scalar_select %p449, %s22, 1
          %s451 = smul.addr %s450, 4
          %s452 = smul.addr %s451, 4
          %s453 = scalar_lea.vmem %s1, %s452
        $region32: #{transformer_forward.1} parent=27 // pred_fallthru
          _
        // Predicated region
        $region33: #{transformer_forward.1} parent=27 // pred_check
          %p454 = pneg %p89
        $region34: #{transformer_forward.1} parent=27 // pred_check_branch
          %456 = sbr.rel (%p454) target = $region36
        $region35: #{transformer_forward.1} parent=27 // pred_region
          %p457 = scmp.lt.s32.totalorder %s22, 1
          %s458 = scalar_select %p457, %s22, 1
          %s459 = scalar_lea.vmem %s2, %s458
        $region36: #{transformer_forward.1} parent=27 // pred_fallthru
          _
        // Predicated region
        $region37: #{transformer_forward.1} parent=27 // pred_check
          %p460 = pneg %p115
        $region38: #{transformer_forward.1} parent=27 // pred_check_branch
          %462 = sbr.rel (%p460) target = $region40
        $region39: #{transformer_forward.1} parent=27 // pred_region
          %p463 = scmp.lt.s32.totalorder %s22, 1
          %s464 = scalar_select %p463, %s22, 1
          %s465 = smul.addr %s464, 4
          %s466 = smul.addr %s465, 4
          %s467 = scalar_lea.vmem %s3, %s466
        $region40: #{transformer_forward.1} parent=27 // pred_fallthru
          _
        // Predicated region
        $region41: #{transformer_forward.1} parent=27 // pred_check
          %p468 = pneg %p141
        $region42: #{transformer_forward.1} parent=27 // pred_check_branch
          %470 = sbr.rel (%p468) target = $region44
        $region43: #{transformer_forward.1} parent=27 // pred_region
          %p471 = scmp.lt.s32.totalorder %s22, 1
          %s472 = scalar_select %p471, %s22, 1
          %s473 = scalar_lea.vmem %s4, %s472
        $region44: #{transformer_forward.1} parent=27 // pred_fallthru
          _
        // Predicated region
        $region45: #{transformer_forward.1} parent=27 // pred_check
          %p474 = pneg %p167
        $region46: #{transformer_forward.1} parent=27 // pred_check_branch
          %476 = sbr.rel (%p474) target = $region48
        $region47: #{transformer_forward.1} parent=27 // pred_region
          %p477 = scmp.lt.s32.totalorder %s22, 1
          %s478 = scalar_select %p477, %s22, 1
          %s479 = scalar_lea.vmem %s5, %s478
        $region48: #{transformer_forward.1} parent=27 // pred_fallthru
          _
        // Predicated region
        $region49: #{transformer_forward.1} parent=27 // pred_check
          %p480 = pneg %p193
        $region50: #{transformer_forward.1} parent=27 // pred_check_branch
          %482 = sbr.rel (%p480) target = $region52
        $region51: #{transformer_forward.1} parent=27 // pred_region
          %p483 = scmp.lt.s32.totalorder %s22, 1
          %s484 = scalar_select %p483, %s22, 1
          %s485 = scalar_lea.vmem %s6, %s484
        $region52: #{transformer_forward.1} parent=27 // pred_fallthru
          _
        // Predicated region
        $region53: #{transformer_forward.1} parent=27 // pred_check
          %p486 = pneg %p219
        $region54: #{transformer_forward.1} parent=27 // pred_check_branch
          %488 = sbr.rel (%p486) target = $region56
        $region55: #{transformer_forward.1} parent=27 // pred_region
          %p489 = scmp.lt.s32.totalorder %s22, 1
          %s490 = scalar_select %p489, %s22, 1
          %s491 = smul.addr %s490, 64
          %s492 = smul.addr %s491, 4
          %s493 = scalar_lea.vmem %s7, %s492
        $region56: #{transformer_forward.1} parent=27 // pred_fallthru
          _
        // Predicated region
        $region57: #{transformer_forward.1} parent=27 // pred_check
          %p494 = pneg %p245
        $region58: #{transformer_forward.1} parent=27 // pred_check_branch
          %496 = sbr.rel (%p494) target = $region60
        $region59: #{transformer_forward.1} parent=27 // pred_region
          %p497 = scmp.lt.s32.totalorder %s22, 1
          %s498 = scalar_select %p497, %s22, 1
          %s499 = smul.addr %s498, 16
          %s500 = scalar_lea.vmem %s8, %s499
        $region60: #{transformer_forward.1} parent=27 // pred_fallthru
          _
        // Predicated region
        $region61: #{transformer_forward.1} parent=27 // pred_check
          %p501 = pneg %p271
        $region62: #{transformer_forward.1} parent=27 // pred_check_branch
          %503 = sbr.rel (%p501) target = $region64
        $region63: #{transformer_forward.1} parent=27 // pred_region
          %p504 = scmp.lt.s32.totalorder %s22, 1
          %s505 = scalar_select %p504, %s22, 1
          %s506 = smul.addr %s505, 256
          %s507 = smul.addr %s506, 4
          %s508 = scalar_lea.vmem %s9, %s507
        $region64: #{transformer_forward.1} parent=27 // pred_fallthru
          _
        // Predicated region
        $region65: #{transformer_forward.1} parent=27 // pred_check
          %p509 = pneg %p297
        $region66: #{transformer_forward.1} parent=27 // pred_check_branch
          %511 = sbr.rel (%p509) target = $region68
        $region67: #{transformer_forward.1} parent=27 // pred_region
          %p512 = scmp.lt.s32.totalorder %s22, 1
          %s513 = scalar_select %p512, %s22, 1
          %s514 = scalar_lea.vmem %s10, %s513
        $region68: #{transformer_forward.1} parent=27 // pred_fallthru
          _
        // Predicated region
        $region69: #{transformer_forward.1} parent=27 // pred_check
          %p515 = pneg %p323
        $region70: #{transformer_forward.1} parent=27 // pred_check_branch
          %517 = sbr.rel (%p515) target = $region72
        $region71: #{transformer_forward.1} parent=27 // pred_region
          %p518 = scmp.lt.s32.totalorder %s22, 1
          %s519 = scalar_select %p518, %s22, 1
          %s520 = scalar_lea.vmem %s11, %s519
        $region72: #{transformer_forward.1} parent=27 // pred_fallthru
          _
        // Predicated region
        $region73: #{transformer_forward.1} parent=27 // pred_check
          %p521 = pneg %p349
        $region74: #{transformer_forward.1} parent=27 // pred_check_branch
          %523 = sbr.rel (%p521) target = $region76
        $region75: #{transformer_forward.1} parent=27 // pred_region
          %p524 = scmp.lt.s32.totalorder %s22, 1
          %s525 = scalar_select %p524, %s22, 1
          %s526 = scalar_lea.vmem %s12, %s525
        $region76: #{transformer_forward.1} parent=27 // pred_fallthru
          _
      $region28: #{transformer_forward.1} parent=5 // pred_fallthru
        _
      %p527 = scmp.le.s32.totalorder 1, %s22
      %p528 = scmp.lt.s32.totalorder %s22, 3
      %p529 = pnand %p527, %p528
      %p530 = pneg %p529
      // Predicated region
      $region77: #{transformer_forward.1} parent=5 // pred_check
        _
      $region78: #{transformer_forward.1} parent=5 // pred_check_branch
        %532 = sbr.rel (%p529) target = $region80
      $region79: #{transformer_forward.1} parent=5 // pred_region
        %s533 = ssub.s32 %s22, 1
        %p534 = pneg %p43
        %p535 = pneg %p40
        %p536 = scmp.lt.s32.totalorder %s27, 1
        %s537 = scalar_select %p536, %s27, 1
        %s538 = smul.addr %s537, 4
        %s539 = smul.addr %s538, 4
        %s540 = scalar_lea.vmem %s1, %s539
        %p541 = pneg %p69
        %p542 = pneg %p66
        %p543 = scmp.lt.s32.totalorder %s27, 1
        %s544 = scalar_select %p543, %s27, 1
        %s545 = scalar_lea.vmem %s2, %s544
        %p546 = pneg %p95
        %p547 = pneg %p92
        %p548 = scmp.lt.s32.totalorder %s27, 1
        %s549 = scalar_select %p548, %s27, 1
        %s550 = smul.addr %s549, 4
        %s551 = smul.addr %s550, 4
        %s552 = scalar_lea.vmem %s3, %s551
        %p553 = pneg %p121
        %p554 = pneg %p118
        %p555 = scmp.lt.s32.totalorder %s27, 1
        %s556 = scalar_select %p555, %s27, 1
        %s557 = scalar_lea.vmem %s4, %s556
        %p558 = pneg %p147
        %p559 = pneg %p144
        %p560 = scmp.lt.s32.totalorder %s27, 1
        %s561 = scalar_select %p560, %s27, 1
        %s562 = scalar_lea.vmem %s5, %s561
        %p563 = pneg %p173
        %p564 = pneg %p170
        %p565 = scmp.lt.s32.totalorder %s27, 1
        %s566 = scalar_select %p565, %s27, 1
        %s567 = scalar_lea.vmem %s6, %s566
        %p568 = pneg %p199
        %p569 = pneg %p196
        %p570 = scmp.lt.s32.totalorder %s27, 1
        %s571 = scalar_select %p570, %s27, 1
        %s572 = smul.addr %s571, 64
        %s573 = smul.addr %s572, 4
        %s574 = scalar_lea.vmem %s7, %s573
        %p575 = pneg %p225
        %p576 = pneg %p222
        %p577 = scmp.lt.s32.totalorder %s27, 1
        %s578 = scalar_select %p577, %s27, 1
        %s579 = smul.addr %s578, 16
        %s580 = scalar_lea.vmem %s8, %s579
        %p581 = pneg %p251
        %p582 = pneg %p248
        %p583 = scmp.lt.s32.totalorder %s27, 1
        %s584 = scalar_select %p583, %s27, 1
        %s585 = smul.addr %s584, 256
        %s586 = smul.addr %s585, 4
        %s587 = scalar_lea.vmem %s9, %s586
        %p588 = pneg %p277
        %p589 = pneg %p274
        %p590 = scmp.lt.s32.totalorder %s27, 1
        %s591 = scalar_select %p590, %s27, 1
        %s592 = scalar_lea.vmem %s10, %s591
        %p593 = pneg %p303
        %p594 = pneg %p300
        %p595 = scmp.lt.s32.totalorder %s27, 1
        %s596 = scalar_select %p595, %s27, 1
        %s597 = scalar_lea.vmem %s11, %s596
        %p598 = pneg %p329
        %p599 = pneg %p326
        %p600 = scmp.lt.s32.totalorder %s27, 1
        %s601 = scalar_select %p600, %s27, 1
        %s602 = scalar_lea.vmem %s12, %s601
        %p603 = pneg %p355
        %p604 = pneg %p352
        %p605 = pneg %p376
        %p606 = pneg %p373
        %p607 = pneg %p397
        %p608 = pneg %p394
        %p609 = pneg %p418
        %p610 = pneg %p415
        %p611 = scmp.lt.s32.totalorder %s27, 1
        %s612 = scalar_select %p611, %s27, 1
        %s613 = smul.addr %s612, 4
        %s614 = smul.addr %s613, 4
        %s615 = scalar_lea.vmem %s1, %s614
        %p616 = scmp.lt.s32.totalorder %s27, 1
        %s617 = scalar_select %p616, %s27, 1
        %s618 = scalar_lea.vmem %s2, %s617
        %p619 = scmp.lt.s32.totalorder %s27, 1
        %s620 = scalar_select %p619, %s27, 1
        %s621 = smul.addr %s620, 4
        %s622 = smul.addr %s621, 4
        %s623 = scalar_lea.vmem %s3, %s622
        %p624 = scmp.lt.s32.totalorder %s27, 1
        %s625 = scalar_select %p624, %s27, 1
        %s626 = scalar_lea.vmem %s4, %s625
        %p627 = scmp.lt.s32.totalorder %s27, 1
        %s628 = scalar_select %p627, %s27, 1
        %s629 = scalar_lea.vmem %s5, %s628
        %p630 = scmp.lt.s32.totalorder %s27, 1
        %s631 = scalar_select %p630, %s27, 1
        %s632 = scalar_lea.vmem %s6, %s631
        %p633 = scmp.lt.s32.totalorder %s27, 1
        %s634 = scalar_select %p633, %s27, 1
        %s635 = smul.addr %s634, 64
        %s636 = smul.addr %s635, 4
        %s637 = scalar_lea.vmem %s7, %s636
        %p638 = scmp.lt.s32.totalorder %s27, 1
        %s639 = scalar_select %p638, %s27, 1
        %s640 = smul.addr %s639, 16
        %s641 = scalar_lea.vmem %s8, %s640
        %p642 = scmp.lt.s32.totalorder %s27, 1
        %s643 = scalar_select %p642, %s27, 1
        %s644 = smul.addr %s643, 256
        %s645 = smul.addr %s644, 4
        %s646 = scalar_lea.vmem %s9, %s645
        %p647 = scmp.lt.s32.totalorder %s27, 1
        %s648 = scalar_select %p647, %s27, 1
        %s649 = scalar_lea.vmem %s10, %s648
        %p650 = scmp.lt.s32.totalorder %s27, 1
        %s651 = scalar_select %p650, %s27, 1
        %s652 = scalar_lea.vmem %s11, %s651
        %p653 = scmp.lt.s32.totalorder %s27, 1
        %s654 = scalar_select %p653, %s27, 1
        %s655 = scalar_lea.vmem %s12, %s654
        %p657 = scmp.eq.s32.totalorder %s27, 0
        // Predicated region
        $region81: #{transformer_forward.1} parent=79 // pred_check
          %p658 = pneg %p657
        $region82: #{transformer_forward.1} parent=79 // pred_check_branch
          %660 = sbr.rel (%p658) target = $region84
        $region83: #{transformer_forward.1} parent=79 // pred_region
          %v661 = vld [vmem:[%s0] sm:$0x3]
          %v662 = vld [vmem:[%s0 + $0x2] sm:$0x3]
          %v663 = vld [vmem:[%s0 + $0x4] sm:$0x3]
          %v664 = vld [vmem:[%s0 + $0x6] sm:$0x3]
          %v665 = vld [vmem:[%s0 + $0x8] sm:$0x3]
          %v666 = vld [vmem:[%s0 + $0xa] sm:$0x3]
          %v667 = vld [vmem:[%s0 + $0xc] sm:$0x3]
          %v668 = vld [vmem:[%s0 + $0xe] sm:$0x3]
          %v677 = vrot.slane %v662, 7
          %vm678 = vcmask 1041409
          %v679 = vsel %vm678, %v677, %v661
          %v680 = vrot.slane %v663, 6
          %vm681 = vcmask 1042434
          %v682 = vsel %vm681, %v680, %v679
          %v683 = vrot.slane %v664, 5
          %vm684 = vcmask 1043459
          %v685 = vsel %vm684, %v683, %v682
          %v686 = vrot.slane %v665, 4
          %vm687 = vcmask 1044484
          %v688 = vsel %vm687, %v686, %v685
          %v689 = vrot.slane %v666, 3
          %vm690 = vcmask 1045509
          %v691 = vsel %vm690, %v689, %v688
          %v692 = vrot.slane %v667, 2
          %vm693 = vcmask 1046534
          %v694 = vsel %vm693, %v692, %v691
          %v695 = vrot.slane %v668, 1
          %vm696 = vcmask 1047559
          %v697 = vsel %vm696, %v695, %v694
          %vm699 = vcmask 261120
          %700 = vst.msk [vmem:[#allocation2] sm:$0xff] %vm699, %v697
          %v701 = vsel %vm681, %v677, %v661
          %v702 = vsel %vm684, %v680, %v701
          %v703 = vsel %vm687, %v683, %v702
          %v704 = vsel %vm690, %v686, %v703
          %v705 = vsel %vm693, %v689, %v704
          %v706 = vsel %vm696, %v692, %v705
          %vm709 = vcmask 261121
          %710 = vst.msk [vmem:[#allocation2 + $0x7] sm:$0xfe] %vm709, %v706
          %vm711 = vcmask 253952
          %712 = vst.msk [vmem:[#allocation2 + $0xf] sm:$0x1] %vm711, %v695
        $region84: #{transformer_forward.1} parent=79 // pred_fallthru
          _
        %v713 = vld [vmem:[#allocation2] sm:$0xff]
        %v714 = vld [vmem:[#allocation2 + $0x8] sm:$0xff]
        %v715 = vpack.c.bf16 %v714, %v713
        %v716 = vld [vmem:[%s615] sm:$0xf]
        %v717 = vld [vmem:[%s615 + $0x4] sm:$0xf]
        %v718 = vld [vmem:[%s615 + $0x8] sm:$0xf]
        %v719 = vld [vmem:[%s615 + $0xc] sm:$0xf]
        %v720 = vld [vmem:[%s618] sm:$0x1]
        %v722 = vlaneseq
        %v723 = vshrl.u32 %v722, 7
        %v724 = vsub.s32 0, %v723
        %v725 = vrot.slane %v720, %v724
        %v731 = vunpack.c.l.b16 %v716
        %v732 = vunpack.c.l.b16 %v717
        %v733 = vunpack.c.l.b16 %v718
        %v734 = vunpack.c.l.b16 %v719
        %v735 = vpack.c.b16 %v732, %v731
        %v736 = vpack.c.b16 %v734, %v733
        %vm739 = vcmask 261120
        %v741 = vsel %vm739, %v715, 0
        %743 = vmatprep.subr.bf16.mxu0 0
        %744 = vmatpush1.bf16.msra.mxu0 %v735
        %745 = vmatprep.subr.bf16.mxu0 0
        %746 = vmatpush1.bf16.msra.mxu0 %v736
        %747 = vmatprep.subr.bf16.mxu0 0
        %748 = vmatpush1.bf16.msra.mxu0 0
        %749 = vmatprep.subr.bf16.mxu0 0
        %750 = vmatpush1.bf16.msra.mxu0 0
        %751 = vmatprep.subr.bf16.mxu0 0
        %752 = vmatpush1.bf16.msra.mxu0 0
        %753 = vmatprep.subr.bf16.mxu0 0
        %754 = vmatpush1.bf16.msra.mxu0 0
        %755 = vmatprep.subr.bf16.mxu0 0
        %756 = vmatpush1.bf16.msra.mxu0 0
        %757 = vmatprep.subr.bf16.mxu0 0
        %758 = vmatpush1.bf16.msra.mxu0 0
        %759 = vmatprep.subr.bf16.mxu0 0
        %760 = vmatpush1.bf16.msra.mxu0 0
        %761 = vmatprep.subr.bf16.mxu0 0
        %762 = vmatpush1.bf16.msra.mxu0 0
        %763 = vmatprep.subr.bf16.mxu0 0
        %764 = vmatpush1.bf16.msra.mxu0 0
        %765 = vmatprep.subr.bf16.mxu0 0
        %766 = vmatpush1.bf16.msra.mxu0 0
        %767 = vmatprep.subr.bf16.mxu0 0
        %768 = vmatpush1.bf16.msra.mxu0 0
        %769 = vmatprep.subr.bf16.mxu0 0
        %770 = vmatpush1.bf16.msra.mxu0 0
        %771 = vmatprep.subr.bf16.mxu0 0
        %772 = vmatpush1.bf16.msra.mxu0 0
        %773 = vmatprep.subr.bf16.mxu0 0
        %774 = vmatpush1.bf16.msra.mxu0 0
        %775 = vmatprep.mubr.bf16.mxu0 0
        %776 = vmatmul.mubr.bf16.gmra.mrb[0].mxu0 %v741
        %v777 = vpop.f32.mrb[0].mxu0
        %v778 = vadd.f32 %v725, %v777
        %v779 = vpop.f32.mrb[0].mxu0
        %v780 = vpop.f32.mrb[0].mxu0
        %v781 = vadd.f32 %v725, %v780
        %v782 = vpop.f32.mrb[0].mxu0
        %783 = vdwg.mxu0
        %v784 = vpack.c.bf16 %v778, %v778
        %786 = vrot.lane.b32.xlu0 %v784, 96
        %v787 = vpop.permute.xlu0 %786
        %vm788 = vcmask 64512
        %v790 = vsel %vm788, %v784, 0
        %v793 = vsel %vm788, %v787, 0
        %795 = vmatprep.subr.bf16.mxu0 0
        %796 = vmatpush1.bf16.xpose.msra.mxu0 %v793
        %797 = vmatprep.subr.bf16.mxu0 0
        %798 = vmatpush1.bf16.xpose.msra.mxu0 0
        %799 = vmatprep.subr.bf16.mxu0 0
        %800 = vmatpush1.bf16.xpose.msra.mxu0 0
        %801 = vmatprep.subr.bf16.mxu0 0
        %802 = vmatpush1.bf16.xpose.msra.mxu0 0
        %803 = vmatprep.subr.bf16.mxu0 0
        %804 = vmatpush1.bf16.xpose.msra.mxu0 0
        %805 = vmatprep.subr.bf16.mxu0 0
        %806 = vmatpush1.bf16.xpose.msra.mxu0 0
        %807 = vmatprep.subr.bf16.mxu0 0
        %808 = vmatpush1.bf16.xpose.msra.mxu0 0
        %809 = vmatprep.subr.bf16.mxu0 0
        %810 = vmatpush1.bf16.xpose.msra.mxu0 0
        %811 = vmatprep.subr.bf16.mxu0 0
        %812 = vmatpush1.bf16.xpose.msra.mxu0 0
        %813 = vmatprep.subr.bf16.mxu0 0
        %814 = vmatpush1.bf16.xpose.msra.mxu0 0
        %815 = vmatprep.subr.bf16.mxu0 0
        %816 = vmatpush1.bf16.xpose.msra.mxu0 0
        %817 = vmatprep.subr.bf16.mxu0 0
        %818 = vmatpush1.bf16.xpose.msra.mxu0 0
        %819 = vmatprep.subr.bf16.mxu0 0
        %820 = vmatpush1.bf16.xpose.msra.mxu0 0
        %821 = vmatprep.subr.bf16.mxu0 0
        %822 = vmatpush1.bf16.xpose.msra.mxu0 0
        %823 = vmatprep.subr.bf16.mxu0 0
        %824 = vmatpush1.bf16.xpose.msra.mxu0 0
        %825 = vmatprep.subr.bf16.mxu0 0
        %826 = vmatpush1.bf16.xpose.msra.mxu0 0
        %827 = vmatprep.mubr.bf16.mxu0 0
        %828 = vmatmul.mubr.bf16.gmra.mrb[0].mxu0 %v790
        %v829 = vpop.f32.mrb[0].mxu0
        %v830 = vadd.f32 0.0, %v829
        %v831 = vpop.f32.mrb[0].mxu0
        %v832 = vpop.f32.mrb[0].mxu0
        %v833 = vpop.f32.mrb[0].mxu0
        %834 = vdwg.mxu0
        %v835 = vsel %vm788, %v830, -inf
        %836 = vmax.xlane.f32.xlu0 %v835
        %v837 = vpop.xlane.xlu0 %836
        %v838 = vsub.f32 %v830, %v837
        %v839 = vmul.f32 %v838, 1.442695
        %v840 = vpow.pop %v839
        %v841 = vsel %vm788, %v840, 0.0
        %842 = vadd.xlane.f32.xlu0 %v841
        %v843 = vpop.xlane.xlu0 %842
        %v844 = vrcp.pop %v843
        %v845 = vmul.f32 %v840, %v844
        %v846 = vpack.c.bf16 %v845, %v845
        %847 = vrot.lane.b32.xlu0 %v784, 64
        %v848 = vpop.permute.xlu0 %847
        %v850 = vsel %vm788, %v846, 0
        %vm852 = vcmask 1043456
        %v854 = vsel %vm852, %v848, 0
        %856 = vmatprep.subr.bf16.mxu0 0
        %857 = vmatpush1.bf16.msra.mxu0 %v854
        %858 = vmatprep.subr.bf16.mxu0 0
        %859 = vmatpush1.bf16.msra.mxu0 0
        %860 = vmatprep.subr.bf16.mxu0 0
        %861 = vmatpush1.bf16.msra.mxu0 0
        %862 = vmatprep.subr.bf16.mxu0 0
        %863 = vmatpush1.bf16.msra.mxu0 0
        %864 = vmatprep.subr.bf16.mxu0 0
        %865 = vmatpush1.bf16.msra.mxu0 0
        %866 = vmatprep.subr.bf16.mxu0 0
        %867 = vmatpush1.bf16.msra.mxu0 0
        %868 = vmatprep.subr.bf16.mxu0 0
        %869 = vmatpush1.bf16.msra.mxu0 0
        %870 = vmatprep.subr.bf16.mxu0 0
        %871 = vmatpush1.bf16.msra.mxu0 0
        %872 = vmatprep.subr.bf16.mxu0 0
        %873 = vmatpush1.bf16.msra.mxu0 0
        %874 = vmatprep.subr.bf16.mxu0 0
        %875 = vmatpush1.bf16.msra.mxu0 0
        %876 = vmatprep.subr.bf16.mxu0 0
        %877 = vmatpush1.bf16.msra.mxu0 0
        %878 = vmatprep.subr.bf16.mxu0 0
        %879 = vmatpush1.bf16.msra.mxu0 0
        %880 = vmatprep.subr.bf16.mxu0 0
        %881 = vmatpush1.bf16.msra.mxu0 0
        %882 = vmatprep.subr.bf16.mxu0 0
        %883 = vmatpush1.bf16.msra.mxu0 0
        %884 = vmatprep.subr.bf16.mxu0 0
        %885 = vmatpush1.bf16.msra.mxu0 0
        %886 = vmatprep.subr.bf16.mxu0 0
        %887 = vmatpush1.bf16.msra.mxu0 0
        %888 = vmatprep.mubr.bf16.mxu0 0
        %889 = vmatmul.mubr.bf16.gmra.mrb[0].mxu0 %v850
        %v890 = vpop.f32.mrb[0].mxu0
        %v891 = vadd.f32 0.0, %v890
        %v892 = vpop.f32.mrb[0].mxu0
        %v893 = vpop.f32.mrb[0].mxu0
        %v894 = vpop.f32.mrb[0].mxu0
        %895 = vdwg.mxu0
        %896 = vst.msk [vmem:[#allocation3] sm:$0xff] %vm788, %v891
        %897 = vrot.lane.b32.xlu0 %v784, 120
        %v898 = vpop.permute.xlu0 %897
        %899 = vrot.lane.b32.xlu0 %v784, 88
        %v900 = vpop.permute.xlu0 %899
        %v902 = vsel %vm788, %v898, 0
        %v905 = vsel %vm788, %v900, 0
        %907 = vmatprep.subr.bf16.mxu0 0
        %908 = vmatpush1.bf16.xpose.msra.mxu0 %v905
        %909 = vmatprep.subr.bf16.mxu0 0
        %910 = vmatpush1.bf16.xpose.msra.mxu0 0
        %911 = vmatprep.subr.bf16.mxu0 0
        %912 = vmatpush1.bf16.xpose.msra.mxu0 0
        %913 = vmatprep.subr.bf16.mxu0 0
        %914 = vmatpush1.bf16.xpose.msra.mxu0 0
        %915 = vmatprep.subr.bf16.mxu0 0
        %916 = vmatpush1.bf16.xpose.msra.mxu0 0
        %917 = vmatprep.subr.bf16.mxu0 0
        %918 = vmatpush1.bf16.xpose.msra.mxu0 0
        %919 = vmatprep.subr.bf16.mxu0 0
        %920 = vmatpush1.bf16.xpose.msra.mxu0 0
        %921 = vmatprep.subr.bf16.mxu0 0
        %922 = vmatpush1.bf16.xpose.msra.mxu0 0
        %923 = vmatprep.subr.bf16.mxu0 0
        %924 = vmatpush1.bf16.xpose.msra.mxu0 0
        %925 = vmatprep.subr.bf16.mxu0 0
        %926 = vmatpush1.bf16.xpose.msra.mxu0 0
        %927 = vmatprep.subr.bf16.mxu0 0
        %928 = vmatpush1.bf16.xpose.msra.mxu0 0
        %929 = vmatprep.subr.bf16.mxu0 0
        %930 = vmatpush1.bf16.xpose.msra.mxu0 0
        %931 = vmatprep.subr.bf16.mxu0 0
        %932 = vmatpush1.bf16.xpose.msra.mxu0 0
        %933 = vmatprep.subr.bf16.mxu0 0
        %934 = vmatpush1.bf16.xpose.msra.mxu0 0
        %935 = vmatprep.subr.bf16.mxu0 0
        %936 = vmatpush1.bf16.xpose.msra.mxu0 0
        %937 = vmatprep.subr.bf16.mxu0 0
        %938 = vmatpush1.bf16.xpose.msra.mxu0 0
        %939 = vmatprep.mubr.bf16.mxu0 0
        %940 = vmatmul.mubr.bf16.gmra.mrb[0].mxu0 %v902
        %v941 = vpop.f32.mrb[0].mxu0
        %v942 = vadd.f32 0.0, %v941
        %v943 = vpop.f32.mrb[0].mxu0
        %v944 = vpop.f32.mrb[0].mxu0
        %v945 = vpop.f32.mrb[0].mxu0
        %946 = vdwg.mxu0
        %v947 = vsel %vm788, %v942, -inf
        %948 = vmax.xlane.f32.xlu0 %v947
        %v949 = vpop.xlane.xlu0 %948
        %v950 = vsub.f32 %v942, %v949
        %v951 = vmul.f32 %v950, 1.442695
        %v952 = vpow.pop %v951
        %v953 = vsel %vm788, %v952, 0.0
        %954 = vadd.xlane.f32.xlu0 %v953
        %v955 = vpop.xlane.xlu0 %954
        %v956 = vrcp.pop %v955
        %v957 = vmul.f32 %v952, %v956
        %v958 = vpack.c.bf16 %v957, %v957
        %959 = vrot.lane.b32.xlu0 %v784, 56
        %v960 = vpop.permute.xlu0 %959
        %v962 = vsel %vm788, %v958, 0
        %v965 = vsel %vm852, %v960, 0
        %967 = vmatprep.subr.bf16.mxu0 0
        %968 = vmatpush1.bf16.msra.mxu0 %v965
        %969 = vmatprep.subr.bf16.mxu0 0
        %970 = vmatpush1.bf16.msra.mxu0 0
        %971 = vmatprep.subr.bf16.mxu0 0
        %972 = vmatpush1.bf16.msra.mxu0 0
        %973 = vmatprep.subr.bf16.mxu0 0
        %974 = vmatpush1.bf16.msra.mxu0 0
        %975 = vmatprep.subr.bf16.mxu0 0
        %976 = vmatpush1.bf16.msra.mxu0 0
        %977 = vmatprep.subr.bf16.mxu0 0
        %978 = vmatpush1.bf16.msra.mxu0 0
        %979 = vmatprep.subr.bf16.mxu0 0
        %980 = vmatpush1.bf16.msra.mxu0 0
        %981 = vmatprep.subr.bf16.mxu0 0
        %982 = vmatpush1.bf16.msra.mxu0 0
        %983 = vmatprep.subr.bf16.mxu0 0
        %984 = vmatpush1.bf16.msra.mxu0 0
        %985 = vmatprep.subr.bf16.mxu0 0
        %986 = vmatpush1.bf16.msra.mxu0 0
        %987 = vmatprep.subr.bf16.mxu0 0
        %988 = vmatpush1.bf16.msra.mxu0 0
        %989 = vmatprep.subr.bf16.mxu0 0
        %990 = vmatpush1.bf16.msra.mxu0 0
        %991 = vmatprep.subr.bf16.mxu0 0
        %992 = vmatpush1.bf16.msra.mxu0 0
        %993 = vmatprep.subr.bf16.mxu0 0
        %994 = vmatpush1.bf16.msra.mxu0 0
        %995 = vmatprep.subr.bf16.mxu0 0
        %996 = vmatpush1.bf16.msra.mxu0 0
        %997 = vmatprep.subr.bf16.mxu0 0
        %998 = vmatpush1.bf16.msra.mxu0 0
        %999 = vmatprep.mubr.bf16.mxu0 0
        %1000 = vmatmul.mubr.bf16.gmra.mrb[0].mxu0 %v962
        %v1001 = vpop.f32.mrb[0].mxu0
        %v1002 = vadd.f32 0.0, %v1001
        %v1003 = vpop.f32.mrb[0].mxu0
        %v1004 = vpop.f32.mrb[0].mxu0
        %v1005 = vpop.f32.mrb[0].mxu0
        %1006 = vdwg.mxu0
        %1008 = vrot.lane.b32.xlu0 %v1002, 8
        %v1009 = vpop.permute.xlu0 %1008
        %vm1011 = vcmask 130112
        %1012 = vst.msk [vmem:[#allocation3] sm:$0xff] %vm1011, %v1009
        %1013 = vrot.lane.b32.xlu0 %v784, 112
        %v1014 = vpop.permute.xlu0 %1013
        %1015 = vrot.lane.b32.xlu0 %v784, 80
        %v1016 = vpop.permute.xlu0 %1015
        %v1018 = vsel %vm788, %v1014, 0
        %v1021 = vsel %vm788, %v1016, 0
        %1023 = vmatprep.subr.bf16.mxu0 0
        %1024 = vmatpush1.bf16.xpose.msra.mxu0 %v1021
        %1025 = vmatprep.subr.bf16.mxu0 0
        %1026 = vmatpush1.bf16.xpose.msra.mxu0 0
        %1027 = vmatprep.subr.bf16.mxu0 0
        %1028 = vmatpush1.bf16.xpose.msra.mxu0 0
        %1029 = vmatprep.subr.bf16.mxu0 0
        %1030 = vmatpush1.bf16.xpose.msra.mxu0 0
        %1031 = vmatprep.subr.bf16.mxu0 0
        %1032 = vmatpush1.bf16.xpose.msra.mxu0 0
        %1033 = vmatprep.subr.bf16.mxu0 0
        %1034 = vmatpush1.bf16.xpose.msra.mxu0 0
        %1035 = vmatprep.subr.bf16.mxu0 0
        %1036 = vmatpush1.bf16.xpose.msra.mxu0 0
        %1037 = vmatprep.subr.bf16.mxu0 0
        %1038 = vmatpush1.bf16.xpose.msra.mxu0 0
        %1039 = vmatprep.subr.bf16.mxu0 0
        %1040 = vmatpush1.bf16.xpose.msra.mxu0 0
        %1041 = vmatprep.subr.bf16.mxu0 0
        %1042 = vmatpush1.bf16.xpose.msra.mxu0 0
        %1043 = vmatprep.subr.bf16.mxu0 0
        %1044 = vmatpush1.bf16.xpose.msra.mxu0 0
        %1045 = vmatprep.subr.bf16.mxu0 0
        %1046 = vmatpush1.bf16.xpose.msra.mxu0 0
        %1047 = vmatprep.subr.bf16.mxu0 0
        %1048 = vmatpush1.bf16.xpose.msra.mxu0 0
        %1049 = vmatprep.subr.bf16.mxu0 0
        %1050 = vmatpush1.bf16.xpose.msra.mxu0 0
        %1051 = vmatprep.subr.bf16.mxu0 0
        %1052 = vmatpush1.bf16.xpose.msra.mxu0 0
        %1053 = vmatprep.subr.bf16.mxu0 0
        %1054 = vmatpush1.bf16.xpose.msra.mxu0 0
        %1055 = vmatprep.mubr.bf16.mxu0 0
        %1056 = vmatmul.mubr.bf16.gmra.mrb[0].mxu0 %v1018
        %v1057 = vpop.f32.mrb[0].mxu0
        %v1058 = vadd.f32 0.0, %v1057
        %v1059 = vpop.f32.mrb[0].mxu0
        %v1060 = vpop.f32.mrb[0].mxu0
        %v1061 = vpop.f32.mrb[0].mxu0
        %1062 = vdwg.mxu0
        %v1063 = vsel %vm788, %v1058, -inf
        %1064 = vmax.xlane.f32.xlu0 %v1063
        %v1065 = vpop.xlane.xlu0 %1064
        %v1066 = vsub.f32 %v1058, %v1065
        %v1067 = vmul.f32 %v1066, 1.442695
        %v1068 = vpow.pop %v1067
        %v1069 = vsel %vm788, %v1068, 0.0
        %1070 = vadd.xlane.f32.xlu0 %v1069
        %v1071 = vpop.xlane.xlu0 %1070
        %v1072 = vrcp.pop %v1071
        %v1073 = vmul.f32 %v1068, %v1072
        %v1074 = vpack.c.bf16 %v1073, %v1073
        %1075 = vrot.lane.b32.xlu0 %v784, 48
        %v1076 = vpop.permute.xlu0 %1075
        %v1078 = vsel %vm788, %v1074, 0
        %v1081 = vsel %vm852, %v1076, 0
        %1083 = vmatprep.subr.bf16.mxu0 0
        %1084 = vmatpush1.bf16.msra.mxu0 %v1081
        %1085 = vmatprep.subr.bf16.mxu0 0
        %1086 = vmatpush1.bf16.msra.mxu0 0
        %1087 = vmatprep.subr.bf16.mxu0 0
        %1088 = vmatpush1.bf16.msra.mxu0 0
        %1089 = vmatprep.subr.bf16.mxu0 0
        %1090 = vmatpush1.bf16.msra.mxu0 0
        %1091 = vmatprep.subr.bf16.mxu0 0
        %1092 = vmatpush1.bf16.msra.mxu0 0
        %1093 = vmatprep.subr.bf16.mxu0 0
        %1094 = vmatpush1.bf16.msra.mxu0 0
        %1095 = vmatprep.subr.bf16.mxu0 0
        %1096 = vmatpush1.bf16.msra.mxu0 0
        %1097 = vmatprep.subr.bf16.mxu0 0
        %1098 = vmatpush1.bf16.msra.mxu0 0
        %1099 = vmatprep.subr.bf16.mxu0 0
        %1100 = vmatpush1.bf16.msra.mxu0 0
        %1101 = vmatprep.subr.bf16.mxu0 0
        %1102 = vmatpush1.bf16.msra.mxu0 0
        %1103 = vmatprep.subr.bf16.mxu0 0
        %1104 = vmatpush1.bf16.msra.mxu0 0
        %1105 = vmatprep.subr.bf16.mxu0 0
        %1106 = vmatpush1.bf16.msra.mxu0 0
        %1107 = vmatprep.subr.bf16.mxu0 0
        %1108 = vmatpush1.bf16.msra.mxu0 0
        %1109 = vmatprep.subr.bf16.mxu0 0
        %1110 = vmatpush1.bf16.msra.mxu0 0
        %1111 = vmatprep.subr.bf16.mxu0 0
        %1112 = vmatpush1.bf16.msra.mxu0 0
        %1113 = vmatprep.subr.bf16.mxu0 0
        %1114 = vmatpush1.bf16.msra.mxu0 0
        %1115 = vmatprep.mubr.bf16.mxu0 0
        %1116 = vmatmul.mubr.bf16.gmra.mrb[0].mxu0 %v1078
        %v1117 = vpop.f32.mrb[0].mxu0
        %v1118 = vadd.f32 0.0, %v1117
        %v1119 = vpop.f32.mrb[0].mxu0
        %v1120 = vpop.f32.mrb[0].mxu0
        %v1121 = vpop.f32.mrb[0].mxu0
        %1122 = vdwg.mxu0
        %1124 = vrot.lane.b32.xlu0 %v1118, 16
        %v1125 = vpop.permute.xlu0 %1124
        %vm1127 = vcmask 195712
        %1128 = vst.msk [vmem:[#allocation3] sm:$0xff] %vm1127, %v1125
        %1129 = vrot.lane.b32.xlu0 %v784, 104
        %v1130 = vpop.permute.xlu0 %1129
        %1131 = vrot.lane.b32.xlu0 %v784, 72
        %v1132 = vpop.permute.xlu0 %1131
        %v1134 = vsel %vm788, %v1130, 0
        %v1137 = vsel %vm788, %v1132, 0
        %1139 = vmatprep.subr.bf16.mxu0 0
        %1140 = vmatpush1.bf16.xpose.msra.mxu0 %v1137
        %1141 = vmatprep.subr.bf16.mxu0 0
        %1142 = vmatpush1.bf16.xpose.msra.mxu0 0
        %1143 = vmatprep.subr.bf16.mxu0 0
        %1144 = vmatpush1.bf16.xpose.msra.mxu0 0
        %1145 = vmatprep.subr.bf16.mxu0 0
        %1146 = vmatpush1.bf16.xpose.msra.mxu0 0
        %1147 = vmatprep.subr.bf16.mxu0 0
        %1148 = vmatpush1.bf16.xpose.msra.mxu0 0
        %1149 = vmatprep.subr.bf16.mxu0 0
        %1150 = vmatpush1.bf16.xpose.msra.mxu0 0
        %1151 = vmatprep.subr.bf16.mxu0 0
        %1152 = vmatpush1.bf16.xpose.msra.mxu0 0
        %1153 = vmatprep.subr.bf16.mxu0 0
        %1154 = vmatpush1.bf16.xpose.msra.mxu0 0
        %1155 = vmatprep.subr.bf16.mxu0 0
        %1156 = vmatpush1.bf16.xpose.msra.mxu0 0
        %1157 = vmatprep.subr.bf16.mxu0 0
        %1158 = vmatpush1.bf16.xpose.msra.mxu0 0
        %1159 = vmatprep.subr.bf16.mxu0 0
        %1160 = vmatpush1.bf16.xpose.msra.mxu0 0
        %1161 = vmatprep.subr.bf16.mxu0 0
        %1162 = vmatpush1.bf16.xpose.msra.mxu0 0
        %1163 = vmatprep.subr.bf16.mxu0 0
        %1164 = vmatpush1.bf16.xpose.msra.mxu0 0
        %1165 = vmatprep.subr.bf16.mxu0 0
        %1166 = vmatpush1.bf16.xpose.msra.mxu0 0
        %1167 = vmatprep.subr.bf16.mxu0 0
        %1168 = vmatpush1.bf16.xpose.msra.mxu0 0
        %1169 = vmatprep.subr.bf16.mxu0 0
        %1170 = vmatpush1.bf16.xpose.msra.mxu0 0
        %1171 = vmatprep.mubr.bf16.mxu0 0
        %1172 = vmatmul.mubr.bf16.gmra.mrb[0].mxu0 %v1134
        %v1173 = vpop.f32.mrb[0].mxu0
        %v1174 = vadd.f32 0.0, %v1173
        %v1175 = vpop.f32.mrb[0].mxu0
        %v1176 = vpop.f32.mrb[0].mxu0
        %v1177 = vpop.f32.mrb[0].mxu0
        %1178 = vdwg.mxu0
        %v1179 = vsel %vm788, %v1174, -inf
        %1180 = vmax.xlane.f32.xlu0 %v1179
        %v1181 = vpop.xlane.xlu0 %1180
        %v1182 = vsub.f32 %v1174, %v1181
        %v1183 = vmul.f32 %v1182, 1.442695
        %v1184 = vpow.pop %v1183
        %v1185 = vsel %vm788, %v1184, 0.0
        %1186 = vadd.xlane.f32.xlu0 %v1185
        %v1187 = vpop.xlane.xlu0 %1186
        %v1188 = vrcp.pop %v1187
        %v1189 = vmul.f32 %v1184, %v1188
        %v1190 = vpack.c.bf16 %v1189, %v1189
        %1191 = vrot.lane.b32.xlu0 %v784, 40
        %v1192 = vpop.permute.xlu0 %1191
        %v1194 = vsel %vm788, %v1190, 0
        %v1197 = vsel %vm852, %v1192, 0
        %1199 = vmatprep.subr.bf16.mxu0 0
        %1200 = vmatpush1.bf16.msra.mxu0 %v1197
        %1201 = vmatprep.subr.bf16.mxu0 0
        %1202 = vmatpush1.bf16.msra.mxu0 0
        %1203 = vmatprep.subr.bf16.mxu0 0
        %1204 = vmatpush1.bf16.msra.mxu0 0
        %1205 = vmatprep.subr.bf16.mxu0 0
        %1206 = vmatpush1.bf16.msra.mxu0 0
        %1207 = vmatprep.subr.bf16.mxu0 0
        %1208 = vmatpush1.bf16.msra.mxu0 0
        %1209 = vmatprep.subr.bf16.mxu0 0
        %1210 = vmatpush1.bf16.msra.mxu0 0
        %1211 = vmatprep.subr.bf16.mxu0 0
        %1212 = vmatpush1.bf16.msra.mxu0 0
        %1213 = vmatprep.subr.bf16.mxu0 0
        %1214 = vmatpush1.bf16.msra.mxu0 0
        %1215 = vmatprep.subr.bf16.mxu0 0
        %1216 = vmatpush1.bf16.msra.mxu0 0
        %1217 = vmatprep.subr.bf16.mxu0 0
        %1218 = vmatpush1.bf16.msra.mxu0 0
        %1219 = vmatprep.subr.bf16.mxu0 0
        %1220 = vmatpush1.bf16.msra.mxu0 0
        %1221 = vmatprep.subr.bf16.mxu0 0
        %1222 = vmatpush1.bf16.msra.mxu0 0
        %1223 = vmatprep.subr.bf16.mxu0 0
        %1224 = vmatpush1.bf16.msra.mxu0 0
        %1225 = vmatprep.subr.bf16.mxu0 0
        %1226 = vmatpush1.bf16.msra.mxu0 0
        %1227 = vmatprep.subr.bf16.mxu0 0
        %1228 = vmatpush1.bf16.msra.mxu0 0
        %1229 = vmatprep.subr.bf16.mxu0 0
        %1230 = vmatpush1.bf16.msra.mxu0 0
        %1231 = vmatprep.mubr.bf16.mxu0 0
        %1232 = vmatmul.mubr.bf16.gmra.mrb[0].mxu0 %v1194
        %v1233 = vpop.f32.mrb[0].mxu0
        %v1234 = vadd.f32 0.0, %v1233
        %v1235 = vpop.f32.mrb[0].mxu0
        %v1236 = vpop.f32.mrb[0].mxu0
        %v1237 = vpop.f32.mrb[0].mxu0
        %1238 = vdwg.mxu0
        %1240 = vrot.lane.b32.xlu0 %v1234, 24
        %v1241 = vpop.permute.xlu0 %1240
        %vm1243 = vcmask 261312
        %1244 = vst.msk [vmem:[#allocation3] sm:$0xff] %vm1243, %v1241
        %v1245 = vpack.c.bf16 %v781, %v781
        %1247 = vrot.lane.b32.xlu0 %v1245, 96
        %v1248 = vpop.permute.xlu0 %1247
        %v1250 = vsel %vm788, %v1245, 0
        %v1253 = vsel %vm788, %v1248, 0
        %1255 = vmatprep.subr.bf16.mxu0 0
        %1256 = vmatpush1.bf16.xpose.msra.mxu0 %v1253
        %1257 = vmatprep.subr.bf16.mxu0 0
        %1258 = vmatpush1.bf16.xpose.msra.mxu0 0
        %1259 = vmatprep.subr.bf16.mxu0 0
        %1260 = vmatpush1.bf16.xpose.msra.mxu0 0
        %1261 = vmatprep.subr.bf16.mxu0 0
        %1262 = vmatpush1.bf16.xpose.msra.mxu0 0
        %1263 = vmatprep.subr.bf16.mxu0 0
        %1264 = vmatpush1.bf16.xpose.msra.mxu0 0
        %1265 = vmatprep.subr.bf16.mxu0 0
        %1266 = vmatpush1.bf16.xpose.msra.mxu0 0
        %1267 = vmatprep.subr.bf16.mxu0 0
        %1268 = vmatpush1.bf16.xpose.msra.mxu0 0
        %1269 = vmatprep.subr.bf16.mxu0 0
        %1270 = vmatpush1.bf16.xpose.msra.mxu0 0
        %1271 = vmatprep.subr.bf16.mxu0 0
        %1272 = vmatpush1.bf16.xpose.msra.mxu0 0
        %1273 = vmatprep.subr.bf16.mxu0 0
        %1274 = vmatpush1.bf16.xpose.msra.mxu0 0
        %1275 = vmatprep.subr.bf16.mxu0 0
        %1276 = vmatpush1.bf16.xpose.msra.mxu0 0
        %1277 = vmatprep.subr.bf16.mxu0 0
        %1278 = vmatpush1.bf16.xpose.msra.mxu0 0
        %1279 = vmatprep.subr.bf16.mxu0 0
        %1280 = vmatpush1.bf16.xpose.msra.mxu0 0
        %1281 = vmatprep.subr.bf16.mxu0 0
        %1282 = vmatpush1.bf16.xpose.msra.mxu0 0
        %1283 = vmatprep.subr.bf16.mxu0 0
        %1284 = vmatpush1.bf16.xpose.msra.mxu0 0
        %1285 = vmatprep.subr.bf16.mxu0 0
        %1286 = vmatpush1.bf16.xpose.msra.mxu0 0
        %1287 = vmatprep.mubr.bf16.mxu0 0
        %1288 = vmatmul.mubr.bf16.gmra.mrb[0].mxu0 %v1250
        %v1289 = vpop.f32.mrb[0].mxu0
        %v1290 = vadd.f32 0.0, %v1289
        %v1291 = vpop.f32.mrb[0].mxu0
        %v1292 = vpop.f32.mrb[0].mxu0
        %v1293 = vpop.f32.mrb[0].mxu0
        %1294 = vdwg.mxu0
        %v1295 = vsel %vm788, %v1290, -inf
        %1296 = vmax.xlane.f32.xlu0 %v1295
        %v1297 = vpop.xlane.xlu0 %1296
        %v1298 = vsub.f32 %v1290, %v1297
        %v1299 = vmul.f32 %v1298, 1.442695
        %v1300 = vpow.pop %v1299
        %v1301 = vsel %vm788, %v1300, 0.0
        %1302 = vadd.xlane.f32.xlu0 %v1301
        %v1303 = vpop.xlane.xlu0 %1302
        %v1304 = vrcp.pop %v1303
        %v1305 = vmul.f32 %v1300, %v1304
        %v1306 = vpack.c.bf16 %v1305, %v1305
        %1307 = vrot.lane.b32.xlu0 %v1245, 64
        %v1308 = vpop.permute.xlu0 %1307
        %v1310 = vsel %vm788, %v1306, 0
        %v1313 = vsel %vm852, %v1308, 0
        %1315 = vmatprep.subr.bf16.mxu0 0
        %1316 = vmatpush1.bf16.msra.mxu0 %v1313
        %1317 = vmatprep.subr.bf16.mxu0 0
        %1318 = vmatpush1.bf16.msra.mxu0 0
        %1319 = vmatprep.subr.bf16.mxu0 0
        %1320 = vmatpush1.bf16.msra.mxu0 0
        %1321 = vmatprep.subr.bf16.mxu0 0
        %1322 = vmatpush1.bf16.msra.mxu0 0
        %1323 = vmatprep.subr.bf16.mxu0 0
        %1324 = vmatpush1.bf16.msra.mxu0 0
        %1325 = vmatprep.subr.bf16.mxu0 0
        %1326 = vmatpush1.bf16.msra.mxu0 0
        %1327 = vmatprep.subr.bf16.mxu0 0
        %1328 = vmatpush1.bf16.msra.mxu0 0
        %1329 = vmatprep.subr.bf16.mxu0 0
        %1330 = vmatpush1.bf16.msra.mxu0 0
        %1331 = vmatprep.subr.bf16.mxu0 0
        %1332 = vmatpush1.bf16.msra.mxu0 0
        %1333 = vmatprep.subr.bf16.mxu0 0
        %1334 = vmatpush1.bf16.msra.mxu0 0
        %1335 = vmatprep.subr.bf16.mxu0 0
        %1336 = vmatpush1.bf16.msra.mxu0 0
        %1337 = vmatprep.subr.bf16.mxu0 0
        %1338 = vmatpush1.bf16.msra.mxu0 0
        %1339 = vmatprep.subr.bf16.mxu0 0
        %1340 = vmatpush1.bf16.msra.mxu0 0
        %1341 = vmatprep.subr.bf16.mxu0 0
        %1342 = vmatpush1.bf16.msra.mxu0 0
        %1343 = vmatprep.subr.bf16.mxu0 0
        %1344 = vmatpush1.bf16.msra.mxu0 0
        %1345 = vmatprep.subr.bf16.mxu0 0
        %1346 = vmatpush1.bf16.msra.mxu0 0
        %1347 = vmatprep.mubr.bf16.mxu0 0
        %1348 = vmatmul.mubr.bf16.gmra.mrb[0].mxu0 %v1310
        %v1349 = vpop.f32.mrb[0].mxu0
        %v1350 = vadd.f32 0.0, %v1349
        %v1351 = vpop.f32.mrb[0].mxu0
        %v1352 = vpop.f32.mrb[0].mxu0
        %v1353 = vpop.f32.mrb[0].mxu0
        %1354 = vdwg.mxu0
        %1355 = vst.msk [vmem:[#allocation3 + $0x8] sm:$0xff] %vm788, %v1350
        %1356 = vrot.lane.b32.xlu0 %v1245, 120
        %v1357 = vpop.permute.xlu0 %1356
        %1358 = vrot.lane.b32.xlu0 %v1245, 88
        %v1359 = vpop.permute.xlu0 %1358
        %v1361 = vsel %vm788, %v1357, 0
        %v1364 = vsel %vm788, %v1359, 0
        %1366 = vmatprep.subr.bf16.mxu0 0
        %1367 = vmatpush1.bf16.xpose.msra.mxu0 %v1364
        %1368 = vmatprep.subr.bf16.mxu0 0
        %1369 = vmatpush1.bf16.xpose.msra.mxu0 0
        %1370 = vmatprep.subr.bf16.mxu0 0
        %1371 = vmatpush1.bf16.xpose.msra.mxu0 0
        %1372 = vmatprep.subr.bf16.mxu0 0
        %1373 = vmatpush1.bf16.xpose.msra.mxu0 0
        %1374 = vmatprep.subr.bf16.mxu0 0
        %1375 = vmatpush1.bf16.xpose.msra.mxu0 0
        %1376 = vmatprep.subr.bf16.mxu0 0
        %1377 = vmatpush1.bf16.xpose.msra.mxu0 0
        %1378 = vmatprep.subr.bf16.mxu0 0
        %1379 = vmatpush1.bf16.xpose.msra.mxu0 0
        %1380 = vmatprep.subr.bf16.mxu0 0
        %1381 = vmatpush1.bf16.xpose.msra.mxu0 0
        %1382 = vmatprep.subr.bf16.mxu0 0
        %1383 = vmatpush1.bf16.xpose.msra.mxu0 0
        %1384 = vmatprep.subr.bf16.mxu0 0
        %1385 = vmatpush1.bf16.xpose.msra.mxu0 0
        %1386 = vmatprep.subr.bf16.mxu0 0
        %1387 = vmatpush1.bf16.xpose.msra.mxu0 0
        %1388 = vmatprep.subr.bf16.mxu0 0
        %1389 = vmatpush1.bf16.xpose.msra.mxu0 0
        %1390 = vmatprep.subr.bf16.mxu0 0
        %1391 = vmatpush1.bf16.xpose.msra.mxu0 0
        %1392 = vmatprep.subr.bf16.mxu0 0
        %1393 = vmatpush1.bf16.xpose.msra.mxu0 0
        %1394 = vmatprep.subr.bf16.mxu0 0
        %1395 = vmatpush1.bf16.xpose.msra.mxu0 0
        %1396 = vmatprep.subr.bf16.mxu0 0
        %1397 = vmatpush1.bf16.xpose.msra.mxu0 0
        %1398 = vmatprep.mubr.bf16.mxu0 0
        %1399 = vmatmul.mubr.bf16.gmra.mrb[0].mxu0 %v1361
        %v1400 = vpop.f32.mrb[0].mxu0
        %v1401 = vadd.f32 0.0, %v1400
        %v1402 = vpop.f32.mrb[0].mxu0
        %v1403 = vpop.f32.mrb[0].mxu0
        %v1404 = vpop.f32.mrb[0].mxu0
        %1405 = vdwg.mxu0
        %v1406 = vsel %vm788, %v1401, -inf
        %1407 = vmax.xlane.f32.xlu0 %v1406
        %v1408 = vpop.xlane.xlu0 %1407
        %v1409 = vsub.f32 %v1401, %v1408
        %v1410 = vmul.f32 %v1409, 1.442695
        %v1411 = vpow.pop %v1410
        %v1412 = vsel %vm788, %v1411, 0.0
        %1413 = vadd.xlane.f32.xlu0 %v1412
        %v1414 = vpop.xlane.xlu0 %1413
        %v1415 = vrcp.pop %v1414
        %v1416 = vmul.f32 %v1411, %v1415
        %v1417 = vpack.c.bf16 %v1416, %v1416
        %1418 = vrot.lane.b32.xlu0 %v1245, 56
        %v1419 = vpop.permute.xlu0 %1418
        %v1421 = vsel %vm788, %v1417, 0
        %v1424 = vsel %vm852, %v1419, 0
        %1426 = vmatprep.subr.bf16.mxu0 0
        %1427 = vmatpush1.bf16.msra.mxu0 %v1424
        %1428 = vmatprep.subr.bf16.mxu0 0
        %1429 = vmatpush1.bf16.msra.mxu0 0
        %1430 = vmatprep.subr.bf16.mxu0 0
        %1431 = vmatpush1.bf16.msra.mxu0 0
        %1432 = vmatprep.subr.bf16.mxu0 0
        %1433 = vmatpush1.bf16.msra.mxu0 0
        %1434 = vmatprep.subr.bf16.mxu0 0
        %1435 = vmatpush1.bf16.msra.mxu0 0
        %1436 = vmatprep.subr.bf16.mxu0 0
        %1437 = vmatpush1.bf16.msra.mxu0 0
        %1438 = vmatprep.subr.bf16.mxu0 0
        %1439 = vmatpush1.bf16.msra.mxu0 0
        %1440 = vmatprep.subr.bf16.mxu0 0
        %1441 = vmatpush1.bf16.msra.mxu0 0
        %1442 = vmatprep.subr.bf16.mxu0 0
        %1443 = vmatpush1.bf16.msra.mxu0 0
        %1444 = vmatprep.subr.bf16.mxu0 0
        %1445 = vmatpush1.bf16.msra.mxu0 0
        %1446 = vmatprep.subr.bf16.mxu0 0
        %1447 = vmatpush1.bf16.msra.mxu0 0
        %1448 = vmatprep.subr.bf16.mxu0 0
        %1449 = vmatpush1.bf16.msra.mxu0 0
        %1450 = vmatprep.subr.bf16.mxu0 0
        %1451 = vmatpush1.bf16.msra.mxu0 0
        %1452 = vmatprep.subr.bf16.mxu0 0
        %1453 = vmatpush1.bf16.msra.mxu0 0
        %1454 = vmatprep.subr.bf16.mxu0 0
        %1455 = vmatpush1.bf16.msra.mxu0 0
        %1456 = vmatprep.subr.bf16.mxu0 0
        %1457 = vmatpush1.bf16.msra.mxu0 0
        %1458 = vmatprep.mubr.bf16.mxu0 0
        %1459 = vmatmul.mubr.bf16.gmra.mrb[0].mxu0 %v1421
        %v1460 = vpop.f32.mrb[0].mxu0
        %v1461 = vadd.f32 0.0, %v1460
        %v1462 = vpop.f32.mrb[0].mxu0
        %v1463 = vpop.f32.mrb[0].mxu0
        %v1464 = vpop.f32.mrb[0].mxu0
        %1465 = vdwg.mxu0
        %1467 = vrot.lane.b32.xlu0 %v1461, 8
        %v1468 = vpop.permute.xlu0 %1467
        %1470 = vst.msk [vmem:[#allocation3 + $0x8] sm:$0xff] %vm1011, %v1468
        %1471 = vrot.lane.b32.xlu0 %v1245, 112
        %v1472 = vpop.permute.xlu0 %1471
        %1473 = vrot.lane.b32.xlu0 %v1245, 80
        %v1474 = vpop.permute.xlu0 %1473
        %v1476 = vsel %vm788, %v1472, 0
        %v1479 = vsel %vm788, %v1474, 0
        %1481 = vmatprep.subr.bf16.mxu0 0
        %1482 = vmatpush1.bf16.xpose.msra.mxu0 %v1479
        %1483 = vmatprep.subr.bf16.mxu0 0
        %1484 = vmatpush1.bf16.xpose.msra.mxu0 0
        %1485 = vmatprep.subr.bf16.mxu0 0
        %1486 = vmatpush1.bf16.xpose.msra.mxu0 0
        %1487 = vmatprep.subr.bf16.mxu0 0
        %1488 = vmatpush1.bf16.xpose.msra.mxu0 0
        %1489 = vmatprep.subr.bf16.mxu0 0
        %1490 = vmatpush1.bf16.xpose.msra.mxu0 0
        %1491 = vmatprep.subr.bf16.mxu0 0
        %1492 = vmatpush1.bf16.xpose.msra.mxu0 0
        %1493 = vmatprep.subr.bf16.mxu0 0
        %1494 = vmatpush1.bf16.xpose.msra.mxu0 0
        %1495 = vmatprep.subr.bf16.mxu0 0
        %1496 = vmatpush1.bf16.xpose.msra.mxu0 0
        %1497 = vmatprep.subr.bf16.mxu0 0
        %1498 = vmatpush1.bf16.xpose.msra.mxu0 0
        %1499 = vmatprep.subr.bf16.mxu0 0
        %1500 = vmatpush1.bf16.xpose.msra.mxu0 0
        %1501 = vmatprep.subr.bf16.mxu0 0
        %1502 = vmatpush1.bf16.xpose.msra.mxu0 0
        %1503 = vmatprep.subr.bf16.mxu0 0
        %1504 = vmatpush1.bf16.xpose.msra.mxu0 0
        %1505 = vmatprep.subr.bf16.mxu0 0
        %1506 = vmatpush1.bf16.xpose.msra.mxu0 0
        %1507 = vmatprep.subr.bf16.mxu0 0
        %1508 = vmatpush1.bf16.xpose.msra.mxu0 0
        %1509 = vmatprep.subr.bf16.mxu0 0
        %1510 = vmatpush1.bf16.xpose.msra.mxu0 0
        %1511 = vmatprep.subr.bf16.mxu0 0
        %1512 = vmatpush1.bf16.xpose.msra.mxu0 0
        %1513 = vmatprep.mubr.bf16.mxu0 0
        %1514 = vmatmul.mubr.bf16.gmra.mrb[0].mxu0 %v1476
        %v1515 = vpop.f32.mrb[0].mxu0
        %v1516 = vadd.f32 0.0, %v1515
        %v1517 = vpop.f32.mrb[0].mxu0
        %v1518 = vpop.f32.mrb[0].mxu0
        %v1519 = vpop.f32.mrb[0].mxu0
        %1520 = vdwg.mxu0
        %v1521 = vsel %vm788, %v1516, -inf
        %1522 = vmax.xlane.f32.xlu0 %v1521
        %v1523 = vpop.xlane.xlu0 %1522
        %v1524 = vsub.f32 %v1516, %v1523
        %v1525 = vmul.f32 %v1524, 1.442695
        %v1526 = vpow.pop %v1525
        %v1527 = vsel %vm788, %v1526, 0.0
        %1528 = vadd.xlane.f32.xlu0 %v1527
        %v1529 = vpop.xlane.xlu0 %1528
        %v1530 = vrcp.pop %v1529
        %v1531 = vmul.f32 %v1526, %v1530
        %v1532 = vpack.c.bf16 %v1531, %v1531
        %1533 = vrot.lane.b32.xlu0 %v1245, 48
        %v1534 = vpop.permute.xlu0 %1533
        %v1536 = vsel %vm788, %v1532, 0
        %v1539 = vsel %vm852, %v1534, 0
        %1541 = vmatprep.subr.bf16.mxu0 0
        %1542 = vmatpush1.bf16.msra.mxu0 %v1539
        %1543 = vmatprep.subr.bf16.mxu0 0
        %1544 = vmatpush1.bf16.msra.mxu0 0
        %1545 = vmatprep.subr.bf16.mxu0 0
        %1546 = vmatpush1.bf16.msra.mxu0 0
        %1547 = vmatprep.subr.bf16.mxu0 0
        %1548 = vmatpush1.bf16.msra.mxu0 0
        %1549 = vmatprep.subr.bf16.mxu0 0
        %1550 = vmatpush1.bf16.msra.mxu0 0
        %1551 = vmatprep.subr.bf16.mxu0 0
        %1552 = vmatpush1.bf16.msra.mxu0 0
        %1553 = vmatprep.subr.bf16.mxu0 0
        %1554 = vmatpush1.bf16.msra.mxu0 0
        %1555 = vmatprep.subr.bf16.mxu0 0
        %1556 = vmatpush1.bf16.msra.mxu0 0
        %1557 = vmatprep.subr.bf16.mxu0 0
        %1558 = vmatpush1.bf16.msra.mxu0 0
        %1559 = vmatprep.subr.bf16.mxu0 0
        %1560 = vmatpush1.bf16.msra.mxu0 0
        %1561 = vmatprep.subr.bf16.mxu0 0
        %1562 = vmatpush1.bf16.msra.mxu0 0
        %1563 = vmatprep.subr.bf16.mxu0 0
        %1564 = vmatpush1.bf16.msra.mxu0 0
        %1565 = vmatprep.subr.bf16.mxu0 0
        %1566 = vmatpush1.bf16.msra.mxu0 0
        %1567 = vmatprep.subr.bf16.mxu0 0
        %1568 = vmatpush1.bf16.msra.mxu0 0
        %1569 = vmatprep.subr.bf16.mxu0 0
        %1570 = vmatpush1.bf16.msra.mxu0 0
        %1571 = vmatprep.subr.bf16.mxu0 0
        %1572 = vmatpush1.bf16.msra.mxu0 0
        %1573 = vmatprep.mubr.bf16.mxu0 0
        %1574 = vmatmul.mubr.bf16.gmra.mrb[0].mxu0 %v1536
        %v1575 = vpop.f32.mrb[0].mxu0
        %v1576 = vadd.f32 0.0, %v1575
        %v1577 = vpop.f32.mrb[0].mxu0
        %v1578 = vpop.f32.mrb[0].mxu0
        %v1579 = vpop.f32.mrb[0].mxu0
        %1580 = vdwg.mxu0
        %1582 = vrot.lane.b32.xlu0 %v1576, 16
        %v1583 = vpop.permute.xlu0 %1582
        %1585 = vst.msk [vmem:[#allocation3 + $0x8] sm:$0xff] %vm1127, %v1583
        %1586 = vrot.lane.b32.xlu0 %v1245, 104
        %v1587 = vpop.permute.xlu0 %1586
        %1588 = vrot.lane.b32.xlu0 %v1245, 72
        %v1589 = vpop.permute.xlu0 %1588
        %v1591 = vsel %vm788, %v1587, 0
        %v1594 = vsel %vm788, %v1589, 0
        %1596 = vmatprep.subr.bf16.mxu0 0
        %1597 = vmatpush1.bf16.xpose.msra.mxu0 %v1594
        %1598 = vmatprep.subr.bf16.mxu0 0
        %1599 = vmatpush1.bf16.xpose.msra.mxu0 0
        %1600 = vmatprep.subr.bf16.mxu0 0
        %1601 = vmatpush1.bf16.xpose.msra.mxu0 0
        %1602 = vmatprep.subr.bf16.mxu0 0
        %1603 = vmatpush1.bf16.xpose.msra.mxu0 0
        %1604 = vmatprep.subr.bf16.mxu0 0
        %1605 = vmatpush1.bf16.xpose.msra.mxu0 0
        %1606 = vmatprep.subr.bf16.mxu0 0
        %1607 = vmatpush1.bf16.xpose.msra.mxu0 0
        %1608 = vmatprep.subr.bf16.mxu0 0
        %1609 = vmatpush1.bf16.xpose.msra.mxu0 0
        %1610 = vmatprep.subr.bf16.mxu0 0
        %1611 = vmatpush1.bf16.xpose.msra.mxu0 0
        %1612 = vmatprep.subr.bf16.mxu0 0
        %1613 = vmatpush1.bf16.xpose.msra.mxu0 0
        %1614 = vmatprep.subr.bf16.mxu0 0
        %1615 = vmatpush1.bf16.xpose.msra.mxu0 0
        %1616 = vmatprep.subr.bf16.mxu0 0
        %1617 = vmatpush1.bf16.xpose.msra.mxu0 0
        %1618 = vmatprep.subr.bf16.mxu0 0
        %1619 = vmatpush1.bf16.xpose.msra.mxu0 0
        %1620 = vmatprep.subr.bf16.mxu0 0
        %1621 = vmatpush1.bf16.xpose.msra.mxu0 0
        %1622 = vmatprep.subr.bf16.mxu0 0
        %1623 = vmatpush1.bf16.xpose.msra.mxu0 0
        %1624 = vmatprep.subr.bf16.mxu0 0
        %1625 = vmatpush1.bf16.xpose.msra.mxu0 0
        %1626 = vmatprep.subr.bf16.mxu0 0
        %1627 = vmatpush1.bf16.xpose.msra.mxu0 0
        %1628 = vmatprep.mubr.bf16.mxu0 0
        %1629 = vmatmul.mubr.bf16.gmra.mrb[0].mxu0 %v1591
        %v1630 = vpop.f32.mrb[0].mxu0
        %v1631 = vadd.f32 0.0, %v1630
        %v1632 = vpop.f32.mrb[0].mxu0
        %v1633 = vpop.f32.mrb[0].mxu0
        %v1634 = vpop.f32.mrb[0].mxu0
        %1635 = vdwg.mxu0
        %v1636 = vsel %vm788, %v1631, -inf
        %1637 = vmax.xlane.f32.xlu0 %v1636
        %v1638 = vpop.xlane.xlu0 %1637
        %v1639 = vsub.f32 %v1631, %v1638
        %v1640 = vmul.f32 %v1639, 1.442695
        %v1641 = vpow.pop %v1640
        %v1642 = vsel %vm788, %v1641, 0.0
        %1643 = vadd.xlane.f32.xlu0 %v1642
        %v1644 = vpop.xlane.xlu0 %1643
        %v1645 = vrcp.pop %v1644
        %v1646 = vmul.f32 %v1641, %v1645
        %v1647 = vpack.c.bf16 %v1646, %v1646
        %1648 = vrot.lane.b32.xlu0 %v1245, 40
        %v1649 = vpop.permute.xlu0 %1648
        %v1651 = vsel %vm788, %v1647, 0
        %v1654 = vsel %vm852, %v1649, 0
        %1656 = vmatprep.subr.bf16.mxu0 0
        %1657 = vmatpush1.bf16.msra.mxu0 %v1654
        %1658 = vmatprep.subr.bf16.mxu0 0
        %1659 = vmatpush1.bf16.msra.mxu0 0
        %1660 = vmatprep.subr.bf16.mxu0 0
        %1661 = vmatpush1.bf16.msra.mxu0 0
        %1662 = vmatprep.subr.bf16.mxu0 0
        %1663 = vmatpush1.bf16.msra.mxu0 0
        %1664 = vmatprep.subr.bf16.mxu0 0
        %1665 = vmatpush1.bf16.msra.mxu0 0
        %1666 = vmatprep.subr.bf16.mxu0 0
        %1667 = vmatpush1.bf16.msra.mxu0 0
        %1668 = vmatprep.subr.bf16.mxu0 0
        %1669 = vmatpush1.bf16.msra.mxu0 0
        %1670 = vmatprep.subr.bf16.mxu0 0
        %1671 = vmatpush1.bf16.msra.mxu0 0
        %1672 = vmatprep.subr.bf16.mxu0 0
        %1673 = vmatpush1.bf16.msra.mxu0 0
        %1674 = vmatprep.subr.bf16.mxu0 0
        %1675 = vmatpush1.bf16.msra.mxu0 0
        %1676 = vmatprep.subr.bf16.mxu0 0
        %1677 = vmatpush1.bf16.msra.mxu0 0
        %1678 = vmatprep.subr.bf16.mxu0 0
        %1679 = vmatpush1.bf16.msra.mxu0 0
        %1680 = vmatprep.subr.bf16.mxu0 0
        %1681 = vmatpush1.bf16.msra.mxu0 0
        %1682 = vmatprep.subr.bf16.mxu0 0
        %1683 = vmatpush1.bf16.msra.mxu0 0
        %1684 = vmatprep.subr.bf16.mxu0 0
        %1685 = vmatpush1.bf16.msra.mxu0 0
        %1686 = vmatprep.subr.bf16.mxu0 0
        %1687 = vmatpush1.bf16.msra.mxu0 0
        %1688 = vmatprep.mubr.bf16.mxu0 0
        %1689 = vmatmul.mubr.bf16.gmra.mrb[0].mxu0 %v1651
        %v1690 = vpop.f32.mrb[0].mxu0
        %v1691 = vadd.f32 0.0, %v1690
        %v1692 = vpop.f32.mrb[0].mxu0
        %v1693 = vpop.f32.mrb[0].mxu0
        %v1694 = vpop.f32.mrb[0].mxu0
        %1695 = vdwg.mxu0
        %1697 = vrot.lane.b32.xlu0 %v1691, 24
        %v1698 = vpop.permute.xlu0 %1697
        %1700 = vst.msk [vmem:[#allocation3 + $0x8] sm:$0xff] %vm1243, %v1698
        %v1701 = vld [vmem:[#allocation3] sm:$0xff]
        %v1702 = vld [vmem:[#allocation3 + $0x8] sm:$0xff]
        %v1703 = vpack.c.bf16 %v1702, %v1701
        %v1704 = vld [vmem:[%s623] sm:$0xf]
        %v1705 = vld [vmem:[%s623 + $0x4] sm:$0xf]
        %v1706 = vld [vmem:[%s623 + $0x8] sm:$0xf]
        %v1707 = vld [vmem:[%s623 + $0xc] sm:$0xf]
        %v1708 = vld [vmem:[%s626] sm:$0x1]
        %v1710 = vlaneseq
        %v1711 = vshrl.u32 %v1710, 7
        %v1712 = vsub.s32 0, %v1711
        %v1713 = vrot.slane %v1708, %v1712
        %v1719 = vunpack.c.l.b16 %v1704
        %v1720 = vunpack.c.l.b16 %v1705
        %v1721 = vunpack.c.l.b16 %v1706
        %v1722 = vunpack.c.l.b16 %v1707
        %v1723 = vpack.c.b16 %v1720, %v1719
        %v1724 = vpack.c.b16 %v1722, %v1721
        %v1728 = vsel %vm739, %v1703, 0
        %1730 = vmatprep.subr.bf16.mxu0 0
        %1731 = vmatpush1.bf16.msra.mxu0 %v1723
        %1732 = vmatprep.subr.bf16.mxu0 0
        %1733 = vmatpush1.bf16.msra.mxu0 %v1724
        %1734 = vmatprep.subr.bf16.mxu0 0
        %1735 = vmatpush1.bf16.msra.mxu0 0
        %1736 = vmatprep.subr.bf16.mxu0 0
        %1737 = vmatpush1.bf16.msra.mxu0 0
        %1738 = vmatprep.subr.bf16.mxu0 0
        %1739 = vmatpush1.bf16.msra.mxu0 0
        %1740 = vmatprep.subr.bf16.mxu0 0
        %1741 = vmatpush1.bf16.msra.mxu0 0
        %1742 = vmatprep.subr.bf16.mxu0 0
        %1743 = vmatpush1.bf16.msra.mxu0 0
        %1744 = vmatprep.subr.bf16.mxu0 0
        %1745 = vmatpush1.bf16.msra.mxu0 0
        %1746 = vmatprep.subr.bf16.mxu0 0
        %1747 = vmatpush1.bf16.msra.mxu0 0
        %1748 = vmatprep.subr.bf16.mxu0 0
        %1749 = vmatpush1.bf16.msra.mxu0 0
        %1750 = vmatprep.subr.bf16.mxu0 0
        %1751 = vmatpush1.bf16.msra.mxu0 0
        %1752 = vmatprep.subr.bf16.mxu0 0
        %1753 = vmatpush1.bf16.msra.mxu0 0
        %1754 = vmatprep.subr.bf16.mxu0 0
        %1755 = vmatpush1.bf16.msra.mxu0 0
        %1756 = vmatprep.subr.bf16.mxu0 0
        %1757 = vmatpush1.bf16.msra.mxu0 0
        %1758 = vmatprep.subr.bf16.mxu0 0
        %1759 = vmatpush1.bf16.msra.mxu0 0
        %1760 = vmatprep.subr.bf16.mxu0 0
        %1761 = vmatpush1.bf16.msra.mxu0 0
        %1762 = vmatprep.mubr.bf16.mxu0 0
        %1763 = vmatmul.mubr.bf16.gmra.mrb[0].mxu0 %v1728
        %v1764 = vpop.f32.mrb[0].mxu0
        %v1765 = vadd.f32 %v1713, %v1764
        %v1766 = vpop.f32.mrb[0].mxu0
        %v1767 = vpop.f32.mrb[0].mxu0
        %v1768 = vadd.f32 %v1713, %v1767
        %v1769 = vpop.f32.mrb[0].mxu0
        %1770 = vdwg.mxu0
        %v1771 = vadd.f32 %v713, %v1765
        %v1772 = vadd.f32 %v714, %v1768
        %v1773 = vld [vmem:[%s629] sm:$0x1]
        %v1774 = vld [vmem:[%s632] sm:$0x1]
        %v1775 = vsel %vm739, %v1771, 0.0
        %1776 = vadd.xlane.f32.xlu0 %v1775
        %v1777 = vpop.xlane.xlu0 %1776
        %v1778 = vsel %vm739, %v1772, 0.0
        %1779 = vadd.xlane.f32.xlu0 %v1778
        %v1780 = vpop.xlane.xlu0 %1779
        %v1781 = vrcp.pop 32.0
        %v1782 = vmul.f32 %v1777, %v1781
        %v1783 = vmul.f32 %v1780, %v1781
        %v1784 = vsub.f32 %v1771, %v1782
        %v1785 = vsub.f32 %v1772, %v1783
        %v1786 = vmul.f32 %v1784, %v1784
        %v1787 = vmul.f32 %v1785, %v1785
        %v1788 = vsel %vm739, %v1786, 0.0
        %1789 = vadd.xlane.f32.xlu0 %v1788
        %v1790 = vpop.xlane.xlu0 %1789
        %v1791 = vsel %vm739, %v1787, 0.0
        %1792 = vadd.xlane.f32.xlu0 %v1791
        %v1793 = vpop.xlane.xlu0 %1792
        %v1794 = vmul.f32 %v1790, %v1781
        %v1795 = vmul.f32 %v1793, %v1781
        %v1796 = vadd.f32 %v1794, 1e-05
        %v1797 = vadd.f32 %v1795, 1e-05
        %v1798 = vrsqrt.pop %v1796
        %v1799 = vrsqrt.pop %v1797
        %v1800 = vmul.f32 %v1784, %v1798
        %v1801 = vmul.f32 %v1785, %v1799
        %v1803 = vlaneseq
        %v1804 = vshrl.u32 %v1803, 7
        %v1805 = vsub.s32 0, %v1804
        %v1806 = vrot.slane %v1773, %v1805
        %v1808 = vmul.f32 %v1800, %v1806
        %v1809 = vmul.f32 %v1801, %v1806
        %v1811 = vlaneseq
        %v1812 = vshrl.u32 %v1811, 7
        %v1813 = vsub.s32 0, %v1812
        %v1814 = vrot.slane %v1774, %v1813
        %v1816 = vadd.f32 %v1808, %v1814
        %v1817 = vadd.f32 %v1809, %v1814
        %v1818 = vpack.c.bf16 %v1817, %v1816
        %v1819 = vld [vmem:[%s637] sm:$0xff]
        %v1820 = vld [vmem:[%s637 + $0x8] sm:$0xff]
        %v1821 = vld [vmem:[%s637 + $0x10] sm:$0xff]
        %v1822 = vld [vmem:[%s637 + $0x18] sm:$0xff]
        %v1823 = vld [vmem:[%s637 + $0x20] sm:$0xff]
        %v1824 = vld [vmem:[%s637 + $0x28] sm:$0xff]
        %v1825 = vld [vmem:[%s637 + $0x30] sm:$0xff]
        %v1826 = vld [vmem:[%s637 + $0x38] sm:$0xff]
        %v1827 = vld [vmem:[%s637 + $0x40] sm:$0xff]
        %v1828 = vld [vmem:[%s637 + $0x48] sm:$0xff]
        %v1829 = vld [vmem:[%s637 + $0x50] sm:$0xff]
        %v1830 = vld [vmem:[%s637 + $0x58] sm:$0xff]
        %v1831 = vld [vmem:[%s637 + $0x60] sm:$0xff]
        %v1832 = vld [vmem:[%s637 + $0x68] sm:$0xff]
        %v1833 = vld [vmem:[%s637 + $0x70] sm:$0xff]
        %v1834 = vld [vmem:[%s637 + $0x78] sm:$0xff]
        %v1835 = vld [vmem:[%s637 + $0x80] sm:$0xff]
        %v1836 = vld [vmem:[%s637 + $0x88] sm:$0xff]
        %v1837 = vld [vmem:[%s637 + $0x90] sm:$0xff]
        %v1838 = vld [vmem:[%s637 + $0x98] sm:$0xff]
        %v1839 = vld [vmem:[%s637 + $0xa0] sm:$0xff]
        %v1840 = vld [vmem:[%s637 + $0xa8] sm:$0xff]
        %v1841 = vld [vmem:[%s637 + $0xb0] sm:$0xff]
        %v1842 = vld [vmem:[%s637 + $0xb8] sm:$0xff]
        %v1843 = vld [vmem:[%s637 + $0xc0] sm:$0xff]
        %v1844 = vld [vmem:[%s637 + $0xc8] sm:$0xff]
        %v1845 = vld [vmem:[%s637 + $0xd0] sm:$0xff]
        %v1846 = vld [vmem:[%s637 + $0xd8] sm:$0xff]
        %v1847 = vld [vmem:[%s637 + $0xe0] sm:$0xff]
        %v1848 = vld [vmem:[%s637 + $0xe8] sm:$0xff]
        %v1849 = vld [vmem:[%s637 + $0xf0] sm:$0xff]
        %v1850 = vld [vmem:[%s637 + $0xf8] sm:$0xff]
        %v1851 = vld [vmem:[%s641] sm:$0xff]
        %v1852 = vld [vmem:[%s641 + $0x8] sm:$0xff]
        %v1855 = vlaneseq
        %v1856 = vshrl.u32 %v1855, 7
        %v1857 = vsub.s32 0, %v1856
        %v1858 = vrot.slane %v1851, %v1857
        %v1859 = vlaneseq
        %v1860 = vshrl.u32 %v1859, 7
        %v1861 = vsub.s32 1, %v1860
        %v1862 = vrot.slane %v1851, %v1861
        %v1863 = vlaneseq
        %v1864 = vshrl.u32 %v1863, 7
        %v1865 = vsub.s32 2, %v1864
        %v1866 = vrot.slane %v1851, %v1865
        %v1867 = vlaneseq
        %v1868 = vshrl.u32 %v1867, 7
        %v1869 = vsub.s32 3, %v1868
        %v1870 = vrot.slane %v1851, %v1869
        %v1871 = vlaneseq
        %v1872 = vshrl.u32 %v1871, 7
        %v1873 = vsub.s32 4, %v1872
        %v1874 = vrot.slane %v1851, %v1873
        %v1875 = vlaneseq
        %v1876 = vshrl.u32 %v1875, 7
        %v1877 = vsub.s32 5, %v1876
        %v1878 = vrot.slane %v1851, %v1877
        %v1879 = vlaneseq
        %v1880 = vshrl.u32 %v1879, 7
        %v1881 = vsub.s32 6, %v1880
        %v1882 = vrot.slane %v1851, %v1881
        %v1883 = vlaneseq
        %v1884 = vshrl.u32 %v1883, 7
        %v1885 = vsub.s32 7, %v1884
        %v1886 = vrot.slane %v1851, %v1885
        %v1887 = vlaneseq
        %v1888 = vshrl.u32 %v1887, 7
        %v1889 = vsub.s32 0, %v1888
        %v1890 = vrot.slane %v1852, %v1889
        %v1891 = vlaneseq
        %v1892 = vshrl.u32 %v1891, 7
        %v1893 = vsub.s32 1, %v1892
        %v1894 = vrot.slane %v1852, %v1893
        %v1895 = vlaneseq
        %v1896 = vshrl.u32 %v1895, 7
        %v1897 = vsub.s32 2, %v1896
        %v1898 = vrot.slane %v1852, %v1897
        %v1899 = vlaneseq
        %v1900 = vshrl.u32 %v1899, 7
        %v1901 = vsub.s32 3, %v1900
        %v1902 = vrot.slane %v1852, %v1901
        %v1903 = vlaneseq
        %v1904 = vshrl.u32 %v1903, 7
        %v1905 = vsub.s32 4, %v1904
        %v1906 = vrot.slane %v1852, %v1905
        %v1907 = vlaneseq
        %v1908 = vshrl.u32 %v1907, 7
        %v1909 = vsub.s32 5, %v1908
        %v1910 = vrot.slane %v1852, %v1909
        %v1911 = vlaneseq
        %v1912 = vshrl.u32 %v1911, 7
        %v1913 = vsub.s32 6, %v1912
        %v1914 = vrot.slane %v1852, %v1913
        %v1915 = vlaneseq
        %v1916 = vshrl.u32 %v1915, 7
        %v1917 = vsub.s32 7, %v1916
        %v1918 = vrot.slane %v1852, %v1917
        %v1967 = vunpack.c.l.b16 %v1819
        %v1968 = vunpack.c.h.b16 %v1819
        %v1969 = vunpack.c.l.b16 %v1820
        %v1970 = vunpack.c.h.b16 %v1820
        %v1971 = vunpack.c.l.b16 %v1821
        %v1972 = vunpack.c.h.b16 %v1821
        %v1973 = vunpack.c.l.b16 %v1822
        %v1974 = vunpack.c.h.b16 %v1822
        %v1975 = vunpack.c.l.b16 %v1823
        %v1976 = vunpack.c.h.b16 %v1823
        %v1977 = vunpack.c.l.b16 %v1824
        %v1978 = vunpack.c.h.b16 %v1824
        %v1979 = vunpack.c.l.b16 %v1825
        %v1980 = vunpack.c.h.b16 %v1825
        %v1981 = vunpack.c.l.b16 %v1826
        %v1982 = vunpack.c.h.b16 %v1826
        %v1983 = vunpack.c.l.b16 %v1827
        %v1984 = vunpack.c.h.b16 %v1827
        %v1985 = vunpack.c.l.b16 %v1828
        %v1986 = vunpack.c.h.b16 %v1828
        %v1987 = vunpack.c.l.b16 %v1829
        %v1988 = vunpack.c.h.b16 %v1829
        %v1989 = vunpack.c.l.b16 %v1830
        %v1990 = vunpack.c.h.b16 %v1830
        %v1991 = vunpack.c.l.b16 %v1831
        %v1992 = vunpack.c.h.b16 %v1831
        %v1993 = vunpack.c.l.b16 %v1832
        %v1994 = vunpack.c.h.b16 %v1832
        %v1995 = vunpack.c.l.b16 %v1833
        %v1996 = vunpack.c.h.b16 %v1833
        %v1997 = vunpack.c.l.b16 %v1834
        %v1998 = vunpack.c.h.b16 %v1834
        %v1999 = vunpack.c.l.b16 %v1835
        %v2000 = vunpack.c.h.b16 %v1835
        %v2001 = vunpack.c.l.b16 %v1836
        %v2002 = vunpack.c.h.b16 %v1836
        %v2003 = vunpack.c.l.b16 %v1837
        %v2004 = vunpack.c.h.b16 %v1837
        %v2005 = vunpack.c.l.b16 %v1838
        %v2006 = vunpack.c.h.b16 %v1838
        %v2007 = vunpack.c.l.b16 %v1839
        %v2008 = vunpack.c.h.b16 %v1839
        %v2009 = vunpack.c.l.b16 %v1840
        %v2010 = vunpack.c.h.b16 %v1840
        %v2011 = vunpack.c.l.b16 %v1841
        %v2012 = vunpack.c.h.b16 %v1841
        %v2013 = vunpack.c.l.b16 %v1842
        %v2014 = vunpack.c.h.b16 %v1842
        %v2015 = vunpack.c.l.b16 %v1843
        %v2016 = vunpack.c.h.b16 %v1843
        %v2017 = vunpack.c.l.b16 %v1844
        %v2018 = vunpack.c.h.b16 %v1844
        %v2019 = vunpack.c.l.b16 %v1845
        %v2020 = vunpack.c.h.b16 %v1845
        %v2021 = vunpack.c.l.b16 %v1846
        %v2022 = vunpack.c.h.b16 %v1846
        %v2023 = vunpack.c.l.b16 %v1847
        %v2024 = vunpack.c.h.b16 %v1847
        %v2025 = vunpack.c.l.b16 %v1848
        %v2026 = vunpack.c.h.b16 %v1848
        %v2027 = vunpack.c.l.b16 %v1849
        %v2028 = vunpack.c.h.b16 %v1849
        %v2029 = vunpack.c.l.b16 %v1850
        %v2030 = vunpack.c.h.b16 %v1850
        %v2031 = vpack.c.b16 %v1983, %v1967
        %v2032 = vpack.c.b16 %v1984, %v1968
        %v2033 = vpack.c.b16 %v1985, %v1969
        %v2034 = vpack.c.b16 %v1986, %v1970
        %v2035 = vpack.c.b16 %v1987, %v1971
        %v2036 = vpack.c.b16 %v1988, %v1972
        %v2037 = vpack.c.b16 %v1989, %v1973
        %v2038 = vpack.c.b16 %v1990, %v1974
        %v2039 = vpack.c.b16 %v1991, %v1975
        %v2040 = vpack.c.b16 %v1992, %v1976
        %v2041 = vpack.c.b16 %v1993, %v1977
        %v2042 = vpack.c.b16 %v1994, %v1978
        %v2043 = vpack.c.b16 %v1995, %v1979
        %v2044 = vpack.c.b16 %v1996, %v1980
        %v2045 = vpack.c.b16 %v1997, %v1981
        %v2046 = vpack.c.b16 %v1998, %v1982
        %v2047 = vpack.c.b16 %v2015, %v1999
        %v2048 = vpack.c.b16 %v2016, %v2000
        %v2049 = vpack.c.b16 %v2017, %v2001
        %v2050 = vpack.c.b16 %v2018, %v2002
        %v2051 = vpack.c.b16 %v2019, %v2003
        %v2052 = vpack.c.b16 %v2020, %v2004
        %v2053 = vpack.c.b16 %v2021, %v2005
        %v2054 = vpack.c.b16 %v2022, %v2006
        %v2055 = vpack.c.b16 %v2023, %v2007
        %v2056 = vpack.c.b16 %v2024, %v2008
        %v2057 = vpack.c.b16 %v2025, %v2009
        %v2058 = vpack.c.b16 %v2026, %v2010
        %v2059 = vpack.c.b16 %v2027, %v2011
        %v2060 = vpack.c.b16 %v2028, %v2012
        %v2061 = vpack.c.b16 %v2029, %v2013
        %v2062 = vpack.c.b16 %v2030, %v2014
        %v2096 = vsel %vm739, %v1818, 0
        %2098 = vmatprep.subr.bf16.mxu0 %v2032
        %2099 = vmatpush1.bf16.msra.mxu0 %v2031
        %2100 = vmatprep.subr.bf16.mxu0 %v2048
        %2101 = vmatpush1.bf16.msra.mxu0 %v2047
        %2102 = vmatprep.subr.bf16.mxu0 0
        %2103 = vmatpush1.bf16.msra.mxu0 0
        %2104 = vmatprep.subr.bf16.mxu0 0
        %2105 = vmatpush1.bf16.msra.mxu0 0
        %2106 = vmatprep.subr.bf16.mxu0 0
        %2107 = vmatpush1.bf16.msra.mxu0 0
        %2108 = vmatprep.subr.bf16.mxu0 0
        %2109 = vmatpush1.bf16.msra.mxu0 0
        %2110 = vmatprep.subr.bf16.mxu0 0
        %2111 = vmatpush1.bf16.msra.mxu0 0
        %2112 = vmatprep.subr.bf16.mxu0 0
        %2113 = vmatpush1.bf16.msra.mxu0 0
        %2114 = vmatprep.subr.bf16.mxu0 0
        %2115 = vmatpush1.bf16.msra.mxu0 0
        %2116 = vmatprep.subr.bf16.mxu0 0
        %2117 = vmatpush1.bf16.msra.mxu0 0
        %2118 = vmatprep.subr.bf16.mxu0 0
        %2119 = vmatpush1.bf16.msra.mxu0 0
        %2120 = vmatprep.subr.bf16.mxu0 0
        %2121 = vmatpush1.bf16.msra.mxu0 0
        %2122 = vmatprep.subr.bf16.mxu0 0
        %2123 = vmatpush1.bf16.msra.mxu0 0
        %2124 = vmatprep.subr.bf16.mxu0 0
        %2125 = vmatpush1.bf16.msra.mxu0 0
        %2126 = vmatprep.subr.bf16.mxu0 0
        %2127 = vmatpush1.bf16.msra.mxu0 0
        %2128 = vmatprep.subr.bf16.mxu0 0
        %2129 = vmatpush1.bf16.msra.mxu0 0
        %2130 = vmatprep.mubr.bf16.mxu0 0
        %2131 = vmatmul.mubr.bf16.gmra.mrb[0].mxu0 %v2096
        %v2132 = vpop.f32.mrb[0].mxu0
        %v2133 = vadd.f32 %v1858, %v2132
        %v2134 = vpop.f32.mrb[0].mxu0
        %v2135 = vadd.f32 %v1862, %v2134
        %v2136 = vpop.f32.mrb[0].mxu0
        %v2137 = vadd.f32 %v1858, %v2136
        %v2138 = vpop.f32.mrb[0].mxu0
        %v2139 = vadd.f32 %v1862, %v2138
        %2140 = vdwg.mxu0
        %2141 = vmatprep.subr.bf16.mxu0 %v2034
        %2142 = vmatpush1.bf16.msra.mxu0 %v2033
        %2143 = vmatprep.subr.bf16.mxu0 %v2050
        %2144 = vmatpush1.bf16.msra.mxu0 %v2049
        %2145 = vmatprep.subr.bf16.mxu0 0
        %2146 = vmatpush1.bf16.msra.mxu0 0
        %2147 = vmatprep.subr.bf16.mxu0 0
        %2148 = vmatpush1.bf16.msra.mxu0 0
        %2149 = vmatprep.subr.bf16.mxu0 0
        %2150 = vmatpush1.bf16.msra.mxu0 0
        %2151 = vmatprep.subr.bf16.mxu0 0
        %2152 = vmatpush1.bf16.msra.mxu0 0
        %2153 = vmatprep.subr.bf16.mxu0 0
        %2154 = vmatpush1.bf16.msra.mxu0 0
        %2155 = vmatprep.subr.bf16.mxu0 0
        %2156 = vmatpush1.bf16.msra.mxu0 0
        %2157 = vmatprep.subr.bf16.mxu0 0
        %2158 = vmatpush1.bf16.msra.mxu0 0
        %2159 = vmatprep.subr.bf16.mxu0 0
        %2160 = vmatpush1.bf16.msra.mxu0 0
        %2161 = vmatprep.subr.bf16.mxu0 0
        %2162 = vmatpush1.bf16.msra.mxu0 0
        %2163 = vmatprep.subr.bf16.mxu0 0
        %2164 = vmatpush1.bf16.msra.mxu0 0
        %2165 = vmatprep.subr.bf16.mxu0 0
        %2166 = vmatpush1.bf16.msra.mxu0 0
        %2167 = vmatprep.subr.bf16.mxu0 0
        %2168 = vmatpush1.bf16.msra.mxu0 0
        %2169 = vmatprep.subr.bf16.mxu0 0
        %2170 = vmatpush1.bf16.msra.mxu0 0
        %2171 = vmatprep.subr.bf16.mxu0 0
        %2172 = vmatpush1.bf16.msra.mxu0 0
        %2173 = vmatprep.mubr.bf16.mxu0 0
        %2174 = vmatmul.mubr.bf16.gmra.mrb[0].mxu0 %v2096
        %v2175 = vpop.f32.mrb[0].mxu0
        %v2176 = vadd.f32 %v1866, %v2175
        %v2177 = vpop.f32.mrb[0].mxu0
        %v2178 = vadd.f32 %v1870, %v2177
        %v2179 = vpop.f32.mrb[0].mxu0
        %v2180 = vadd.f32 %v1866, %v2179
        %v2181 = vpop.f32.mrb[0].mxu0
        %v2182 = vadd.f32 %v1870, %v2181
        %2183 = vdwg.mxu0
        %2184 = vmatprep.subr.bf16.mxu0 %v2036
        %2185 = vmatpush1.bf16.msra.mxu0 %v2035
        %2186 = vmatprep.subr.bf16.mxu0 %v2052
        %2187 = vmatpush1.bf16.msra.mxu0 %v2051
        %2188 = vmatprep.subr.bf16.mxu0 0
        %2189 = vmatpush1.bf16.msra.mxu0 0
        %2190 = vmatprep.subr.bf16.mxu0 0
        %2191 = vmatpush1.bf16.msra.mxu0 0
        %2192 = vmatprep.subr.bf16.mxu0 0
        %2193 = vmatpush1.bf16.msra.mxu0 0
        %2194 = vmatprep.subr.bf16.mxu0 0
        %2195 = vmatpush1.bf16.msra.mxu0 0
        %2196 = vmatprep.subr.bf16.mxu0 0
        %2197 = vmatpush1.bf16.msra.mxu0 0
        %2198 = vmatprep.subr.bf16.mxu0 0
        %2199 = vmatpush1.bf16.msra.mxu0 0
        %2200 = vmatprep.subr.bf16.mxu0 0
        %2201 = vmatpush1.bf16.msra.mxu0 0
        %2202 = vmatprep.subr.bf16.mxu0 0
        %2203 = vmatpush1.bf16.msra.mxu0 0
        %2204 = vmatprep.subr.bf16.mxu0 0
        %2205 = vmatpush1.bf16.msra.mxu0 0
        %2206 = vmatprep.subr.bf16.mxu0 0
        %2207 = vmatpush1.bf16.msra.mxu0 0
        %2208 = vmatprep.subr.bf16.mxu0 0
        %2209 = vmatpush1.bf16.msra.mxu0 0
        %2210 = vmatprep.subr.bf16.mxu0 0
        %2211 = vmatpush1.bf16.msra.mxu0 0
        %2212 = vmatprep.subr.bf16.mxu0 0
        %2213 = vmatpush1.bf16.msra.mxu0 0
        %2214 = vmatprep.subr.bf16.mxu0 0
        %2215 = vmatpush1.bf16.msra.mxu0 0
        %2216 = vmatprep.mubr.bf16.mxu0 0
        %2217 = vmatmul.mubr.bf16.gmra.mrb[0].mxu0 %v2096
        %v2218 = vpop.f32.mrb[0].mxu0
        %v2219 = vadd.f32 %v1874, %v2218
        %v2220 = vpop.f32.mrb[0].mxu0
        %v2221 = vadd.f32 %v1878, %v2220
        %v2222 = vpop.f32.mrb[0].mxu0
        %v2223 = vadd.f32 %v1874, %v2222
        %v2224 = vpop.f32.mrb[0].mxu0
        %v2225 = vadd.f32 %v1878, %v2224
        %2226 = vdwg.mxu0
        %2227 = vmatprep.subr.bf16.mxu0 %v2038
        %2228 = vmatpush1.bf16.msra.mxu0 %v2037
        %2229 = vmatprep.subr.bf16.mxu0 %v2054
        %2230 = vmatpush1.bf16.msra.mxu0 %v2053
        %2231 = vmatprep.subr.bf16.mxu0 0
        %2232 = vmatpush1.bf16.msra.mxu0 0
        %2233 = vmatprep.subr.bf16.mxu0 0
        %2234 = vmatpush1.bf16.msra.mxu0 0
        %2235 = vmatprep.subr.bf16.mxu0 0
        %2236 = vmatpush1.bf16.msra.mxu0 0
        %2237 = vmatprep.subr.bf16.mxu0 0
        %2238 = vmatpush1.bf16.msra.mxu0 0
        %2239 = vmatprep.subr.bf16.mxu0 0
        %2240 = vmatpush1.bf16.msra.mxu0 0
        %2241 = vmatprep.subr.bf16.mxu0 0
        %2242 = vmatpush1.bf16.msra.mxu0 0
        %2243 = vmatprep.subr.bf16.mxu0 0
        %2244 = vmatpush1.bf16.msra.mxu0 0
        %2245 = vmatprep.subr.bf16.mxu0 0
        %2246 = vmatpush1.bf16.msra.mxu0 0
        %2247 = vmatprep.subr.bf16.mxu0 0
        %2248 = vmatpush1.bf16.msra.mxu0 0
        %2249 = vmatprep.subr.bf16.mxu0 0
        %2250 = vmatpush1.bf16.msra.mxu0 0
        %2251 = vmatprep.subr.bf16.mxu0 0
        %2252 = vmatpush1.bf16.msra.mxu0 0
        %2253 = vmatprep.subr.bf16.mxu0 0
        %2254 = vmatpush1.bf16.msra.mxu0 0
        %2255 = vmatprep.subr.bf16.mxu0 0
        %2256 = vmatpush1.bf16.msra.mxu0 0
        %2257 = vmatprep.subr.bf16.mxu0 0
        %2258 = vmatpush1.bf16.msra.mxu0 0
        %2259 = vmatprep.mubr.bf16.mxu0 0
        %2260 = vmatmul.mubr.bf16.gmra.mrb[0].mxu0 %v2096
        %v2261 = vpop.f32.mrb[0].mxu0
        %v2262 = vadd.f32 %v1882, %v2261
        %v2263 = vpop.f32.mrb[0].mxu0
        %v2264 = vadd.f32 %v1886, %v2263
        %v2265 = vpop.f32.mrb[0].mxu0
        %v2266 = vadd.f32 %v1882, %v2265
        %v2267 = vpop.f32.mrb[0].mxu0
        %v2268 = vadd.f32 %v1886, %v2267
        %2269 = vdwg.mxu0
        %2270 = vmatprep.subr.bf16.mxu0 %v2040
        %2271 = vmatpush1.bf16.msra.mxu0 %v2039
        %2272 = vmatprep.subr.bf16.mxu0 %v2056
        %2273 = vmatpush1.bf16.msra.mxu0 %v2055
        %2274 = vmatprep.subr.bf16.mxu0 0
        %2275 = vmatpush1.bf16.msra.mxu0 0
        %2276 = vmatprep.subr.bf16.mxu0 0
        %2277 = vmatpush1.bf16.msra.mxu0 0
        %2278 = vmatprep.subr.bf16.mxu0 0
        %2279 = vmatpush1.bf16.msra.mxu0 0
        %2280 = vmatprep.subr.bf16.mxu0 0
        %2281 = vmatpush1.bf16.msra.mxu0 0
        %2282 = vmatprep.subr.bf16.mxu0 0
        %2283 = vmatpush1.bf16.msra.mxu0 0
        %2284 = vmatprep.subr.bf16.mxu0 0
        %2285 = vmatpush1.bf16.msra.mxu0 0
        %2286 = vmatprep.subr.bf16.mxu0 0
        %2287 = vmatpush1.bf16.msra.mxu0 0
        %2288 = vmatprep.subr.bf16.mxu0 0
        %2289 = vmatpush1.bf16.msra.mxu0 0
        %2290 = vmatprep.subr.bf16.mxu0 0
        %2291 = vmatpush1.bf16.msra.mxu0 0
        %2292 = vmatprep.subr.bf16.mxu0 0
        %2293 = vmatpush1.bf16.msra.mxu0 0
        %2294 = vmatprep.subr.bf16.mxu0 0
        %2295 = vmatpush1.bf16.msra.mxu0 0
        %2296 = vmatprep.subr.bf16.mxu0 0
        %2297 = vmatpush1.bf16.msra.mxu0 0
        %2298 = vmatprep.subr.bf16.mxu0 0
        %2299 = vmatpush1.bf16.msra.mxu0 0
        %2300 = vmatprep.subr.bf16.mxu0 0
        %2301 = vmatpush1.bf16.msra.mxu0 0
        %2302 = vmatprep.mubr.bf16.mxu0 0
        %2303 = vmatmul.mubr.bf16.gmra.mrb[0].mxu0 %v2096
        %v2304 = vpop.f32.mrb[0].mxu0
        %v2305 = vadd.f32 %v1890, %v2304
        %v2306 = vpop.f32.mrb[0].mxu0
        %v2307 = vadd.f32 %v1894, %v2306
        %v2308 = vpop.f32.mrb[0].mxu0
        %v2309 = vadd.f32 %v1890, %v2308
        %v2310 = vpop.f32.mrb[0].mxu0
        %v2311 = vadd.f32 %v1894, %v2310
        %2312 = vdwg.mxu0
        %2313 = vmatprep.subr.bf16.mxu0 %v2042
        %2314 = vmatpush1.bf16.msra.mxu0 %v2041
        %2315 = vmatprep.subr.bf16.mxu0 %v2058
        %2316 = vmatpush1.bf16.msra.mxu0 %v2057
        %2317 = vmatprep.subr.bf16.mxu0 0
        %2318 = vmatpush1.bf16.msra.mxu0 0
        %2319 = vmatprep.subr.bf16.mxu0 0
        %2320 = vmatpush1.bf16.msra.mxu0 0
        %2321 = vmatprep.subr.bf16.mxu0 0
        %2322 = vmatpush1.bf16.msra.mxu0 0
        %2323 = vmatprep.subr.bf16.mxu0 0
        %2324 = vmatpush1.bf16.msra.mxu0 0
        %2325 = vmatprep.subr.bf16.mxu0 0
        %2326 = vmatpush1.bf16.msra.mxu0 0
        %2327 = vmatprep.subr.bf16.mxu0 0
        %2328 = vmatpush1.bf16.msra.mxu0 0
        %2329 = vmatprep.subr.bf16.mxu0 0
        %2330 = vmatpush1.bf16.msra.mxu0 0
        %2331 = vmatprep.subr.bf16.mxu0 0
        %2332 = vmatpush1.bf16.msra.mxu0 0
        %2333 = vmatprep.subr.bf16.mxu0 0
        %2334 = vmatpush1.bf16.msra.mxu0 0
        %2335 = vmatprep.subr.bf16.mxu0 0
        %2336 = vmatpush1.bf16.msra.mxu0 0
        %2337 = vmatprep.subr.bf16.mxu0 0
        %2338 = vmatpush1.bf16.msra.mxu0 0
        %2339 = vmatprep.subr.bf16.mxu0 0
        %2340 = vmatpush1.bf16.msra.mxu0 0
        %2341 = vmatprep.subr.bf16.mxu0 0
        %2342 = vmatpush1.bf16.msra.mxu0 0
        %2343 = vmatprep.subr.bf16.mxu0 0
        %2344 = vmatpush1.bf16.msra.mxu0 0
        %2345 = vmatprep.mubr.bf16.mxu0 0
        %2346 = vmatmul.mubr.bf16.gmra.mrb[0].mxu0 %v2096
        %v2347 = vpop.f32.mrb[0].mxu0
        %v2348 = vadd.f32 %v1898, %v2347
        %v2349 = vpop.f32.mrb[0].mxu0
        %v2350 = vadd.f32 %v1902, %v2349
        %v2351 = vpop.f32.mrb[0].mxu0
        %v2352 = vadd.f32 %v1898, %v2351
        %v2353 = vpop.f32.mrb[0].mxu0
        %v2354 = vadd.f32 %v1902, %v2353
        %2355 = vdwg.mxu0
        %2356 = vmatprep.subr.bf16.mxu0 %v2044
        %2357 = vmatpush1.bf16.msra.mxu0 %v2043
        %2358 = vmatprep.subr.bf16.mxu0 %v2060
        %2359 = vmatpush1.bf16.msra.mxu0 %v2059
        %2360 = vmatprep.subr.bf16.mxu0 0
        %2361 = vmatpush1.bf16.msra.mxu0 0
        %2362 = vmatprep.subr.bf16.mxu0 0
        %2363 = vmatpush1.bf16.msra.mxu0 0
        %2364 = vmatprep.subr.bf16.mxu0 0
        %2365 = vmatpush1.bf16.msra.mxu0 0
        %2366 = vmatprep.subr.bf16.mxu0 0
        %2367 = vmatpush1.bf16.msra.mxu0 0
        %2368 = vmatprep.subr.bf16.mxu0 0
        %2369 = vmatpush1.bf16.msra.mxu0 0
        %2370 = vmatprep.subr.bf16.mxu0 0
        %2371 = vmatpush1.bf16.msra.mxu0 0
        %2372 = vmatprep.subr.bf16.mxu0 0
        %2373 = vmatpush1.bf16.msra.mxu0 0
        %2374 = vmatprep.subr.bf16.mxu0 0
        %2375 = vmatpush1.bf16.msra.mxu0 0
        %2376 = vmatprep.subr.bf16.mxu0 0
        %2377 = vmatpush1.bf16.msra.mxu0 0
        %2378 = vmatprep.subr.bf16.mxu0 0
        %2379 = vmatpush1.bf16.msra.mxu0 0
        %2380 = vmatprep.subr.bf16.mxu0 0
        %2381 = vmatpush1.bf16.msra.mxu0 0
        %2382 = vmatprep.subr.bf16.mxu0 0
        %2383 = vmatpush1.bf16.msra.mxu0 0
        %2384 = vmatprep.subr.bf16.mxu0 0
        %2385 = vmatpush1.bf16.msra.mxu0 0
        %2386 = vmatprep.subr.bf16.mxu0 0
        %2387 = vmatpush1.bf16.msra.mxu0 0
        %2388 = vmatprep.mubr.bf16.mxu0 0
        %2389 = vmatmul.mubr.bf16.gmra.mrb[0].mxu0 %v2096
        %v2390 = vpop.f32.mrb[0].mxu0
        %v2391 = vadd.f32 %v1906, %v2390
        %v2392 = vpop.f32.mrb[0].mxu0
        %v2393 = vadd.f32 %v1910, %v2392
        %v2394 = vpop.f32.mrb[0].mxu0
        %v2395 = vadd.f32 %v1906, %v2394
        %v2396 = vpop.f32.mrb[0].mxu0
        %v2397 = vadd.f32 %v1910, %v2396
        %2398 = vdwg.mxu0
        %2399 = vmatprep.subr.bf16.mxu0 %v2046
        %2400 = vmatpush1.bf16.msra.mxu0 %v2045
        %2401 = vmatprep.subr.bf16.mxu0 %v2062
        %2402 = vmatpush1.bf16.msra.mxu0 %v2061
        %2403 = vmatprep.subr.bf16.mxu0 0
        %2404 = vmatpush1.bf16.msra.mxu0 0
        %2405 = vmatprep.subr.bf16.mxu0 0
        %2406 = vmatpush1.bf16.msra.mxu0 0
        %2407 = vmatprep.subr.bf16.mxu0 0
        %2408 = vmatpush1.bf16.msra.mxu0 0
        %2409 = vmatprep.subr.bf16.mxu0 0
        %2410 = vmatpush1.bf16.msra.mxu0 0
        %2411 = vmatprep.subr.bf16.mxu0 0
        %2412 = vmatpush1.bf16.msra.mxu0 0
        %2413 = vmatprep.subr.bf16.mxu0 0
        %2414 = vmatpush1.bf16.msra.mxu0 0
        %2415 = vmatprep.subr.bf16.mxu0 0
        %2416 = vmatpush1.bf16.msra.mxu0 0
        %2417 = vmatprep.subr.bf16.mxu0 0
        %2418 = vmatpush1.bf16.msra.mxu0 0
        %2419 = vmatprep.subr.bf16.mxu0 0
        %2420 = vmatpush1.bf16.msra.mxu0 0
        %2421 = vmatprep.subr.bf16.mxu0 0
        %2422 = vmatpush1.bf16.msra.mxu0 0
        %2423 = vmatprep.subr.bf16.mxu0 0
        %2424 = vmatpush1.bf16.msra.mxu0 0
        %2425 = vmatprep.subr.bf16.mxu0 0
        %2426 = vmatpush1.bf16.msra.mxu0 0
        %2427 = vmatprep.subr.bf16.mxu0 0
        %2428 = vmatpush1.bf16.msra.mxu0 0
        %2429 = vmatprep.subr.bf16.mxu0 0
        %2430 = vmatpush1.bf16.msra.mxu0 0
        %2431 = vmatprep.mubr.bf16.mxu0 0
        %2432 = vmatmul.mubr.bf16.gmra.mrb[0].mxu0 %v2096
        %v2433 = vpop.f32.mrb[0].mxu0
        %v2434 = vadd.f32 %v1914, %v2433
        %v2435 = vpop.f32.mrb[0].mxu0
        %v2436 = vadd.f32 %v1918, %v2435
        %v2437 = vpop.f32.mrb[0].mxu0
        %v2438 = vadd.f32 %v1914, %v2437
        %v2439 = vpop.f32.mrb[0].mxu0
        %v2440 = vadd.f32 %v1918, %v2439
        %2441 = vdwg.mxu0
        %v2442 = vmax.f32 %v2133, 0.0
        %v2443 = vmax.f32 %v2135, 0.0
        %v2444 = vmax.f32 %v2176, 0.0
        %v2445 = vmax.f32 %v2178, 0.0
        %v2446 = vmax.f32 %v2219, 0.0
        %v2447 = vmax.f32 %v2221, 0.0
        %v2448 = vmax.f32 %v2262, 0.0
        %v2449 = vmax.f32 %v2264, 0.0
        %v2450 = vmax.f32 %v2305, 0.0
        %v2451 = vmax.f32 %v2307, 0.0
        %v2452 = vmax.f32 %v2348, 0.0
        %v2453 = vmax.f32 %v2350, 0.0
        %v2454 = vmax.f32 %v2391, 0.0
        %v2455 = vmax.f32 %v2393, 0.0
        %v2456 = vmax.f32 %v2434, 0.0
        %v2457 = vmax.f32 %v2436, 0.0
        %v2458 = vmax.f32 %v2137, 0.0
        %v2459 = vmax.f32 %v2139, 0.0
        %v2460 = vmax.f32 %v2180, 0.0
        %v2461 = vmax.f32 %v2182, 0.0
        %v2462 = vmax.f32 %v2223, 0.0
        %v2463 = vmax.f32 %v2225, 0.0
        %v2464 = vmax.f32 %v2266, 0.0
        %v2465 = vmax.f32 %v2268, 0.0
        %v2466 = vmax.f32 %v2309, 0.0
        %v2467 = vmax.f32 %v2311, 0.0
        %v2468 = vmax.f32 %v2352, 0.0
        %v2469 = vmax.f32 %v2354, 0.0
        %v2470 = vmax.f32 %v2395, 0.0
        %v2471 = vmax.f32 %v2397, 0.0
        %v2472 = vmax.f32 %v2438, 0.0
        %v2473 = vmax.f32 %v2440, 0.0
        %v2474 = vpack.c.bf16 %v2458, %v2442
        %v2475 = vpack.c.bf16 %v2459, %v2443
        %v2476 = vpack.c.bf16 %v2460, %v2444
        %v2477 = vpack.c.bf16 %v2461, %v2445
        %v2478 = vpack.c.bf16 %v2462, %v2446
        %v2479 = vpack.c.bf16 %v2463, %v2447
        %v2480 = vpack.c.bf16 %v2464, %v2448
        %v2481 = vpack.c.bf16 %v2465, %v2449
        %v2482 = vpack.c.bf16 %v2466, %v2450
        %v2483 = vpack.c.bf16 %v2467, %v2451
        %v2484 = vpack.c.bf16 %v2468, %v2452
        %v2485 = vpack.c.bf16 %v2469, %v2453
        %v2486 = vpack.c.bf16 %v2470, %v2454
        %v2487 = vpack.c.bf16 %v2471, %v2455
        %v2488 = vpack.c.bf16 %v2472, %v2456
        %v2489 = vpack.c.bf16 %v2473, %v2457
        %v2490 = vld [vmem:[%s646] sm:$0xf]
        %v2491 = vld [vmem:[%s646 + $0x4] sm:$0xf]
        %v2492 = vld [vmem:[%s646 + $0x8] sm:$0xf]
        %v2493 = vld [vmem:[%s646 + $0xc] sm:$0xf]
        %v2494 = vld [vmem:[%s646 + $0x10] sm:$0xf]
        %v2495 = vld [vmem:[%s646 + $0x14] sm:$0xf]
        %v2496 = vld [vmem:[%s646 + $0x18] sm:$0xf]
        %v2497 = vld [vmem:[%s646 + $0x1c] sm:$0xf]
        %v2498 = vld [vmem:[%s646 + $0x20] sm:$0xf]
        %v2499 = vld [vmem:[%s646 + $0x24] sm:$0xf]
        %v2500 = vld [vmem:[%s646 + $0x28] sm:$0xf]
        %v2501 = vld [vmem:[%s646 + $0x2c] sm:$0xf]
        %v2502 = vld [vmem:[%s646 + $0x30] sm:$0xf]
        %v2503 = vld [vmem:[%s646 + $0x34] sm:$0xf]
        %v2504 = vld [vmem:[%s646 + $0x38] sm:$0xf]
        %v2505 = vld [vmem:[%s646 + $0x3c] sm:$0xf]
        %v2506 = vld [vmem:[%s646 + $0x40] sm:$0xf]
        %v2507 = vld [vmem:[%s646 + $0x44] sm:$0xf]
        %v2508 = vld [vmem:[%s646 + $0x48] sm:$0xf]
        %v2509 = vld [vmem:[%s646 + $0x4c] sm:$0xf]
        %v2510 = vld [vmem:[%s646 + $0x50] sm:$0xf]
        %v2511 = vld [vmem:[%s646 + $0x54] sm:$0xf]
        %v2512 = vld [vmem:[%s646 + $0x58] sm:$0xf]
        %v2513 = vld [vmem:[%s646 + $0x5c] sm:$0xf]
        %v2514 = vld [vmem:[%s646 + $0x60] sm:$0xf]
        %v2515 = vld [vmem:[%s646 + $0x64] sm:$0xf]
        %v2516 = vld [vmem:[%s646 + $0x68] sm:$0xf]
        %v2517 = vld [vmem:[%s646 + $0x6c] sm:$0xf]
        %v2518 = vld [vmem:[%s646 + $0x70] sm:$0xf]
        %v2519 = vld [vmem:[%s646 + $0x74] sm:$0xf]
        %v2520 = vld [vmem:[%s646 + $0x78] sm:$0xf]
        %v2521 = vld [vmem:[%s646 + $0x7c] sm:$0xf]
        %v2522 = vld [vmem:[%s646 + $0x80] sm:$0xf]
        %v2523 = vld [vmem:[%s646 + $0x84] sm:$0xf]
        %v2524 = vld [vmem:[%s646 + $0x88] sm:$0xf]
        %v2525 = vld [vmem:[%s646 + $0x8c] sm:$0xf]
        %v2526 = vld [vmem:[%s646 + $0x90] sm:$0xf]
        %v2527 = vld [vmem:[%s646 + $0x94] sm:$0xf]
        %v2528 = vld [vmem:[%s646 + $0x98] sm:$0xf]
        %v2529 = vld [vmem:[%s646 + $0x9c] sm:$0xf]
        %v2530 = vld [vmem:[%s646 + $0xa0] sm:$0xf]
        %v2531 = vld [vmem:[%s646 + $0xa4] sm:$0xf]
        %v2532 = vld [vmem:[%s646 + $0xa8] sm:$0xf]
        %v2533 = vld [vmem:[%s646 + $0xac] sm:$0xf]
        %v2534 = vld [vmem:[%s646 + $0xb0] sm:$0xf]
        %v2535 = vld [vmem:[%s646 + $0xb4] sm:$0xf]
        %v2536 = vld [vmem:[%s646 + $0xb8] sm:$0xf]
        %v2537 = vld [vmem:[%s646 + $0xbc] sm:$0xf]
        %v2538 = vld [vmem:[%s646 + $0xc0] sm:$0xf]
        %v2539 = vld [vmem:[%s646 + $0xc4] sm:$0xf]
        %v2540 = vld [vmem:[%s646 + $0xc8] sm:$0xf]
        %v2541 = vld [vmem:[%s646 + $0xcc] sm:$0xf]
        %v2542 = vld [vmem:[%s646 + $0xd0] sm:$0xf]
        %v2543 = vld [vmem:[%s646 + $0xd4] sm:$0xf]
        %v2544 = vld [vmem:[%s646 + $0xd8] sm:$0xf]
        %v2545 = vld [vmem:[%s646 + $0xdc] sm:$0xf]
        %v2546 = vld [vmem:[%s646 + $0xe0] sm:$0xf]
        %v2547 = vld [vmem:[%s646 + $0xe4] sm:$0xf]
        %v2548 = vld [vmem:[%s646 + $0xe8] sm:$0xf]
        %v2549 = vld [vmem:[%s646 + $0xec] sm:$0xf]
        %v2550 = vld [vmem:[%s646 + $0xf0] sm:$0xf]
        %v2551 = vld [vmem:[%s646 + $0xf4] sm:$0xf]
        %v2552 = vld [vmem:[%s646 + $0xf8] sm:$0xf]
        %v2553 = vld [vmem:[%s646 + $0xfc] sm:$0xf]
        %v2554 = vld [vmem:[%s646 + $0x100] sm:$0xf]
        %v2555 = vld [vmem:[%s646 + $0x104] sm:$0xf]
        %v2556 = vld [vmem:[%s646 + $0x108] sm:$0xf]
        %v2557 = vld [vmem:[%s646 + $0x10c] sm:$0xf]
        %v2558 = vld [vmem:[%s646 + $0x110] sm:$0xf]
        %v2559 = vld [vmem:[%s646 + $0x114] sm:$0xf]
        %v2560 = vld [vmem:[%s646 + $0x118] sm:$0xf]
        %v2561 = vld [vmem:[%s646 + $0x11c] sm:$0xf]
        %v2562 = vld [vmem:[%s646 + $0x120] sm:$0xf]
        %v2563 = vld [vmem:[%s646 + $0x124] sm:$0xf]
        %v2564 = vld [vmem:[%s646 + $0x128] sm:$0xf]
        %v2565 = vld [vmem:[%s646 + $0x12c] sm:$0xf]
        %v2566 = vld [vmem:[%s646 + $0x130] sm:$0xf]
        %v2567 = vld [vmem:[%s646 + $0x134] sm:$0xf]
        %v2568 = vld [vmem:[%s646 + $0x138] sm:$0xf]
        %v2569 = vld [vmem:[%s646 + $0x13c] sm:$0xf]
        %v2570 = vld [vmem:[%s646 + $0x140] sm:$0xf]
        %v2571 = vld [vmem:[%s646 + $0x144] sm:$0xf]
        %v2572 = vld [vmem:[%s646 + $0x148] sm:$0xf]
        %v2573 = vld [vmem:[%s646 + $0x14c] sm:$0xf]
        %v2574 = vld [vmem:[%s646 + $0x150] sm:$0xf]
        %v2575 = vld [vmem:[%s646 + $0x154] sm:$0xf]
        %v2576 = vld [vmem:[%s646 + $0x158] sm:$0xf]
        %v2577 = vld [vmem:[%s646 + $0x15c] sm:$0xf]
        %v2578 = vld [vmem:[%s646 + $0x160] sm:$0xf]
        %v2579 = vld [vmem:[%s646 + $0x164] sm:$0xf]
        %v2580 = vld [vmem:[%s646 + $0x168] sm:$0xf]
        %v2581 = vld [vmem:[%s646 + $0x16c] sm:$0xf]
        %v2582 = vld [vmem:[%s646 + $0x170] sm:$0xf]
        %v2583 = vld [vmem:[%s646 + $0x174] sm:$0xf]
        %v2584 = vld [vmem:[%s646 + $0x178] sm:$0xf]
        %v2585 = vld [vmem:[%s646 + $0x17c] sm:$0xf]
        %v2586 = vld [vmem:[%s646 + $0x180] sm:$0xf]
        %v2587 = vld [vmem:[%s646 + $0x184] sm:$0xf]
        %v2588 = vld [vmem:[%s646 + $0x188] sm:$0xf]
        %v2589 = vld [vmem:[%s646 + $0x18c] sm:$0xf]
        %v2590 = vld [vmem:[%s646 + $0x190] sm:$0xf]
        %v2591 = vld [vmem:[%s646 + $0x194] sm:$0xf]
        %v2592 = vld [vmem:[%s646 + $0x198] sm:$0xf]
        %v2593 = vld [vmem:[%s646 + $0x19c] sm:$0xf]
        %v2594 = vld [vmem:[%s646 + $0x1a0] sm:$0xf]
        %v2595 = vld [vmem:[%s646 + $0x1a4] sm:$0xf]
        %v2596 = vld [vmem:[%s646 + $0x1a8] sm:$0xf]
        %v2597 = vld [vmem:[%s646 + $0x1ac] sm:$0xf]
        %v2598 = vld [vmem:[%s646 + $0x1b0] sm:$0xf]
        %v2599 = vld [vmem:[%s646 + $0x1b4] sm:$0xf]
        %v2600 = vld [vmem:[%s646 + $0x1b8] sm:$0xf]
        %v2601 = vld [vmem:[%s646 + $0x1bc] sm:$0xf]
        %v2602 = vld [vmem:[%s646 + $0x1c0] sm:$0xf]
        %v2603 = vld [vmem:[%s646 + $0x1c4] sm:$0xf]
        %v2604 = vld [vmem:[%s646 + $0x1c8] sm:$0xf]
        %v2605 = vld [vmem:[%s646 + $0x1cc] sm:$0xf]
        %v2606 = vld [vmem:[%s646 + $0x1d0] sm:$0xf]
        %v2607 = vld [vmem:[%s646 + $0x1d4] sm:$0xf]
        %v2608 = vld [vmem:[%s646 + $0x1d8] sm:$0xf]
        %v2609 = vld [vmem:[%s646 + $0x1dc] sm:$0xf]
        %v2610 = vld [vmem:[%s646 + $0x1e0] sm:$0xf]
        %v2611 = vld [vmem:[%s646 + $0x1e4] sm:$0xf]
        %v2612 = vld [vmem:[%s646 + $0x1e8] sm:$0xf]
        %v2613 = vld [vmem:[%s646 + $0x1ec] sm:$0xf]
        %v2614 = vld [vmem:[%s646 + $0x1f0] sm:$0xf]
        %v2615 = vld [vmem:[%s646 + $0x1f4] sm:$0xf]
        %v2616 = vld [vmem:[%s646 + $0x1f8] sm:$0xf]
        %v2617 = vld [vmem:[%s646 + $0x1fc] sm:$0xf]
        %v2618 = vld [vmem:[%s646 + $0x200] sm:$0xf]
        %v2619 = vld [vmem:[%s646 + $0x204] sm:$0xf]
        %v2620 = vld [vmem:[%s646 + $0x208] sm:$0xf]
        %v2621 = vld [vmem:[%s646 + $0x20c] sm:$0xf]
        %v2622 = vld [vmem:[%s646 + $0x210] sm:$0xf]
        %v2623 = vld [vmem:[%s646 + $0x214] sm:$0xf]
        %v2624 = vld [vmem:[%s646 + $0x218] sm:$0xf]
        %v2625 = vld [vmem:[%s646 + $0x21c] sm:$0xf]
        %v2626 = vld [vmem:[%s646 + $0x220] sm:$0xf]
        %v2627 = vld [vmem:[%s646 + $0x224] sm:$0xf]
        %v2628 = vld [vmem:[%s646 + $0x228] sm:$0xf]
        %v2629 = vld [vmem:[%s646 + $0x22c] sm:$0xf]
        %v2630 = vld [vmem:[%s646 + $0x230] sm:$0xf]
        %v2631 = vld [vmem:[%s646 + $0x234] sm:$0xf]
        %v2632 = vld [vmem:[%s646 + $0x238] sm:$0xf]
        %v2633 = vld [vmem:[%s646 + $0x23c] sm:$0xf]
        %v2634 = vld [vmem:[%s646 + $0x240] sm:$0xf]
        %v2635 = vld [vmem:[%s646 + $0x244] sm:$0xf]
        %v2636 = vld [vmem:[%s646 + $0x248] sm:$0xf]
        %v2637 = vld [vmem:[%s646 + $0x24c] sm:$0xf]
        %v2638 = vld [vmem:[%s646 + $0x250] sm:$0xf]
        %v2639 = vld [vmem:[%s646 + $0x254] sm:$0xf]
        %v2640 = vld [vmem:[%s646 + $0x258] sm:$0xf]
        %v2641 = vld [vmem:[%s646 + $0x25c] sm:$0xf]
        %v2642 = vld [vmem:[%s646 + $0x260] sm:$0xf]
        %v2643 = vld [vmem:[%s646 + $0x264] sm:$0xf]
        %v2644 = vld [vmem:[%s646 + $0x268] sm:$0xf]
        %v2645 = vld [vmem:[%s646 + $0x26c] sm:$0xf]
        %v2646 = vld [vmem:[%s646 + $0x270] sm:$0xf]
        %v2647 = vld [vmem:[%s646 + $0x274] sm:$0xf]
        %v2648 = vld [vmem:[%s646 + $0x278] sm:$0xf]
        %v2649 = vld [vmem:[%s646 + $0x27c] sm:$0xf]
        %v2650 = vld [vmem:[%s646 + $0x280] sm:$0xf]
        %v2651 = vld [vmem:[%s646 + $0x284] sm:$0xf]
        %v2652 = vld [vmem:[%s646 + $0x288] sm:$0xf]
        %v2653 = vld [vmem:[%s646 + $0x28c] sm:$0xf]
        %v2654 = vld [vmem:[%s646 + $0x290] sm:$0xf]
        %v2655 = vld [vmem:[%s646 + $0x294] sm:$0xf]
        %v2656 = vld [vmem:[%s646 + $0x298] sm:$0xf]
        %v2657 = vld [vmem:[%s646 + $0x29c] sm:$0xf]
        %v2658 = vld [vmem:[%s646 + $0x2a0] sm:$0xf]
        %v2659 = vld [vmem:[%s646 + $0x2a4] sm:$0xf]
        %v2660 = vld [vmem:[%s646 + $0x2a8] sm:$0xf]
        %v2661 = vld [vmem:[%s646 + $0x2ac] sm:$0xf]
        %v2662 = vld [vmem:[%s646 + $0x2b0] sm:$0xf]
        %v2663 = vld [vmem:[%s646 + $0x2b4] sm:$0xf]
        %v2664 = vld [vmem:[%s646 + $0x2b8] sm:$0xf]
        %v2665 = vld [vmem:[%s646 + $0x2bc] sm:$0xf]
        %v2666 = vld [vmem:[%s646 + $0x2c0] sm:$0xf]
        %v2667 = vld [vmem:[%s646 + $0x2c4] sm:$0xf]
        %v2668 = vld [vmem:[%s646 + $0x2c8] sm:$0xf]
        %v2669 = vld [vmem:[%s646 + $0x2cc] sm:$0xf]
        %v2670 = vld [vmem:[%s646 + $0x2d0] sm:$0xf]
        %v2671 = vld [vmem:[%s646 + $0x2d4] sm:$0xf]
        %v2672 = vld [vmem:[%s646 + $0x2d8] sm:$0xf]
        %v2673 = vld [vmem:[%s646 + $0x2dc] sm:$0xf]
        %v2674 = vld [vmem:[%s646 + $0x2e0] sm:$0xf]
        %v2675 = vld [vmem:[%s646 + $0x2e4] sm:$0xf]
        %v2676 = vld [vmem:[%s646 + $0x2e8] sm:$0xf]
        %v2677 = vld [vmem:[%s646 + $0x2ec] sm:$0xf]
        %v2678 = vld [vmem:[%s646 + $0x2f0] sm:$0xf]
        %v2679 = vld [vmem:[%s646 + $0x2f4] sm:$0xf]
        %v2680 = vld [vmem:[%s646 + $0x2f8] sm:$0xf]
        %v2681 = vld [vmem:[%s646 + $0x2fc] sm:$0xf]
        %v2682 = vld [vmem:[%s646 + $0x300] sm:$0xf]
        %v2683 = vld [vmem:[%s646 + $0x304] sm:$0xf]
        %v2684 = vld [vmem:[%s646 + $0x308] sm:$0xf]
        %v2685 = vld [vmem:[%s646 + $0x30c] sm:$0xf]
        %v2686 = vld [vmem:[%s646 + $0x310] sm:$0xf]
        %v2687 = vld [vmem:[%s646 + $0x314] sm:$0xf]
        %v2688 = vld [vmem:[%s646 + $0x318] sm:$0xf]
        %v2689 = vld [vmem:[%s646 + $0x31c] sm:$0xf]
        %v2690 = vld [vmem:[%s646 + $0x320] sm:$0xf]
        %v2691 = vld [vmem:[%s646 + $0x324] sm:$0xf]
        %v2692 = vld [vmem:[%s646 + $0x328] sm:$0xf]
        %v2693 = vld [vmem:[%s646 + $0x32c] sm:$0xf]
        %v2694 = vld [vmem:[%s646 + $0x330] sm:$0xf]
        %v2695 = vld [vmem:[%s646 + $0x334] sm:$0xf]
        %v2696 = vld [vmem:[%s646 + $0x338] sm:$0xf]
        %v2697 = vld [vmem:[%s646 + $0x33c] sm:$0xf]
        %v2698 = vld [vmem:[%s646 + $0x340] sm:$0xf]
        %v2699 = vld [vmem:[%s646 + $0x344] sm:$0xf]
        %v2700 = vld [vmem:[%s646 + $0x348] sm:$0xf]
        %v2701 = vld [vmem:[%s646 + $0x34c] sm:$0xf]
        %v2702 = vld [vmem:[%s646 + $0x350] sm:$0xf]
        %v2703 = vld [vmem:[%s646 + $0x354] sm:$0xf]
        %v2704 = vld [vmem:[%s646 + $0x358] sm:$0xf]
        %v2705 = vld [vmem:[%s646 + $0x35c] sm:$0xf]
        %v2706 = vld [vmem:[%s646 + $0x360] sm:$0xf]
        %v2707 = vld [vmem:[%s646 + $0x364] sm:$0xf]
        %v2708 = vld [vmem:[%s646 + $0x368] sm:$0xf]
        %v2709 = vld [vmem:[%s646 + $0x36c] sm:$0xf]
        %v2710 = vld [vmem:[%s646 + $0x370] sm:$0xf]
        %v2711 = vld [vmem:[%s646 + $0x374] sm:$0xf]
        %v2712 = vld [vmem:[%s646 + $0x378] sm:$0xf]
        %v2713 = vld [vmem:[%s646 + $0x37c] sm:$0xf]
        %v2714 = vld [vmem:[%s646 + $0x380] sm:$0xf]
        %v2715 = vld [vmem:[%s646 + $0x384] sm:$0xf]
        %v2716 = vld [vmem:[%s646 + $0x388] sm:$0xf]
        %v2717 = vld [vmem:[%s646 + $0x38c] sm:$0xf]
        %v2718 = vld [vmem:[%s646 + $0x390] sm:$0xf]
        %v2719 = vld [vmem:[%s646 + $0x394] sm:$0xf]
        %v2720 = vld [vmem:[%s646 + $0x398] sm:$0xf]
        %v2721 = vld [vmem:[%s646 + $0x39c] sm:$0xf]
        %v2722 = vld [vmem:[%s646 + $0x3a0] sm:$0xf]
        %v2723 = vld [vmem:[%s646 + $0x3a4] sm:$0xf]
        %v2724 = vld [vmem:[%s646 + $0x3a8] sm:$0xf]
        %v2725 = vld [vmem:[%s646 + $0x3ac] sm:$0xf]
        %v2726 = vld [vmem:[%s646 + $0x3b0] sm:$0xf]
        %v2727 = vld [vmem:[%s646 + $0x3b4] sm:$0xf]
        %v2728 = vld [vmem:[%s646 + $0x3b8] sm:$0xf]
        %v2729 = vld [vmem:[%s646 + $0x3bc] sm:$0xf]
        %v2730 = vld [vmem:[%s646 + $0x3c0] sm:$0xf]
        %v2731 = vld [vmem:[%s646 + $0x3c4] sm:$0xf]
        %v2732 = vld [vmem:[%s646 + $0x3c8] sm:$0xf]
        %v2733 = vld [vmem:[%s646 + $0x3cc] sm:$0xf]
        %v2734 = vld [vmem:[%s646 + $0x3d0] sm:$0xf]
        %v2735 = vld [vmem:[%s646 + $0x3d4] sm:$0xf]
        %v2736 = vld [vmem:[%s646 + $0x3d8] sm:$0xf]
        %v2737 = vld [vmem:[%s646 + $0x3dc] sm:$0xf]
        %v2738 = vld [vmem:[%s646 + $0x3e0] sm:$0xf]
        %v2739 = vld [vmem:[%s646 + $0x3e4] sm:$0xf]
        %v2740 = vld [vmem:[%s646 + $0x3e8] sm:$0xf]
        %v2741 = vld [vmem:[%s646 + $0x3ec] sm:$0xf]
        %v2742 = vld [vmem:[%s646 + $0x3f0] sm:$0xf]
        %v2743 = vld [vmem:[%s646 + $0x3f4] sm:$0xf]
        %v2744 = vld [vmem:[%s646 + $0x3f8] sm:$0xf]
        %v2745 = vld [vmem:[%s646 + $0x3fc] sm:$0xf]
        %v2746 = vld [vmem:[%s649] sm:$0x1]
        %v2748 = vlaneseq
        %v2749 = vshrl.u32 %v2748, 7
        %v2750 = vsub.s32 0, %v2749
        %v2751 = vrot.slane %v2746, %v2750
        %v3009 = vunpack.c.l.b16 %v2490
        %v3010 = vunpack.c.l.b16 %v2491
        %v3011 = vunpack.c.l.b16 %v2492
        %v3012 = vunpack.c.l.b16 %v2493
        %v3013 = vunpack.c.l.b16 %v2494
        %v3014 = vunpack.c.l.b16 %v2495
        %v3015 = vunpack.c.l.b16 %v2496
        %v3016 = vunpack.c.l.b16 %v2497
        %v3017 = vunpack.c.l.b16 %v2498
        %v3018 = vunpack.c.l.b16 %v2499
        %v3019 = vunpack.c.l.b16 %v2500
        %v3020 = vunpack.c.l.b16 %v2501
        %v3021 = vunpack.c.l.b16 %v2502
        %v3022 = vunpack.c.l.b16 %v2503
        %v3023 = vunpack.c.l.b16 %v2504
        %v3024 = vunpack.c.l.b16 %v2505
        %v3025 = vunpack.c.l.b16 %v2506
        %v3026 = vunpack.c.l.b16 %v2507
        %v3027 = vunpack.c.l.b16 %v2508
        %v3028 = vunpack.c.l.b16 %v2509
        %v3029 = vunpack.c.l.b16 %v2510
        %v3030 = vunpack.c.l.b16 %v2511
        %v3031 = vunpack.c.l.b16 %v2512
        %v3032 = vunpack.c.l.b16 %v2513
        %v3033 = vunpack.c.l.b16 %v2514
        %v3034 = vunpack.c.l.b16 %v2515
        %v3035 = vunpack.c.l.b16 %v2516
        %v3036 = vunpack.c.l.b16 %v2517
        %v3037 = vunpack.c.l.b16 %v2518
        %v3038 = vunpack.c.l.b16 %v2519
        %v3039 = vunpack.c.l.b16 %v2520
        %v3040 = vunpack.c.l.b16 %v2521
        %v3041 = vunpack.c.l.b16 %v2522
        %v3042 = vunpack.c.l.b16 %v2523
        %v3043 = vunpack.c.l.b16 %v2524
        %v3044 = vunpack.c.l.b16 %v2525
        %v3045 = vunpack.c.l.b16 %v2526
        %v3046 = vunpack.c.l.b16 %v2527
        %v3047 = vunpack.c.l.b16 %v2528
        %v3048 = vunpack.c.l.b16 %v2529
        %v3049 = vunpack.c.l.b16 %v2530
        %v3050 = vunpack.c.l.b16 %v2531
        %v3051 = vunpack.c.l.b16 %v2532
        %v3052 = vunpack.c.l.b16 %v2533
        %v3053 = vunpack.c.l.b16 %v2534
        %v3054 = vunpack.c.l.b16 %v2535
        %v3055 = vunpack.c.l.b16 %v2536
        %v3056 = vunpack.c.l.b16 %v2537
        %v3057 = vunpack.c.l.b16 %v2538
        %v3058 = vunpack.c.l.b16 %v2539
        %v3059 = vunpack.c.l.b16 %v2540
        %v3060 = vunpack.c.l.b16 %v2541
        %v3061 = vunpack.c.l.b16 %v2542
        %v3062 = vunpack.c.l.b16 %v2543
        %v3063 = vunpack.c.l.b16 %v2544
        %v3064 = vunpack.c.l.b16 %v2545
        %v3065 = vunpack.c.l.b16 %v2546
        %v3066 = vunpack.c.l.b16 %v2547
        %v3067 = vunpack.c.l.b16 %v2548
        %v3068 = vunpack.c.l.b16 %v2549
        %v3069 = vunpack.c.l.b16 %v2550
        %v3070 = vunpack.c.l.b16 %v2551
        %v3071 = vunpack.c.l.b16 %v2552
        %v3072 = vunpack.c.l.b16 %v2553
        %v3073 = vunpack.c.l.b16 %v2554
        %v3074 = vunpack.c.l.b16 %v2555
        %v3075 = vunpack.c.l.b16 %v2556
        %v3076 = vunpack.c.l.b16 %v2557
        %v3077 = vunpack.c.l.b16 %v2558
        %v3078 = vunpack.c.l.b16 %v2559
        %v3079 = vunpack.c.l.b16 %v2560
        %v3080 = vunpack.c.l.b16 %v2561
        %v3081 = vunpack.c.l.b16 %v2562
        %v3082 = vunpack.c.l.b16 %v2563
        %v3083 = vunpack.c.l.b16 %v2564
        %v3084 = vunpack.c.l.b16 %v2565
        %v3085 = vunpack.c.l.b16 %v2566
        %v3086 = vunpack.c.l.b16 %v2567
        %v3087 = vunpack.c.l.b16 %v2568
        %v3088 = vunpack.c.l.b16 %v2569
        %v3089 = vunpack.c.l.b16 %v2570
        %v3090 = vunpack.c.l.b16 %v2571
        %v3091 = vunpack.c.l.b16 %v2572
        %v3092 = vunpack.c.l.b16 %v2573
        %v3093 = vunpack.c.l.b16 %v2574
        %v3094 = vunpack.c.l.b16 %v2575
        %v3095 = vunpack.c.l.b16 %v2576
        %v3096 = vunpack.c.l.b16 %v2577
        %v3097 = vunpack.c.l.b16 %v2578
        %v3098 = vunpack.c.l.b16 %v2579
        %v3099 = vunpack.c.l.b16 %v2580
        %v3100 = vunpack.c.l.b16 %v2581
        %v3101 = vunpack.c.l.b16 %v2582
        %v3102 = vunpack.c.l.b16 %v2583
        %v3103 = vunpack.c.l.b16 %v2584
        %v3104 = vunpack.c.l.b16 %v2585
        %v3105 = vunpack.c.l.b16 %v2586
        %v3106 = vunpack.c.l.b16 %v2587
        %v3107 = vunpack.c.l.b16 %v2588
        %v3108 = vunpack.c.l.b16 %v2589
        %v3109 = vunpack.c.l.b16 %v2590
        %v3110 = vunpack.c.l.b16 %v2591
        %v3111 = vunpack.c.l.b16 %v2592
        %v3112 = vunpack.c.l.b16 %v2593
        %v3113 = vunpack.c.l.b16 %v2594
        %v3114 = vunpack.c.l.b16 %v2595
        %v3115 = vunpack.c.l.b16 %v2596
        %v3116 = vunpack.c.l.b16 %v2597
        %v3117 = vunpack.c.l.b16 %v2598
        %v3118 = vunpack.c.l.b16 %v2599
        %v3119 = vunpack.c.l.b16 %v2600
        %v3120 = vunpack.c.l.b16 %v2601
        %v3121 = vunpack.c.l.b16 %v2602
        %v3122 = vunpack.c.l.b16 %v2603
        %v3123 = vunpack.c.l.b16 %v2604
        %v3124 = vunpack.c.l.b16 %v2605
        %v3125 = vunpack.c.l.b16 %v2606
        %v3126 = vunpack.c.l.b16 %v2607
        %v3127 = vunpack.c.l.b16 %v2608
        %v3128 = vunpack.c.l.b16 %v2609
        %v3129 = vunpack.c.l.b16 %v2610
        %v3130 = vunpack.c.l.b16 %v2611
        %v3131 = vunpack.c.l.b16 %v2612
        %v3132 = vunpack.c.l.b16 %v2613
        %v3133 = vunpack.c.l.b16 %v2614
        %v3134 = vunpack.c.l.b16 %v2615
        %v3135 = vunpack.c.l.b16 %v2616
        %v3136 = vunpack.c.l.b16 %v2617
        %v3137 = vunpack.c.l.b16 %v2618
        %v3138 = vunpack.c.l.b16 %v2619
        %v3139 = vunpack.c.l.b16 %v2620
        %v3140 = vunpack.c.l.b16 %v2621
        %v3141 = vunpack.c.l.b16 %v2622
        %v3142 = vunpack.c.l.b16 %v2623
        %v3143 = vunpack.c.l.b16 %v2624
        %v3144 = vunpack.c.l.b16 %v2625
        %v3145 = vunpack.c.l.b16 %v2626
        %v3146 = vunpack.c.l.b16 %v2627
        %v3147 = vunpack.c.l.b16 %v2628
        %v3148 = vunpack.c.l.b16 %v2629
        %v3149 = vunpack.c.l.b16 %v2630
        %v3150 = vunpack.c.l.b16 %v2631
        %v3151 = vunpack.c.l.b16 %v2632
        %v3152 = vunpack.c.l.b16 %v2633
        %v3153 = vunpack.c.l.b16 %v2634
        %v3154 = vunpack.c.l.b16 %v2635
        %v3155 = vunpack.c.l.b16 %v2636
        %v3156 = vunpack.c.l.b16 %v2637
        %v3157 = vunpack.c.l.b16 %v2638
        %v3158 = vunpack.c.l.b16 %v2639
        %v3159 = vunpack.c.l.b16 %v2640
        %v3160 = vunpack.c.l.b16 %v2641
        %v3161 = vunpack.c.l.b16 %v2642
        %v3162 = vunpack.c.l.b16 %v2643
        %v3163 = vunpack.c.l.b16 %v2644
        %v3164 = vunpack.c.l.b16 %v2645
        %v3165 = vunpack.c.l.b16 %v2646
        %v3166 = vunpack.c.l.b16 %v2647
        %v3167 = vunpack.c.l.b16 %v2648
        %v3168 = vunpack.c.l.b16 %v2649
        %v3169 = vunpack.c.l.b16 %v2650
        %v3170 = vunpack.c.l.b16 %v2651
        %v3171 = vunpack.c.l.b16 %v2652
        %v3172 = vunpack.c.l.b16 %v2653
        %v3173 = vunpack.c.l.b16 %v2654
        %v3174 = vunpack.c.l.b16 %v2655
        %v3175 = vunpack.c.l.b16 %v2656
        %v3176 = vunpack.c.l.b16 %v2657
        %v3177 = vunpack.c.l.b16 %v2658
        %v3178 = vunpack.c.l.b16 %v2659
        %v3179 = vunpack.c.l.b16 %v2660
        %v3180 = vunpack.c.l.b16 %v2661
        %v3181 = vunpack.c.l.b16 %v2662
        %v3182 = vunpack.c.l.b16 %v2663
        %v3183 = vunpack.c.l.b16 %v2664
        %v3184 = vunpack.c.l.b16 %v2665
        %v3185 = vunpack.c.l.b16 %v2666
        %v3186 = vunpack.c.l.b16 %v2667
        %v3187 = vunpack.c.l.b16 %v2668
        %v3188 = vunpack.c.l.b16 %v2669
        %v3189 = vunpack.c.l.b16 %v2670
        %v3190 = vunpack.c.l.b16 %v2671
        %v3191 = vunpack.c.l.b16 %v2672
        %v3192 = vunpack.c.l.b16 %v2673
        %v3193 = vunpack.c.l.b16 %v2674
        %v3194 = vunpack.c.l.b16 %v2675
        %v3195 = vunpack.c.l.b16 %v2676
        %v3196 = vunpack.c.l.b16 %v2677
        %v3197 = vunpack.c.l.b16 %v2678
        %v3198 = vunpack.c.l.b16 %v2679
        %v3199 = vunpack.c.l.b16 %v2680
        %v3200 = vunpack.c.l.b16 %v2681
        %v3201 = vunpack.c.l.b16 %v2682
        %v3202 = vunpack.c.l.b16 %v2683
        %v3203 = vunpack.c.l.b16 %v2684
        %v3204 = vunpack.c.l.b16 %v2685
        %v3205 = vunpack.c.l.b16 %v2686
        %v3206 = vunpack.c.l.b16 %v2687
        %v3207 = vunpack.c.l.b16 %v2688
        %v3208 = vunpack.c.l.b16 %v2689
        %v3209 = vunpack.c.l.b16 %v2690
        %v3210 = vunpack.c.l.b16 %v2691
        %v3211 = vunpack.c.l.b16 %v2692
        %v3212 = vunpack.c.l.b16 %v2693
        %v3213 = vunpack.c.l.b16 %v2694
        %v3214 = vunpack.c.l.b16 %v2695
        %v3215 = vunpack.c.l.b16 %v2696
        %v3216 = vunpack.c.l.b16 %v2697
        %v3217 = vunpack.c.l.b16 %v2698
        %v3218 = vunpack.c.l.b16 %v2699
        %v3219 = vunpack.c.l.b16 %v2700
        %v3220 = vunpack.c.l.b16 %v2701
        %v3221 = vunpack.c.l.b16 %v2702
        %v3222 = vunpack.c.l.b16 %v2703
        %v3223 = vunpack.c.l.b16 %v2704
        %v3224 = vunpack.c.l.b16 %v2705
        %v3225 = vunpack.c.l.b16 %v2706
        %v3226 = vunpack.c.l.b16 %v2707
        %v3227 = vunpack.c.l.b16 %v2708
        %v3228 = vunpack.c.l.b16 %v2709
        %v3229 = vunpack.c.l.b16 %v2710
        %v3230 = vunpack.c.l.b16 %v2711
        %v3231 = vunpack.c.l.b16 %v2712
        %v3232 = vunpack.c.l.b16 %v2713
        %v3233 = vunpack.c.l.b16 %v2714
        %v3234 = vunpack.c.l.b16 %v2715
        %v3235 = vunpack.c.l.b16 %v2716
        %v3236 = vunpack.c.l.b16 %v2717
        %v3237 = vunpack.c.l.b16 %v2718
        %v3238 = vunpack.c.l.b16 %v2719
        %v3239 = vunpack.c.l.b16 %v2720
        %v3240 = vunpack.c.l.b16 %v2721
        %v3241 = vunpack.c.l.b16 %v2722
        %v3242 = vunpack.c.l.b16 %v2723
        %v3243 = vunpack.c.l.b16 %v2724
        %v3244 = vunpack.c.l.b16 %v2725
        %v3245 = vunpack.c.l.b16 %v2726
        %v3246 = vunpack.c.l.b16 %v2727
        %v3247 = vunpack.c.l.b16 %v2728
        %v3248 = vunpack.c.l.b16 %v2729
        %v3249 = vunpack.c.l.b16 %v2730
        %v3250 = vunpack.c.l.b16 %v2731
        %v3251 = vunpack.c.l.b16 %v2732
        %v3252 = vunpack.c.l.b16 %v2733
        %v3253 = vunpack.c.l.b16 %v2734
        %v3254 = vunpack.c.l.b16 %v2735
        %v3255 = vunpack.c.l.b16 %v2736
        %v3256 = vunpack.c.l.b16 %v2737
        %v3257 = vunpack.c.l.b16 %v2738
        %v3258 = vunpack.c.l.b16 %v2739
        %v3259 = vunpack.c.l.b16 %v2740
        %v3260 = vunpack.c.l.b16 %v2741
        %v3261 = vunpack.c.l.b16 %v2742
        %v3262 = vunpack.c.l.b16 %v2743
        %v3263 = vunpack.c.l.b16 %v2744
        %v3264 = vunpack.c.l.b16 %v2745
        %v3265 = vpack.c.b16 %v3010, %v3009
        %v3266 = vpack.c.b16 %v3012, %v3011
        %v3267 = vpack.c.b16 %v3014, %v3013
        %v3268 = vpack.c.b16 %v3016, %v3015
        %v3269 = vpack.c.b16 %v3018, %v3017
        %v3270 = vpack.c.b16 %v3020, %v3019
        %v3271 = vpack.c.b16 %v3022, %v3021
        %v3272 = vpack.c.b16 %v3024, %v3023
        %v3273 = vpack.c.b16 %v3026, %v3025
        %v3274 = vpack.c.b16 %v3028, %v3027
        %v3275 = vpack.c.b16 %v3030, %v3029
        %v3276 = vpack.c.b16 %v3032, %v3031
        %v3277 = vpack.c.b16 %v3034, %v3033
        %v3278 = vpack.c.b16 %v3036, %v3035
        %v3279 = vpack.c.b16 %v3038, %v3037
        %v3280 = vpack.c.b16 %v3040, %v3039
        %v3281 = vpack.c.b16 %v3042, %v3041
        %v3282 = vpack.c.b16 %v3044, %v3043
        %v3283 = vpack.c.b16 %v3046, %v3045
        %v3284 = vpack.c.b16 %v3048, %v3047
        %v3285 = vpack.c.b16 %v3050, %v3049
        %v3286 = vpack.c.b16 %v3052, %v3051
        %v3287 = vpack.c.b16 %v3054, %v3053
        %v3288 = vpack.c.b16 %v3056, %v3055
        %v3289 = vpack.c.b16 %v3058, %v3057
        %v3290 = vpack.c.b16 %v3060, %v3059
        %v3291 = vpack.c.b16 %v3062, %v3061
        %v3292 = vpack.c.b16 %v3064, %v3063
        %v3293 = vpack.c.b16 %v3066, %v3065
        %v3294 = vpack.c.b16 %v3068, %v3067
        %v3295 = vpack.c.b16 %v3070, %v3069
        %v3296 = vpack.c.b16 %v3072, %v3071
        %v3297 = vpack.c.b16 %v3074, %v3073
        %v3298 = vpack.c.b16 %v3076, %v3075
        %v3299 = vpack.c.b16 %v3078, %v3077
        %v3300 = vpack.c.b16 %v3080, %v3079
        %v3301 = vpack.c.b16 %v3082, %v3081
        %v3302 = vpack.c.b16 %v3084, %v3083
        %v3303 = vpack.c.b16 %v3086, %v3085
        %v3304 = vpack.c.b16 %v3088, %v3087
        %v3305 = vpack.c.b16 %v3090, %v3089
        %v3306 = vpack.c.b16 %v3092, %v3091
        %v3307 = vpack.c.b16 %v3094, %v3093
        %v3308 = vpack.c.b16 %v3096, %v3095
        %v3309 = vpack.c.b16 %v3098, %v3097
        %v3310 = vpack.c.b16 %v3100, %v3099
        %v3311 = vpack.c.b16 %v3102, %v3101
        %v3312 = vpack.c.b16 %v3104, %v3103
        %v3313 = vpack.c.b16 %v3106, %v3105
        %v3314 = vpack.c.b16 %v3108, %v3107
        %v3315 = vpack.c.b16 %v3110, %v3109
        %v3316 = vpack.c.b16 %v3112, %v3111
        %v3317 = vpack.c.b16 %v3114, %v3113
        %v3318 = vpack.c.b16 %v3116, %v3115
        %v3319 = vpack.c.b16 %v3118, %v3117
        %v3320 = vpack.c.b16 %v3120, %v3119
        %v3321 = vpack.c.b16 %v3122, %v3121
        %v3322 = vpack.c.b16 %v3124, %v3123
        %v3323 = vpack.c.b16 %v3126, %v3125
        %v3324 = vpack.c.b16 %v3128, %v3127
        %v3325 = vpack.c.b16 %v3130, %v3129
        %v3326 = vpack.c.b16 %v3132, %v3131
        %v3327 = vpack.c.b16 %v3134, %v3133
        %v3328 = vpack.c.b16 %v3136, %v3135
        %v3329 = vpack.c.b16 %v3138, %v3137
        %v3330 = vpack.c.b16 %v3140, %v3139
        %v3331 = vpack.c.b16 %v3142, %v3141
        %v3332 = vpack.c.b16 %v3144, %v3143
        %v3333 = vpack.c.b16 %v3146, %v3145
        %v3334 = vpack.c.b16 %v3148, %v3147
        %v3335 = vpack.c.b16 %v3150, %v3149
        %v3336 = vpack.c.b16 %v3152, %v3151
        %v3337 = vpack.c.b16 %v3154, %v3153
        %v3338 = vpack.c.b16 %v3156, %v3155
        %v3339 = vpack.c.b16 %v3158, %v3157
        %v3340 = vpack.c.b16 %v3160, %v3159
        %v3341 = vpack.c.b16 %v3162, %v3161
        %v3342 = vpack.c.b16 %v3164, %v3163
        %v3343 = vpack.c.b16 %v3166, %v3165
        %v3344 = vpack.c.b16 %v3168, %v3167
        %v3345 = vpack.c.b16 %v3170, %v3169
        %v3346 = vpack.c.b16 %v3172, %v3171
        %v3347 = vpack.c.b16 %v3174, %v3173
        %v3348 = vpack.c.b16 %v3176, %v3175
        %v3349 = vpack.c.b16 %v3178, %v3177
        %v3350 = vpack.c.b16 %v3180, %v3179
        %v3351 = vpack.c.b16 %v3182, %v3181
        %v3352 = vpack.c.b16 %v3184, %v3183
        %v3353 = vpack.c.b16 %v3186, %v3185
        %v3354 = vpack.c.b16 %v3188, %v3187
        %v3355 = vpack.c.b16 %v3190, %v3189
        %v3356 = vpack.c.b16 %v3192, %v3191
        %v3357 = vpack.c.b16 %v3194, %v3193
        %v3358 = vpack.c.b16 %v3196, %v3195
        %v3359 = vpack.c.b16 %v3198, %v3197
        %v3360 = vpack.c.b16 %v3200, %v3199
        %v3361 = vpack.c.b16 %v3202, %v3201
        %v3362 = vpack.c.b16 %v3204, %v3203
        %v3363 = vpack.c.b16 %v3206, %v3205
        %v3364 = vpack.c.b16 %v3208, %v3207
        %v3365 = vpack.c.b16 %v3210, %v3209
        %v3366 = vpack.c.b16 %v3212, %v3211
        %v3367 = vpack.c.b16 %v3214, %v3213
        %v3368 = vpack.c.b16 %v3216, %v3215
        %v3369 = vpack.c.b16 %v3218, %v3217
        %v3370 = vpack.c.b16 %v3220, %v3219
        %v3371 = vpack.c.b16 %v3222, %v3221
        %v3372 = vpack.c.b16 %v3224, %v3223
        %v3373 = vpack.c.b16 %v3226, %v3225
        %v3374 = vpack.c.b16 %v3228, %v3227
        %v3375 = vpack.c.b16 %v3230, %v3229
        %v3376 = vpack.c.b16 %v3232, %v3231
        %v3377 = vpack.c.b16 %v3234, %v3233
        %v3378 = vpack.c.b16 %v3236, %v3235
        %v3379 = vpack.c.b16 %v3238, %v3237
        %v3380 = vpack.c.b16 %v3240, %v3239
        %v3381 = vpack.c.b16 %v3242, %v3241
        %v3382 = vpack.c.b16 %v3244, %v3243
        %v3383 = vpack.c.b16 %v3246, %v3245
        %v3384 = vpack.c.b16 %v3248, %v3247
        %v3385 = vpack.c.b16 %v3250, %v3249
        %v3386 = vpack.c.b16 %v3252, %v3251
        %v3387 = vpack.c.b16 %v3254, %v3253
        %v3388 = vpack.c.b16 %v3256, %v3255
        %v3389 = vpack.c.b16 %v3258, %v3257
        %v3390 = vpack.c.b16 %v3260, %v3259
        %v3391 = vpack.c.b16 %v3262, %v3261
        %v3392 = vpack.c.b16 %v3264, %v3263
        %3521 = vmatprep.subr.bf16.mxu0 0
        %3522 = vmatpush1.bf16.msra.mxu0 %v3265
        %3523 = vmatprep.subr.bf16.mxu0 0
        %3524 = vmatpush1.bf16.msra.mxu0 %v3266
        %3525 = vmatprep.subr.bf16.mxu0 0
        %3526 = vmatpush1.bf16.msra.mxu0 %v3267
        %3527 = vmatprep.subr.bf16.mxu0 0
        %3528 = vmatpush1.bf16.msra.mxu0 %v3268
        %3529 = vmatprep.subr.bf16.mxu0 0
        %3530 = vmatpush1.bf16.msra.mxu0 %v3269
        %3531 = vmatprep.subr.bf16.mxu0 0
        %3532 = vmatpush1.bf16.msra.mxu0 %v3270
        %3533 = vmatprep.subr.bf16.mxu0 0
        %3534 = vmatpush1.bf16.msra.mxu0 %v3271
        %3535 = vmatprep.subr.bf16.mxu0 0
        %3536 = vmatpush1.bf16.msra.mxu0 %v3272
        %3537 = vmatprep.subr.bf16.mxu0 0
        %3538 = vmatpush1.bf16.msra.mxu0 %v3273
        %3539 = vmatprep.subr.bf16.mxu0 0
        %3540 = vmatpush1.bf16.msra.mxu0 %v3274
        %3541 = vmatprep.subr.bf16.mxu0 0
        %3542 = vmatpush1.bf16.msra.mxu0 %v3275
        %3543 = vmatprep.subr.bf16.mxu0 0
        %3544 = vmatpush1.bf16.msra.mxu0 %v3276
        %3545 = vmatprep.subr.bf16.mxu0 0
        %3546 = vmatpush1.bf16.msra.mxu0 %v3277
        %3547 = vmatprep.subr.bf16.mxu0 0
        %3548 = vmatpush1.bf16.msra.mxu0 %v3278
        %3549 = vmatprep.subr.bf16.mxu0 0
        %3550 = vmatpush1.bf16.msra.mxu0 %v3279
        %3551 = vmatprep.subr.bf16.mxu0 0
        %3552 = vmatpush1.bf16.msra.mxu0 %v3280
        %3553 = vmatprep.mubr.bf16.mxu0 %v2475
        %3554 = vmatmul.mubr.bf16.gmra.mrb[0].mxu0 %v2474
        %v3555 = vpop.f32.mrb[0].mxu0
        %v3556 = vadd.f32 %v2751, %v3555
        %v3557 = vpop.f32.mrb[0].mxu0
        %v3558 = vpop.f32.mrb[0].mxu0
        %v3559 = vadd.f32 %v2751, %v3558
        %v3560 = vpop.f32.mrb[0].mxu0
        %3561 = vdwg.mxu0
        %3562 = vmatprep.subr.bf16.mxu0 0
        %3563 = vmatpush1.bf16.msra.mxu0 %v3281
        %3564 = vmatprep.subr.bf16.mxu0 0
        %3565 = vmatpush1.bf16.msra.mxu0 %v3282
        %3566 = vmatprep.subr.bf16.mxu0 0
        %3567 = vmatpush1.bf16.msra.mxu0 %v3283
        %3568 = vmatprep.subr.bf16.mxu0 0
        %3569 = vmatpush1.bf16.msra.mxu0 %v3284
        %3570 = vmatprep.subr.bf16.mxu0 0
        %3571 = vmatpush1.bf16.msra.mxu0 %v3285
        %3572 = vmatprep.subr.bf16.mxu0 0
        %3573 = vmatpush1.bf16.msra.mxu0 %v3286
        %3574 = vmatprep.subr.bf16.mxu0 0
        %3575 = vmatpush1.bf16.msra.mxu0 %v3287
        %3576 = vmatprep.subr.bf16.mxu0 0
        %3577 = vmatpush1.bf16.msra.mxu0 %v3288
        %3578 = vmatprep.subr.bf16.mxu0 0
        %3579 = vmatpush1.bf16.msra.mxu0 %v3289
        %3580 = vmatprep.subr.bf16.mxu0 0
        %3581 = vmatpush1.bf16.msra.mxu0 %v3290
        %3582 = vmatprep.subr.bf16.mxu0 0
        %3583 = vmatpush1.bf16.msra.mxu0 %v3291
        %3584 = vmatprep.subr.bf16.mxu0 0
        %3585 = vmatpush1.bf16.msra.mxu0 %v3292
        %3586 = vmatprep.subr.bf16.mxu0 0
        %3587 = vmatpush1.bf16.msra.mxu0 %v3293
        %3588 = vmatprep.subr.bf16.mxu0 0
        %3589 = vmatpush1.bf16.msra.mxu0 %v3294
        %3590 = vmatprep.subr.bf16.mxu0 0
        %3591 = vmatpush1.bf16.msra.mxu0 %v3295
        %3592 = vmatprep.subr.bf16.mxu0 0
        %3593 = vmatpush1.bf16.msra.mxu0 %v3296
        %3594 = vmatprep.mubr.bf16.mxu0 %v2477
        %3595 = vmatmul.mubr.bf16.gmra.mrb[0].mxu0 %v2476
        %v3596 = vpop.f32.mrb[0].mxu0
        %v3597 = vadd.f32 %v3556, %v3596
        %v3598 = vpop.f32.mrb[0].mxu0
        %v3599 = vpop.f32.mrb[0].mxu0
        %v3600 = vadd.f32 %v3559, %v3599
        %v3601 = vpop.f32.mrb[0].mxu0
        %3602 = vdwg.mxu0
        %3603 = vmatprep.subr.bf16.mxu0 0
        %3604 = vmatpush1.bf16.msra.mxu0 %v3297
        %3605 = vmatprep.subr.bf16.mxu0 0
        %3606 = vmatpush1.bf16.msra.mxu0 %v3298
        %3607 = vmatprep.subr.bf16.mxu0 0
        %3608 = vmatpush1.bf16.msra.mxu0 %v3299
        %3609 = vmatprep.subr.bf16.mxu0 0
        %3610 = vmatpush1.bf16.msra.mxu0 %v3300
        %3611 = vmatprep.subr.bf16.mxu0 0
        %3612 = vmatpush1.bf16.msra.mxu0 %v3301
        %3613 = vmatprep.subr.bf16.mxu0 0
        %3614 = vmatpush1.bf16.msra.mxu0 %v3302
        %3615 = vmatprep.subr.bf16.mxu0 0
        %3616 = vmatpush1.bf16.msra.mxu0 %v3303
        %3617 = vmatprep.subr.bf16.mxu0 0
        %3618 = vmatpush1.bf16.msra.mxu0 %v3304
        %3619 = vmatprep.subr.bf16.mxu0 0
        %3620 = vmatpush1.bf16.msra.mxu0 %v3305
        %3621 = vmatprep.subr.bf16.mxu0 0
        %3622 = vmatpush1.bf16.msra.mxu0 %v3306
        %3623 = vmatprep.subr.bf16.mxu0 0
        %3624 = vmatpush1.bf16.msra.mxu0 %v3307
        %3625 = vmatprep.subr.bf16.mxu0 0
        %3626 = vmatpush1.bf16.msra.mxu0 %v3308
        %3627 = vmatprep.subr.bf16.mxu0 0
        %3628 = vmatpush1.bf16.msra.mxu0 %v3309
        %3629 = vmatprep.subr.bf16.mxu0 0
        %3630 = vmatpush1.bf16.msra.mxu0 %v3310
        %3631 = vmatprep.subr.bf16.mxu0 0
        %3632 = vmatpush1.bf16.msra.mxu0 %v3311
        %3633 = vmatprep.subr.bf16.mxu0 0
        %3634 = vmatpush1.bf16.msra.mxu0 %v3312
        %3635 = vmatprep.mubr.bf16.mxu0 %v2479
        %3636 = vmatmul.mubr.bf16.gmra.mrb[0].mxu0 %v2478
        %v3637 = vpop.f32.mrb[0].mxu0
        %v3638 = vadd.f32 %v3597, %v3637
        %v3639 = vpop.f32.mrb[0].mxu0
        %v3640 = vpop.f32.mrb[0].mxu0
        %v3641 = vadd.f32 %v3600, %v3640
        %v3642 = vpop.f32.mrb[0].mxu0
        %3643 = vdwg.mxu0
        %3644 = vmatprep.subr.bf16.mxu0 0
        %3645 = vmatpush1.bf16.msra.mxu0 %v3313
        %3646 = vmatprep.subr.bf16.mxu0 0
        %3647 = vmatpush1.bf16.msra.mxu0 %v3314
        %3648 = vmatprep.subr.bf16.mxu0 0
        %3649 = vmatpush1.bf16.msra.mxu0 %v3315
        %3650 = vmatprep.subr.bf16.mxu0 0
        %3651 = vmatpush1.bf16.msra.mxu0 %v3316
        %3652 = vmatprep.subr.bf16.mxu0 0
        %3653 = vmatpush1.bf16.msra.mxu0 %v3317
        %3654 = vmatprep.subr.bf16.mxu0 0
        %3655 = vmatpush1.bf16.msra.mxu0 %v3318
        %3656 = vmatprep.subr.bf16.mxu0 0
        %3657 = vmatpush1.bf16.msra.mxu0 %v3319
        %3658 = vmatprep.subr.bf16.mxu0 0
        %3659 = vmatpush1.bf16.msra.mxu0 %v3320
        %3660 = vmatprep.subr.bf16.mxu0 0
        %3661 = vmatpush1.bf16.msra.mxu0 %v3321
        %3662 = vmatprep.subr.bf16.mxu0 0
        %3663 = vmatpush1.bf16.msra.mxu0 %v3322
        %3664 = vmatprep.subr.bf16.mxu0 0
        %3665 = vmatpush1.bf16.msra.mxu0 %v3323
        %3666 = vmatprep.subr.bf16.mxu0 0
        %3667 = vmatpush1.bf16.msra.mxu0 %v3324
        %3668 = vmatprep.subr.bf16.mxu0 0
        %3669 = vmatpush1.bf16.msra.mxu0 %v3325
        %3670 = vmatprep.subr.bf16.mxu0 0
        %3671 = vmatpush1.bf16.msra.mxu0 %v3326
        %3672 = vmatprep.subr.bf16.mxu0 0
        %3673 = vmatpush1.bf16.msra.mxu0 %v3327
        %3674 = vmatprep.subr.bf16.mxu0 0
        %3675 = vmatpush1.bf16.msra.mxu0 %v3328
        %3676 = vmatprep.mubr.bf16.mxu0 %v2481
        %3677 = vmatmul.mubr.bf16.gmra.mrb[0].mxu0 %v2480
        %v3678 = vpop.f32.mrb[0].mxu0
        %v3679 = vadd.f32 %v3638, %v3678
        %v3680 = vpop.f32.mrb[0].mxu0
        %v3681 = vpop.f32.mrb[0].mxu0
        %v3682 = vadd.f32 %v3641, %v3681
        %v3683 = vpop.f32.mrb[0].mxu0
        %3684 = vdwg.mxu0
        %3685 = vmatprep.subr.bf16.mxu0 0
        %3686 = vmatpush1.bf16.msra.mxu0 %v3329
        %3687 = vmatprep.subr.bf16.mxu0 0
        %3688 = vmatpush1.bf16.msra.mxu0 %v3330
        %3689 = vmatprep.subr.bf16.mxu0 0
        %3690 = vmatpush1.bf16.msra.mxu0 %v3331
        %3691 = vmatprep.subr.bf16.mxu0 0
        %3692 = vmatpush1.bf16.msra.mxu0 %v3332
        %3693 = vmatprep.subr.bf16.mxu0 0
        %3694 = vmatpush1.bf16.msra.mxu0 %v3333
        %3695 = vmatprep.subr.bf16.mxu0 0
        %3696 = vmatpush1.bf16.msra.mxu0 %v3334
        %3697 = vmatprep.subr.bf16.mxu0 0
        %3698 = vmatpush1.bf16.msra.mxu0 %v3335
        %3699 = vmatprep.subr.bf16.mxu0 0
        %3700 = vmatpush1.bf16.msra.mxu0 %v3336
        %3701 = vmatprep.subr.bf16.mxu0 0
        %3702 = vmatpush1.bf16.msra.mxu0 %v3337
        %3703 = vmatprep.subr.bf16.mxu0 0
        %3704 = vmatpush1.bf16.msra.mxu0 %v3338
        %3705 = vmatprep.subr.bf16.mxu0 0
        %3706 = vmatpush1.bf16.msra.mxu0 %v3339
        %3707 = vmatprep.subr.bf16.mxu0 0
        %3708 = vmatpush1.bf16.msra.mxu0 %v3340
        %3709 = vmatprep.subr.bf16.mxu0 0
        %3710 = vmatpush1.bf16.msra.mxu0 %v3341
        %3711 = vmatprep.subr.bf16.mxu0 0
        %3712 = vmatpush1.bf16.msra.mxu0 %v3342
        %3713 = vmatprep.subr.bf16.mxu0 0
        %3714 = vmatpush1.bf16.msra.mxu0 %v3343
        %3715 = vmatprep.subr.bf16.mxu0 0
        %3716 = vmatpush1.bf16.msra.mxu0 %v3344
        %3717 = vmatprep.mubr.bf16.mxu0 %v2483
        %3718 = vmatmul.mubr.bf16.gmra.mrb[0].mxu0 %v2482
        %v3719 = vpop.f32.mrb[0].mxu0
        %v3720 = vadd.f32 %v3679, %v3719
        %v3721 = vpop.f32.mrb[0].mxu0
        %v3722 = vpop.f32.mrb[0].mxu0
        %v3723 = vadd.f32 %v3682, %v3722
        %v3724 = vpop.f32.mrb[0].mxu0
        %3725 = vdwg.mxu0
        %3726 = vmatprep.subr.bf16.mxu0 0
        %3727 = vmatpush1.bf16.msra.mxu0 %v3345
        %3728 = vmatprep.subr.bf16.mxu0 0
        %3729 = vmatpush1.bf16.msra.mxu0 %v3346
        %3730 = vmatprep.subr.bf16.mxu0 0
        %3731 = vmatpush1.bf16.msra.mxu0 %v3347
        %3732 = vmatprep.subr.bf16.mxu0 0
        %3733 = vmatpush1.bf16.msra.mxu0 %v3348
        %3734 = vmatprep.subr.bf16.mxu0 0
        %3735 = vmatpush1.bf16.msra.mxu0 %v3349
        %3736 = vmatprep.subr.bf16.mxu0 0
        %3737 = vmatpush1.bf16.msra.mxu0 %v3350
        %3738 = vmatprep.subr.bf16.mxu0 0
        %3739 = vmatpush1.bf16.msra.mxu0 %v3351
        %3740 = vmatprep.subr.bf16.mxu0 0
        %3741 = vmatpush1.bf16.msra.mxu0 %v3352
        %3742 = vmatprep.subr.bf16.mxu0 0
        %3743 = vmatpush1.bf16.msra.mxu0 %v3353
        %3744 = vmatprep.subr.bf16.mxu0 0
        %3745 = vmatpush1.bf16.msra.mxu0 %v3354
        %3746 = vmatprep.subr.bf16.mxu0 0
        %3747 = vmatpush1.bf16.msra.mxu0 %v3355
        %3748 = vmatprep.subr.bf16.mxu0 0
        %3749 = vmatpush1.bf16.msra.mxu0 %v3356
        %3750 = vmatprep.subr.bf16.mxu0 0
        %3751 = vmatpush1.bf16.msra.mxu0 %v3357
        %3752 = vmatprep.subr.bf16.mxu0 0
        %3753 = vmatpush1.bf16.msra.mxu0 %v3358
        %3754 = vmatprep.subr.bf16.mxu0 0
        %3755 = vmatpush1.bf16.msra.mxu0 %v3359
        %3756 = vmatprep.subr.bf16.mxu0 0
        %3757 = vmatpush1.bf16.msra.mxu0 %v3360
        %3758 = vmatprep.mubr.bf16.mxu0 %v2485
        %3759 = vmatmul.mubr.bf16.gmra.mrb[0].mxu0 %v2484
        %v3760 = vpop.f32.mrb[0].mxu0
        %v3761 = vadd.f32 %v3720, %v3760
        %v3762 = vpop.f32.mrb[0].mxu0
        %v3763 = vpop.f32.mrb[0].mxu0
        %v3764 = vadd.f32 %v3723, %v3763
        %v3765 = vpop.f32.mrb[0].mxu0
        %3766 = vdwg.mxu0
        %3767 = vmatprep.subr.bf16.mxu0 0
        %3768 = vmatpush1.bf16.msra.mxu0 %v3361
        %3769 = vmatprep.subr.bf16.mxu0 0
        %3770 = vmatpush1.bf16.msra.mxu0 %v3362
        %3771 = vmatprep.subr.bf16.mxu0 0
        %3772 = vmatpush1.bf16.msra.mxu0 %v3363
        %3773 = vmatprep.subr.bf16.mxu0 0
        %3774 = vmatpush1.bf16.msra.mxu0 %v3364
        %3775 = vmatprep.subr.bf16.mxu0 0
        %3776 = vmatpush1.bf16.msra.mxu0 %v3365
        %3777 = vmatprep.subr.bf16.mxu0 0
        %3778 = vmatpush1.bf16.msra.mxu0 %v3366
        %3779 = vmatprep.subr.bf16.mxu0 0
        %3780 = vmatpush1.bf16.msra.mxu0 %v3367
        %3781 = vmatprep.subr.bf16.mxu0 0
        %3782 = vmatpush1.bf16.msra.mxu0 %v3368
        %3783 = vmatprep.subr.bf16.mxu0 0
        %3784 = vmatpush1.bf16.msra.mxu0 %v3369
        %3785 = vmatprep.subr.bf16.mxu0 0
        %3786 = vmatpush1.bf16.msra.mxu0 %v3370
        %3787 = vmatprep.subr.bf16.mxu0 0
        %3788 = vmatpush1.bf16.msra.mxu0 %v3371
        %3789 = vmatprep.subr.bf16.mxu0 0
        %3790 = vmatpush1.bf16.msra.mxu0 %v3372
        %3791 = vmatprep.subr.bf16.mxu0 0
        %3792 = vmatpush1.bf16.msra.mxu0 %v3373
        %3793 = vmatprep.subr.bf16.mxu0 0
        %3794 = vmatpush1.bf16.msra.mxu0 %v3374
        %3795 = vmatprep.subr.bf16.mxu0 0
        %3796 = vmatpush1.bf16.msra.mxu0 %v3375
        %3797 = vmatprep.subr.bf16.mxu0 0
        %3798 = vmatpush1.bf16.msra.mxu0 %v3376
        %3799 = vmatprep.mubr.bf16.mxu0 %v2487
        %3800 = vmatmul.mubr.bf16.gmra.mrb[0].mxu0 %v2486
        %v3801 = vpop.f32.mrb[0].mxu0
        %v3802 = vadd.f32 %v3761, %v3801
        %v3803 = vpop.f32.mrb[0].mxu0
        %v3804 = vpop.f32.mrb[0].mxu0
        %v3805 = vadd.f32 %v3764, %v3804
        %v3806 = vpop.f32.mrb[0].mxu0
        %3807 = vdwg.mxu0
        %3808 = vmatprep.subr.bf16.mxu0 0
        %3809 = vmatpush1.bf16.msra.mxu0 %v3377
        %3810 = vmatprep.subr.bf16.mxu0 0
        %3811 = vmatpush1.bf16.msra.mxu0 %v3378
        %3812 = vmatprep.subr.bf16.mxu0 0
        %3813 = vmatpush1.bf16.msra.mxu0 %v3379
        %3814 = vmatprep.subr.bf16.mxu0 0
        %3815 = vmatpush1.bf16.msra.mxu0 %v3380
        %3816 = vmatprep.subr.bf16.mxu0 0
        %3817 = vmatpush1.bf16.msra.mxu0 %v3381
        %3818 = vmatprep.subr.bf16.mxu0 0
        %3819 = vmatpush1.bf16.msra.mxu0 %v3382
        %3820 = vmatprep.subr.bf16.mxu0 0
        %3821 = vmatpush1.bf16.msra.mxu0 %v3383
        %3822 = vmatprep.subr.bf16.mxu0 0
        %3823 = vmatpush1.bf16.msra.mxu0 %v3384
        %3824 = vmatprep.subr.bf16.mxu0 0
        %3825 = vmatpush1.bf16.msra.mxu0 %v3385
        %3826 = vmatprep.subr.bf16.mxu0 0
        %3827 = vmatpush1.bf16.msra.mxu0 %v3386
        %3828 = vmatprep.subr.bf16.mxu0 0
        %3829 = vmatpush1.bf16.msra.mxu0 %v3387
        %3830 = vmatprep.subr.bf16.mxu0 0
        %3831 = vmatpush1.bf16.msra.mxu0 %v3388
        %3832 = vmatprep.subr.bf16.mxu0 0
        %3833 = vmatpush1.bf16.msra.mxu0 %v3389
        %3834 = vmatprep.subr.bf16.mxu0 0
        %3835 = vmatpush1.bf16.msra.mxu0 %v3390
        %3836 = vmatprep.subr.bf16.mxu0 0
        %3837 = vmatpush1.bf16.msra.mxu0 %v3391
        %3838 = vmatprep.subr.bf16.mxu0 0
        %3839 = vmatpush1.bf16.msra.mxu0 %v3392
        %3840 = vmatprep.mubr.bf16.mxu0 %v2489
        %3841 = vmatmul.mubr.bf16.gmra.mrb[0].mxu0 %v2488
        %v3842 = vpop.f32.mrb[0].mxu0
        %v3843 = vadd.f32 %v3802, %v3842
        %v3844 = vpop.f32.mrb[0].mxu0
        %v3845 = vpop.f32.mrb[0].mxu0
        %v3846 = vadd.f32 %v3805, %v3845
        %v3847 = vpop.f32.mrb[0].mxu0
        %3848 = vdwg.mxu0
        %v3849 = vadd.f32 %v1816, %v3843
        %v3850 = vadd.f32 %v1817, %v3846
        %v3851 = vld [vmem:[%s652] sm:$0x1]
        %v3852 = vld [vmem:[%s655] sm:$0x1]
        %v3853 = vsel %vm739, %v3849, 0.0
        %3854 = vadd.xlane.f32.xlu0 %v3853
        %v3855 = vpop.xlane.xlu0 %3854
        %v3856 = vsel %vm739, %v3850, 0.0
        %3857 = vadd.xlane.f32.xlu0 %v3856
        %v3858 = vpop.xlane.xlu0 %3857
        %v3859 = vmul.f32 %v3855, %v1781
        %v3860 = vmul.f32 %v3858, %v1781
        %v3861 = vsub.f32 %v3849, %v3859
        %v3862 = vsub.f32 %v3850, %v3860
        %v3863 = vmul.f32 %v3861, %v3861
        %v3864 = vmul.f32 %v3862, %v3862
        %v3865 = vsel %vm739, %v3863, 0.0
        %3866 = vadd.xlane.f32.xlu0 %v3865
        %v3867 = vpop.xlane.xlu0 %3866
        %v3868 = vsel %vm739, %v3864, 0.0
        %3869 = vadd.xlane.f32.xlu0 %v3868
        %v3870 = vpop.xlane.xlu0 %3869
        %v3871 = vmul.f32 %v3867, %v1781
        %v3872 = vmul.f32 %v3870, %v1781
        %v3873 = vadd.f32 %v3871, 1e-05
        %v3874 = vadd.f32 %v3872, 1e-05
        %v3875 = vrsqrt.pop %v3873
        %v3876 = vrsqrt.pop %v3874
        %v3877 = vmul.f32 %v3861, %v3875
        %v3878 = vmul.f32 %v3862, %v3876
        %v3880 = vlaneseq
        %v3881 = vshrl.u32 %v3880, 7
        %v3882 = vsub.s32 0, %v3881
        %v3883 = vrot.slane %v3851, %v3882
        %v3885 = vmul.f32 %v3877, %v3883
        %v3886 = vmul.f32 %v3878, %v3883
        %v3888 = vlaneseq
        %v3889 = vshrl.u32 %v3888, 7
        %v3890 = vsub.s32 0, %v3889
        %v3891 = vrot.slane %v3852, %v3890
        %v3893 = vadd.f32 %v3885, %v3891
        %v3894 = vadd.f32 %v3886, %v3891
        %3895 = vst.msk [vmem:[#allocation2] sm:$0xff] %vm739, %v3893
        %3896 = vst.msk [vmem:[#allocation2 + $0x8] sm:$0xff] %vm739, %v3894
        %p3897 = scmp.eq.s32.totalorder %s27, 1
        // Predicated region
        $region85: #{transformer_forward.1} parent=79 // pred_check
          %p3898 = pneg %p3897
        $region86: #{transformer_forward.1} parent=79 // pred_check_branch
          %3900 = sbr.rel (%p3898) target = $region88
        $region87: #{transformer_forward.1} parent=79 // pred_region
          %v3901 = vpack.c.bf16 %v3894, %v3894
          %v3902 = vld [vmem:[%s13] sm:$0xf]
          %v3903 = vld [vmem:[%s13 + $0x4] sm:$0xf]
          %v3904 = vld [vmem:[%s13 + $0x8] sm:$0xf]
          %v3905 = vld [vmem:[%s13 + $0xc] sm:$0xf]
          %v3906 = vld [vmem:[%s14] sm:$0x1]
          %v3908 = vlaneseq
          %v3909 = vshrl.u32 %v3908, 7
          %v3910 = vsub.s32 0, %v3909
          %v3911 = vrot.slane %v3906, %v3910
          %v3917 = vunpack.c.l.b16 %v3902
          %v3918 = vunpack.c.l.b16 %v3903
          %v3919 = vunpack.c.l.b16 %v3904
          %v3920 = vunpack.c.l.b16 %v3905
          %v3921 = vpack.c.b16 %v3918, %v3917
          %v3922 = vpack.c.b16 %v3920, %v3919
          %v3926 = vsel %vm739, %v3901, 0
          %3928 = vmatprep.subr.bf16.mxu0 0
          %3929 = vmatpush1.bf16.msra.mxu0 %v3921
          %3930 = vmatprep.subr.bf16.mxu0 0
          %3931 = vmatpush1.bf16.msra.mxu0 %v3922
          %3932 = vmatprep.subr.bf16.mxu0 0
          %3933 = vmatpush1.bf16.msra.mxu0 0
          %3934 = vmatprep.subr.bf16.mxu0 0
          %3935 = vmatpush1.bf16.msra.mxu0 0
          %3936 = vmatprep.subr.bf16.mxu0 0
          %3937 = vmatpush1.bf16.msra.mxu0 0
          %3938 = vmatprep.subr.bf16.mxu0 0
          %3939 = vmatpush1.bf16.msra.mxu0 0
          %3940 = vmatprep.subr.bf16.mxu0 0
          %3941 = vmatpush1.bf16.msra.mxu0 0
          %3942 = vmatprep.subr.bf16.mxu0 0
          %3943 = vmatpush1.bf16.msra.mxu0 0
          %3944 = vmatprep.subr.bf16.mxu0 0
          %3945 = vmatpush1.bf16.msra.mxu0 0
          %3946 = vmatprep.subr.bf16.mxu0 0
          %3947 = vmatpush1.bf16.msra.mxu0 0
          %3948 = vmatprep.subr.bf16.mxu0 0
          %3949 = vmatpush1.bf16.msra.mxu0 0
          %3950 = vmatprep.subr.bf16.mxu0 0
          %3951 = vmatpush1.bf16.msra.mxu0 0
          %3952 = vmatprep.subr.bf16.mxu0 0
          %3953 = vmatpush1.bf16.msra.mxu0 0
          %3954 = vmatprep.subr.bf16.mxu0 0
          %3955 = vmatpush1.bf16.msra.mxu0 0
          %3956 = vmatprep.subr.bf16.mxu0 0
          %3957 = vmatpush1.bf16.msra.mxu0 0
          %3958 = vmatprep.subr.bf16.mxu0 0
          %3959 = vmatpush1.bf16.msra.mxu0 0
          %3960 = vmatprep.mubr.bf16.mxu0 0
          %3961 = vmatmul.mubr.bf16.gmra.mrb[0].mxu0 %v3926
          %v3962 = vpop.f32.mrb[0].mxu0
          %v3963 = vadd.f32 %v3911, %v3962
          %v3964 = vpop.f32.mrb[0].mxu0
          %v3965 = vpop.f32.mrb[0].mxu0
          %v3966 = vpop.f32.mrb[0].mxu0
          %3967 = vdwg.mxu0
          %3968 = vst.msk [vmem:[#allocation4] sm:$0xff] %vm788, %v3963
        $region88: #{transformer_forward.1} parent=79 // pred_fallthru
          _
        // Predicated region
        $region89: #{transformer_forward.1} parent=79 // pred_check
          %p3969 = pneg %p415
        $region90: #{transformer_forward.1} parent=79 // pred_check_branch
          %3971 = sbr.rel (%p3969) target = $region92
        $region91: #{transformer_forward.1} parent=79 // pred_region
          %s3973 = ssub.s32 128, 128
          %3974 = vsyncadd [#allocation5], %s3973
          %s3976 = sshll.u32 [#allocation4], 4
          %s3977 = int_to_ptr.vmem [resolvable:$true] %s3976
          %3979 = dma.vmem_to_hbm [thread:$0]  %s3977, 128, %s15, [#allocation5]
        $region92: #{transformer_forward.1} parent=79 // pred_fallthru
          _
        // Predicated region
        $region93: #{transformer_forward.1} parent=79 // pred_check
          %p3980 = pneg %p415
        $region94: #{transformer_forward.1} parent=79 // pred_check_branch
          %3982 = sbr.rel (%p3980) target = $region96
        $region95: #{transformer_forward.1} parent=79 // pred_region
          %3983 = dma.done [#allocation5], 128
        $region96: #{transformer_forward.1} parent=79 // pred_fallthru
          _
      $region80: #{transformer_forward.1} parent=5 // pred_fallthru
        _
      %p3984 = scmp.le.s32.totalorder 2, %s22
      // Predicated region
      $region97: #{transformer_forward.1} parent=5 // pred_check
        %p3985 = pneg %p3984
      $region98: #{transformer_forward.1} parent=5 // pred_check_branch
        %3987 = sbr.rel (%p3985) target = $region100
      $region99: #{transformer_forward.1} parent=5 // pred_region
        %s3988 = ssub.s32 %s22, 2
      $region100: #{transformer_forward.1} parent=5 // pred_fallthru
        _
    $region6: #{transformer_forward.1} parent=1 // loop_footer
      %s26 = sadd.s32 1, %s22
    $region7: #{transformer_forward.1} parent=1 // loop_footer_branch
      %21 = sbr.rel target = $region3
    $region8: #{transformer_forward.1} parent=1 // loop_exit
      _
    %3989 = vsyncpa [#allocation5], 1
    %s3990 = scalar_lea.sflag [#allocation5], 1
    %3991 = vsyncpa %s3990, 1

</llo_original>
